<compile_context>
chip_gen: v7x
topology: tpu7x:2x2x1
jax: 0.10.0
libtpu: 0.0.40
codegen_flags: <defaults>
</compile_context>

<pallas_src>
import jax
import jax.numpy as jnp
from jax import lax
from jax.experimental import pallas as pl
from jax.experimental.pallas import tpu as pltpu

EMBED_DIM = 32
NUM_HEADS = 4
KSZ = 2                               # conv kernel size; 'same' for k=2 -> pad (0,1)
MXU_DTYPE = jnp.bfloat16              # matmul-operand dtype (f32 accumulation);
                                      # jnp.float32 gives a (slower) exact path.
RECIP_APPROX = MXU_DTYPE != jnp.float32   # exact softmax denom on the exact path


# ---------------------------------------------------------------------------
# in-register shifted copies for the 2x2 'same' conv taps
# (zero fill at the bottom row / rightmost column == PyTorch pad (0,1))
# ---------------------------------------------------------------------------
def _shift_w(t):
    """t[..., w] <- t[..., w+1]; zero at w = W-1."""
    zero_col = jnp.zeros(t.shape[:-1] + (1,), t.dtype)
    return jnp.concatenate([t[..., 1:], zero_col], axis=-1)


def _shift_h(t):
    """t[..., h, :] <- t[..., h+1, :]; zero at h = last row."""
    zero_row = jnp.zeros(t.shape[:-2] + (1, t.shape[-1]), t.dtype)
    return jnp.concatenate([t[..., 1:, :], zero_row], axis=-2)


# ---------------------------------------------------------------------------
# Fused kernel: conv_in + SiLU -> MHA (batched) -> conv_out + SiLU + residual
# One grid step covers TH output rows; attention is computed for TH+1 rows
# (1-row halo for conv_out's h+1 tap).
# ---------------------------------------------------------------------------
def attention_conv_kernel(xp_ref, w_in_ref, b_in_ref, wqkv_ref, bqkv_ref,
                          g_ref, gt_ref, wo_ref, bo_ref,
                          w_out_ref, b_out_ref, out_ref):
    """
    xp_ref   : [B, C, H+2, W] VMEM f32   (x with 2 zero rows appended at bottom)
    w_in_ref : [C, 4]         SMEM f32   (flattened 2x2 taps, in_conv C->1)
    b_in_ref : [1]            SMEM f32
    wqkv_ref : [E, 3E]        VMEM       (W_qkv^T, MXU_DTYPE)
    bqkv_ref : [1, 3E]        VMEM f32
    g_ref    : [E, nh]        VMEM       (head pooling: 1 iff dim e in head h)
    gt_ref   : [nh, E]        VMEM       (head broadcast)
    wo_ref   : [E, E]         VMEM       (W_o^T, MXU_DTYPE)
    bo_ref   : [1, E]         VMEM f32
    w_out_ref: [C, 4]         SMEM f32   (flattened 2x2 taps, out_conv 1->C)
    b_out_ref: [C]            SMEM f32
    out_ref  : [B, C, TH, W]  VMEM f32   (one H tile of the output)
    """
    B, C, TH, W = out_ref.shape
    H = xp_ref.shape[2] - 2                 # un-padded image height
    E = W
    nh = g_ref.shape[1]
    hd = E // nh
    L = B                                    # attention sequence length
    HB = TH + 1                              # rows computed here (incl. 1 halo)
    scale = 1.0 / float(hd) ** 0.5
    mxu = wqkv_ref.dtype

    h0 = pl.multiple_of(pl.program_id(0) * TH, TH)
    xp = xp_ref[:, :, pl.ds(h0, TH + 2), :]            # [B, C, TH+2, W]

    # ---- in_conv: Conv2d(C, 1, k=2, 'same') + SiLU -------------------------
    # Each SMEM tap scalar is read/splat exactly once; the bias broadcast is
    # added once at the end (JAX does not CSE broadcast_in_dim).
    acc = [jnp.zeros((B, TH + 2, W), jnp.float32) for _ in range(KSZ * KSZ)]
    for c in range(C):
        xc = xp[:, c]                                   # [B, TH+2, W]
        for t in range(KSZ * KSZ):
            acc[t] = acc[t] + xc * w_in_ref[c, t]
    pre = (acc[0] + _shift_w(acc[1]) + _shift_h(acc[2])
           + _shift_w(_shift_h(acc[3])) + b_in_ref[0])
    s = (pre * jax.nn.sigmoid(pre))[:, :HB, :]          # SiLU; [L=B, HB, E]

    # ---- MultiheadAttention: fully batched, 4 MXU dots ----------------------
    # (1) fused QKV projection
    s2 = s.reshape(L * HB, E)
    qkv = jnp.dot(s2.astype(mxu), wqkv_ref[...],
                  preferred_element_type=jnp.float32) + bqkv_ref[...]
    qkv = qkv.reshape(L, HB, 3 * E)
    q = qkv[:, :, :E]
    k = qkv[:, :, E:2 * E]
    v = qkv[:, :, 2 * E:]

    # (2) scores for all (i, j) pairs: elementwise q*k, pooled per head via g.
    qk = q[:, None, :, :] * k[None, :, :, :]            # [L, L, HB, E]
    sc = jnp.dot(qk.reshape(L * L * HB, E).astype(mxu), g_ref[...],
                 preferred_element_type=jnp.float32)
    sc = sc.reshape(L, L, HB, nh) * scale                # [i, j, n, h]

    # numerically stable softmax over the key axis (axis=1), all in f32
    m = jnp.max(sc, axis=1, keepdims=True)
    es = jnp.exp(sc - m)
    denom = jnp.sum(es, axis=1, keepdims=True)
    p = es * pl.reciprocal(denom, approx=RECIP_APPROX)   # [L, L, HB, nh]

    # (3) broadcast per-head probabilities back to E lanes via gt
    pf = jnp.dot(p.reshape(L * L * HB, nh).astype(mxu), gt_ref[...],
                 preferred_element_type=jnp.float32).reshape(L, L, HB, E)
    o = jnp.sum(pf * v[None, :, :, :], axis=1)           # [L, HB, E]

    # (4) output projection
    y = (jnp.dot(o.reshape(L * HB, E).astype(mxu), wo_ref[...],
                 preferred_element_type=jnp.float32) + bo_ref[...])
    y = y.reshape(L, HB, E)                               # [B, HB, W]

    # zero the halo attention row once it falls past the image bottom
    # (== the zero row the 'same' conv_out padding would supply)
    rows = lax.broadcasted_iota(jnp.int32, (HB, W), 0)
    y = jnp.where((h0 + rows < H)[None], y, 0.0)

    # ---- out_conv: Conv2d(1, C, k=2, 'same') + SiLU + residual --------------
    y01 = _shift_w(y)
    y10 = _shift_h(y)          # bottom neighbour comes from the halo row
    y11 = _shift_w(y10)
    y_t, y01_t, y10_t, y11_t = [t[:, :TH, :] for t in (y, y01, y10, y11)]
    for c in range(C):
        pre_c = (y_t * w_out_ref[c, 0] + y01_t * w_out_ref[c, 1]
                 + y10_t * w_out_ref[c, 2] + y11_t * w_out_ref[c, 3]
                 + b_out_ref[c])
        out_ref[:, c] = pre_c * jax.nn.sigmoid(pre_c) + xp[:, c, :TH, :]


# ---------------------------------------------------------------------------
# Wrapper: parameter packing + single pallas_call with a parallel grid over H
# ---------------------------------------------------------------------------
def attention_conv_forward(x, params, *, h_tile=None):
    B, C, H, W = x.shape
    E, nh = EMBED_DIM, NUM_HEADS
    hd = E // nh
    assert W == E, "spatial width must equal embed_dim for MultiheadAttention"

    if h_tile is None:
        h_tile = 8 if (H % 8 == 0 and H > 8) else H
    assert H % h_tile == 0 and (h_tile % 8 == 0 or h_tile == H)
    n_tiles = H // h_tile

    # 2 zero rows appended at the bottom: halo for the two stacked k=2 'same'
    # convs (in_conv needs row h+1, conv_out needs the attention of row h+1).
    x_pad = jnp.pad(x, ((0, 0), (0, 0), (0, 2), (0, 0)))

    w_in_flat = params['w_in'][0].reshape(C, KSZ * KSZ)        # [C, 4]
    w_out_flat = params['w_out'][:, 0].reshape(C, KSZ * KSZ)   # [C, 4]
    wqkv_t = params['w_qkv'].T.astype(MXU_DTYPE)               # [E, 3E]
    wo_t = params['w_o'].T.astype(MXU_DTYPE)                   # [E, E]
    bqkv = params['b_qkv'][None, :]                            # [1, 3E]
    bo = params['b_o'][None, :]                                # [1, E]
    # head pooling / broadcast matrices: g[e, h] = 1 iff e // hd == h
    # (exact in bf16 -> native single-pass MXU path for the score/prob dots)
    g = (jnp.arange(E)[:, None] // hd == jnp.arange(nh)[None, :]).astype(MXU_DTYPE)
    gt = jnp.transpose(g)

    vmem = pl.BlockSpec(memory_space=pltpu.MemorySpace.VMEM)
    smem = pl.BlockSpec(memory_space=pltpu.MemorySpace.SMEM)

    return pl.pallas_call(
        attention_conv_kernel,
        out_shape=jax.ShapeDtypeStruct((B, C, H, W), jnp.float32),
        grid=(n_tiles,),
        in_specs=[vmem,            # x_pad  (whole array, VMEM resident)
                  smem, smem,      # w_in, b_in
                  vmem, vmem,      # wqkv^T, b_qkv
                  vmem, vmem,      # g, g^T
                  vmem, vmem,      # wo^T, b_o
                  smem, smem],     # w_out, b_out
        out_specs=pl.BlockSpec((B, C, h_tile, W), lambda i: (0, 0, i, 0)),
        compiler_params=pltpu.CompilerParams(
            dimension_semantics=("parallel",)),   # v7x: split H tiles across TCs
    )(x_pad, w_in_flat, params['b_in'], wqkv_t, bqkv, g, gt, wo_t, bo,
      w_out_flat, params['b_out'])


# ---------------------------------------------------------------------------
# Pure-JAX reference (mirrors torch semantics) for a correctness smoke test
# ---------------------------------------------------------------------------
def _silu(z):
    return z * jax.nn.sigmoid(z)


def reference_forward(x, params):
    B, C, H, W = x.shape
    E, nh = EMBED_DIM, NUM_HEADS
    hd = E // nh
    hi = lax.Precision.HIGHEST

    y = lax.conv_general_dilated(
        x, params['w_in'], (1, 1), [(0, 1), (0, 1)],
        dimension_numbers=('NCHW', 'OIHW', 'NCHW'), precision=hi)
    y = _silu(y + params['b_in'][None, :, None, None])
    s = y[:, 0]                                     # (L=B, N=H, E=W)

    qkv = jnp.einsum('lne,fe->lnf', s, params['w_qkv'], precision=hi) + params['b_qkv']
    q, k, v = jnp.split(qkv, 3, axis=-1)

    def heads(t):                                   # (L, N, E) -> (N, nh, L, hd)
        return t.reshape(B, H, nh, hd).transpose(1, 2, 0, 3)

    qh, kh, vh = heads(q), heads(k), heads(v)
    sc = jnp.einsum('nhld,nhmd->nhlm', qh, kh, precision=hi) / float(hd) ** 0.5
    p = jax.nn.softmax(sc, axis=-1)
    oh = jnp.einsum('nhlm,nhmd->nhld', p, vh, precision=hi)
    o = oh.transpose(2, 0, 1, 3).reshape(B, H, E)
    o = jnp.einsum('lne,fe->lnf', o, params['w_o'], precision=hi) + params['b_o']

    z = lax.conv_general_dilated(
        o[:, None], params['w_out'], (1, 1), [(0, 1), (0, 1)],
        dimension_numbers=('NCHW', 'OIHW', 'NCHW'), precision=hi)
    return _silu(z + params['b_out'][None, :, None, None]) + x


if __name__ == "__main__":
    B, C, H, W = 2, 4, 16, EMBED_DIM   # W must equal embed_dim (=32)
    key = jax.random.PRNGKey(0)
    ks = jax.random.split(key, 9)
    params = {
        'w_in':  0.3 * jax.random.normal(ks[0], (1, C, KSZ, KSZ), jnp.float32),
        'b_in':  0.1 * jax.random.normal(ks[1], (1,), jnp.float32),
        'w_out': 0.3 * jax.random.normal(ks[2], (C, 1, KSZ, KSZ), jnp.float32),
        'b_out': 0.1 * jax.random.normal(ks[3], (C,), jnp.float32),
        'w_qkv': 0.2 * jax.random.normal(ks[4], (3 * EMBED_DIM, EMBED_DIM), jnp.float32),
        'b_qkv': 0.1 * jax.random.normal(ks[5], (3 * EMBED_DIM,), jnp.float32),
        'w_o':   0.2 * jax.random.normal(ks[6], (EMBED_DIM, EMBED_DIM), jnp.float32),
        'b_o':   0.1 * jax.random.normal(ks[7], (EMBED_DIM,), jnp.float32),
    }
    x = jax.random.normal(ks[8], (B, C, H, W), jnp.float32)

    out = jax.jit(attention_conv_forward)(x, params)
    out = jax.block_until_ready(out)

    assert out.shape == (B, C, H, W) and out.dtype == jnp.float32
    ref = reference_forward(x, params)
    err = float(jnp.max(jnp.abs(out - ref)))
    ref_scale = float(jnp.max(jnp.abs(ref)))
    rel = err / max(ref_scale, 1e-6)
    # Relative tolerance: bf16 MXU operands (all four dots) vs the all-f32
    # HIGHEST-precision reference.  MXU_DTYPE=jnp.float32 gives the exact path.
    tol = 3e-2 if MXU_DTYPE != jnp.float32 else 1e-5
    if rel > tol:
        raise AssertionError(
            f"mismatch vs reference: max abs err = {err} (relative {rel})")
    print("KERNEL_OK")
</pallas_src>

<mosaic_0001>
module attributes {stable_mosaic.version = 11 : i64} {
  func.func @attention_conv_kernel(%arg0: i32, %arg1: memref<2x4x18x32xf32, #tpu.memory_space<vmem>>, %arg2: memref<4x4xf32, #tpu.memory_space<smem>>, %arg3: memref<1xf32, #tpu.memory_space<smem>>, %arg4: memref<32x96xbf16, #tpu.memory_space<vmem>>, %arg5: memref<1x96xf32, #tpu.memory_space<vmem>>, %arg6: memref<32x4xbf16, #tpu.memory_space<vmem>>, %arg7: memref<4x32xbf16, #tpu.memory_space<vmem>>, %arg8: memref<32x32xbf16, #tpu.memory_space<vmem>>, %arg9: memref<1x32xf32, #tpu.memory_space<vmem>>, %arg10: memref<4x4xf32, #tpu.memory_space<smem>>, %arg11: memref<4xf32, #tpu.memory_space<smem>>, %arg12: memref<2x4x8x32xf32, #tpu.memory_space<vmem>>) attributes {dimension_semantics = [#tpu.dimension_semantics<parallel>], iteration_bounds = array<i64: 2>, scalar_prefetch = 0 : i64, scratch_operands = 0 : i64, tpu.core_type = #tpu.core_type<tc>, window_params = [{pipeline_mode = #tpu.pipeline_mode<synchronous>, transform_indices = @transform_0, window_bounds = array<i64: 2, 4, 18, 32>}, {transform_indices = @transform_1, window_bounds = array<i64: 4, 4>}, {transform_indices = @transform_2, window_bounds = array<i64: 1>}, {pipeline_mode = #tpu.pipeline_mode<synchronous>, transform_indices = @transform_3, window_bounds = array<i64: 32, 96>}, {pipeline_mode = #tpu.pipeline_mode<synchronous>, transform_indices = @transform_4, window_bounds = array<i64: 1, 96>}, {pipeline_mode = #tpu.pipeline_mode<synchronous>, transform_indices = @transform_5, window_bounds = array<i64: 32, 4>}, {pipeline_mode = #tpu.pipeline_mode<synchronous>, transform_indices = @transform_6, window_bounds = array<i64: 4, 32>}, {pipeline_mode = #tpu.pipeline_mode<synchronous>, transform_indices = @transform_7, window_bounds = array<i64: 32, 32>}, {pipeline_mode = #tpu.pipeline_mode<synchronous>, transform_indices = @transform_8, window_bounds = array<i64: 1, 32>}, {transform_indices = @transform_9, window_bounds = array<i64: 4, 4>}, {transform_indices = @transform_10, window_bounds = array<i64: 4>}, {transform_indices = @transform_11, window_bounds = array<i64: 2, 4, 8, 32>}]} {
    %c8_i32 = arith.constant 8 : i32
    %0 = arith.muli %arg0, %c8_i32 : i32
    %1 = tpu.assume_multiple %0, 8 : i32
    %c0 = arith.constant 0 : index
    %c0_0 = arith.constant 0 : index
    %2 = arith.index_cast %1 : i32 to index
    %c0_1 = arith.constant 0 : index
    %3 = vector.load %arg1[%c0, %c0_0, %2, %c0_1] : memref<2x4x18x32xf32, #tpu.memory_space<vmem>>, vector<2x4x10x32xf32>
    %cst = arith.constant 0.000000e+00 : f32
    %4 = vector.broadcast %cst : f32 to vector<2x10x32xf32>
    %cst_2 = arith.constant 0.000000e+00 : f32
    %5 = vector.broadcast %cst_2 : f32 to vector<2x10x32xf32>
    %cst_3 = arith.constant 0.000000e+00 : f32
    %6 = vector.broadcast %cst_3 : f32 to vector<2x10x32xf32>
    %cst_4 = arith.constant 0.000000e+00 : f32
    %7 = vector.broadcast %cst_4 : f32 to vector<2x10x32xf32>
    %8 = vector.extract_strided_slice %3 {offsets = [0, 0, 0, 0], sizes = [2, 1, 10, 32], strides = [1, 1, 1, 1]} : vector<2x4x10x32xf32> to vector<2x1x10x32xf32>
    %9 = vector.shape_cast %8 : vector<2x1x10x32xf32> to vector<2x10x32xf32>
    %c0_5 = arith.constant 0 : index
    %c0_6 = arith.constant 0 : index
    %10 = memref.load %arg2[%c0_5, %c0_6] : memref<4x4xf32, #tpu.memory_space<smem>>
    %11 = vector.broadcast %10 : f32 to vector<2x10x32xf32>
    %12 = arith.mulf %9, %11 : vector<2x10x32xf32>
    %13 = arith.addf %4, %12 : vector<2x10x32xf32>
    %c0_7 = arith.constant 0 : index
    %c1 = arith.constant 1 : index
    %14 = memref.load %arg2[%c0_7, %c1] : memref<4x4xf32, #tpu.memory_space<smem>>
    %15 = vector.broadcast %14 : f32 to vector<2x10x32xf32>
    %16 = arith.mulf %9, %15 : vector<2x10x32xf32>
    %17 = arith.addf %5, %16 : vector<2x10x32xf32>
    %c0_8 = arith.constant 0 : index
    %c2 = arith.constant 2 : index
    %18 = memref.load %arg2[%c0_8, %c2] : memref<4x4xf32, #tpu.memory_space<smem>>
    %19 = vector.broadcast %18 : f32 to vector<2x10x32xf32>
    %20 = arith.mulf %9, %19 : vector<2x10x32xf32>
    %21 = arith.addf %6, %20 : vector<2x10x32xf32>
    %c0_9 = arith.constant 0 : index
    %c3 = arith.constant 3 : index
    %22 = memref.load %arg2[%c0_9, %c3] : memref<4x4xf32, #tpu.memory_space<smem>>
    %23 = vector.broadcast %22 : f32 to vector<2x10x32xf32>
    %24 = arith.mulf %9, %23 : vector<2x10x32xf32>
    %25 = arith.addf %7, %24 : vector<2x10x32xf32>
    %26 = vector.extract_strided_slice %3 {offsets = [0, 1, 0, 0], sizes = [2, 1, 10, 32], strides = [1, 1, 1, 1]} : vector<2x4x10x32xf32> to vector<2x1x10x32xf32>
    %27 = vector.shape_cast %26 : vector<2x1x10x32xf32> to vector<2x10x32xf32>
    %c1_10 = arith.constant 1 : index
    %c0_11 = arith.constant 0 : index
    %28 = memref.load %arg2[%c1_10, %c0_11] : memref<4x4xf32, #tpu.memory_space<smem>>
    %29 = vector.broadcast %28 : f32 to vector<2x10x32xf32>
    %30 = arith.mulf %27, %29 : vector<2x10x32xf32>
    %31 = arith.addf %13, %30 : vector<2x10x32xf32>
    %c1_12 = arith.constant 1 : index
    %c1_13 = arith.constant 1 : index
    %32 = memref.load %arg2[%c1_12, %c1_13] : memref<4x4xf32, #tpu.memory_space<smem>>
    %33 = vector.broadcast %32 : f32 to vector<2x10x32xf32>
    %34 = arith.mulf %27, %33 : vector<2x10x32xf32>
    %35 = arith.addf %17, %34 : vector<2x10x32xf32>
    %c1_14 = arith.constant 1 : index
    %c2_15 = arith.constant 2 : index
    %36 = memref.load %arg2[%c1_14, %c2_15] : memref<4x4xf32, #tpu.memory_space<smem>>
    %37 = vector.broadcast %36 : f32 to vector<2x10x32xf32>
    %38 = arith.mulf %27, %37 : vector<2x10x32xf32>
    %39 = arith.addf %21, %38 : vector<2x10x32xf32>
    %c1_16 = arith.constant 1 : index
    %c3_17 = arith.constant 3 : index
    %40 = memref.load %arg2[%c1_16, %c3_17] : memref<4x4xf32, #tpu.memory_space<smem>>
    %41 = vector.broadcast %40 : f32 to vector<2x10x32xf32>
    %42 = arith.mulf %27, %41 : vector<2x10x32xf32>
    %43 = arith.addf %25, %42 : vector<2x10x32xf32>
    %44 = vector.extract_strided_slice %3 {offsets = [0, 2, 0, 0], sizes = [2, 1, 10, 32], strides = [1, 1, 1, 1]} : vector<2x4x10x32xf32> to vector<2x1x10x32xf32>
    %45 = vector.shape_cast %44 : vector<2x1x10x32xf32> to vector<2x10x32xf32>
    %c2_18 = arith.constant 2 : index
    %c0_19 = arith.constant 0 : index
    %46 = memref.load %arg2[%c2_18, %c0_19] : memref<4x4xf32, #tpu.memory_space<smem>>
    %47 = vector.broadcast %46 : f32 to vector<2x10x32xf32>
    %48 = arith.mulf %45, %47 : vector<2x10x32xf32>
    %49 = arith.addf %31, %48 : vector<2x10x32xf32>
    %c2_20 = arith.constant 2 : index
    %c1_21 = arith.constant 1 : index
    %50 = memref.load %arg2[%c2_20, %c1_21] : memref<4x4xf32, #tpu.memory_space<smem>>
    %51 = vector.broadcast %50 : f32 to vector<2x10x32xf32>
    %52 = arith.mulf %45, %51 : vector<2x10x32xf32>
    %53 = arith.addf %35, %52 : vector<2x10x32xf32>
    %c2_22 = arith.constant 2 : index
    %c2_23 = arith.constant 2 : index
    %54 = memref.load %arg2[%c2_22, %c2_23] : memref<4x4xf32, #tpu.memory_space<smem>>
    %55 = vector.broadcast %54 : f32 to vector<2x10x32xf32>
    %56 = arith.mulf %45, %55 : vector<2x10x32xf32>
    %57 = arith.addf %39, %56 : vector<2x10x32xf32>
    %c2_24 = arith.constant 2 : index
    %c3_25 = arith.constant 3 : index
    %58 = memref.load %arg2[%c2_24, %c3_25] : memref<4x4xf32, #tpu.memory_space<smem>>
    %59 = vector.broadcast %58 : f32 to vector<2x10x32xf32>
    %60 = arith.mulf %45, %59 : vector<2x10x32xf32>
    %61 = arith.addf %43, %60 : vector<2x10x32xf32>
    %62 = vector.extract_strided_slice %3 {offsets = [0, 3, 0, 0], sizes = [2, 1, 10, 32], strides = [1, 1, 1, 1]} : vector<2x4x10x32xf32> to vector<2x1x10x32xf32>
    %63 = vector.shape_cast %62 : vector<2x1x10x32xf32> to vector<2x10x32xf32>
    %c3_26 = arith.constant 3 : index
    %c0_27 = arith.constant 0 : index
    %64 = memref.load %arg2[%c3_26, %c0_27] : memref<4x4xf32, #tpu.memory_space<smem>>
    %65 = vector.broadcast %64 : f32 to vector<2x10x32xf32>
    %66 = arith.mulf %63, %65 : vector<2x10x32xf32>
    %67 = arith.addf %49, %66 : vector<2x10x32xf32>
    %c3_28 = arith.constant 3 : index
    %c1_29 = arith.constant 1 : index
    %68 = memref.load %arg2[%c3_28, %c1_29] : memref<4x4xf32, #tpu.memory_space<smem>>
    %69 = vector.broadcast %68 : f32 to vector<2x10x32xf32>
    %70 = arith.mulf %63, %69 : vector<2x10x32xf32>
    %71 = arith.addf %53, %70 : vector<2x10x32xf32>
    %c3_30 = arith.constant 3 : index
    %c2_31 = arith.constant 2 : index
    %72 = memref.load %arg2[%c3_30, %c2_31] : memref<4x4xf32, #tpu.memory_space<smem>>
    %73 = vector.broadcast %72 : f32 to vector<2x10x32xf32>
    %74 = arith.mulf %63, %73 : vector<2x10x32xf32>
    %75 = arith.addf %57, %74 : vector<2x10x32xf32>
    %c3_32 = arith.constant 3 : index
    %c3_33 = arith.constant 3 : index
    %76 = memref.load %arg2[%c3_32, %c3_33] : memref<4x4xf32, #tpu.memory_space<smem>>
    %77 = vector.broadcast %76 : f32 to vector<2x10x32xf32>
    %78 = arith.mulf %63, %77 : vector<2x10x32xf32>
    %79 = arith.addf %61, %78 : vector<2x10x32xf32>
    %cst_34 = arith.constant 0.000000e+00 : f32
    %80 = vector.broadcast %cst_34 : f32 to vector<2x10x1xf32>
    %81 = vector.extract_strided_slice %71 {offsets = [0, 0, 1], sizes = [2, 10, 31], strides = [1, 1, 1]} : vector<2x10x32xf32> to vector<2x10x31xf32>
    %82 = tpu.concatenate %81, %80 in 2 : vector<2x10x31xf32>, vector<2x10x1xf32> -> vector<2x10x32xf32>
    %83 = arith.addf %67, %82 : vector<2x10x32xf32>
    %cst_35 = arith.constant 0.000000e+00 : f32
    %84 = vector.broadcast %cst_35 : f32 to vector<2x1x32xf32>
    %85 = vector.extract_strided_slice %75 {offsets = [0, 1, 0], sizes = [2, 9, 32], strides = [1, 1, 1]} : vector<2x10x32xf32> to vector<2x9x32xf32>
    %86 = tpu.concatenate %85, %84 in 1 : vector<2x9x32xf32>, vector<2x1x32xf32> -> vector<2x10x32xf32>
    %87 = arith.addf %83, %86 : vector<2x10x32xf32>
    %cst_36 = arith.constant 0.000000e+00 : f32
    %88 = vector.broadcast %cst_36 : f32 to vector<2x1x32xf32>
    %89 = vector.extract_strided_slice %79 {offsets = [0, 1, 0], sizes = [2, 9, 32], strides = [1, 1, 1]} : vector<2x10x32xf32> to vector<2x9x32xf32>
    %90 = tpu.concatenate %89, %88 in 1 : vector<2x9x32xf32>, vector<2x1x32xf32> -> vector<2x10x32xf32>
    %cst_37 = arith.constant 0.000000e+00 : f32
    %91 = vector.broadcast %cst_37 : f32 to vector<2x10x1xf32>
    %92 = vector.extract_strided_slice %90 {offsets = [0, 0, 1], sizes = [2, 10, 31], strides = [1, 1, 1]} : vector<2x10x32xf32> to vector<2x10x31xf32>
    %93 = tpu.concatenate %92, %91 in 2 : vector<2x10x31xf32>, vector<2x10x1xf32> -> vector<2x10x32xf32>
    %94 = arith.addf %87, %93 : vector<2x10x32xf32>
    %c0_38 = arith.constant 0 : index
    %95 = memref.load %arg3[%c0_38] : memref<1xf32, #tpu.memory_space<smem>>
    %96 = vector.broadcast %95 : f32 to vector<2x10x32xf32>
    %97 = arith.addf %94, %96 : vector<2x10x32xf32>
    %98 = arith.negf %97 : vector<2x10x32xf32>
    %99 = math.exp %98 : vector<2x10x32xf32>
    %cst_39 = arith.constant 1.000000e+00 : f32
    %100 = vector.broadcast %cst_39 : f32 to vector<2x10x32xf32>
    %101 = arith.addf %100, %99 : vector<2x10x32xf32>
    %102 = arith.divf %100, %101 : vector<2x10x32xf32>
    %103 = arith.mulf %97, %102 : vector<2x10x32xf32>
    %104 = vector.extract_strided_slice %103 {offsets = [0, 0, 0], sizes = [2, 9, 32], strides = [1, 1, 1]} : vector<2x10x32xf32> to vector<2x9x32xf32>
    %105 = vector.shape_cast %104 : vector<2x9x32xf32> to vector<18x32xf32>
    %106 = arith.truncf %105 : vector<18x32xf32> to vector<18x32xbf16>
    %c0_40 = arith.constant 0 : index
    %c0_41 = arith.constant 0 : index
    %107 = vector.load %arg4[%c0_40, %c0_41] : memref<32x96xbf16, #tpu.memory_space<vmem>>, vector<32x96xbf16>
    %cst_42 = arith.constant dense<0.000000e+00> : vector<18x96xf32>
    %108 = tpu.matmul %106, %107, %cst_42 {dimension_numbers = #tpu.dot_dimension_numbers<[1], [0], [0], [1], [0, 0, 1, 1], [], []>} : vector<18x32xbf16>, vector<32x96xbf16>, vector<18x96xf32> -> vector<18x96xf32>
    %c0_43 = arith.constant 0 : index
    %c0_44 = arith.constant 0 : index
    %109 = vector.load %arg5[%c0_43, %c0_44] : memref<1x96xf32, #tpu.memory_space<vmem>>, vector<1x96xf32>
    %110 = vector.broadcast %109 : vector<1x96xf32> to vector<18x96xf32>
    %111 = arith.addf %108, %110 : vector<18x96xf32>
    %112 = vector.shape_cast %111 : vector<18x96xf32> to vector<2x9x96xf32>
    %113 = vector.extract_strided_slice %112 {offsets = [0, 0, 0], sizes = [2, 9, 32], strides = [1, 1, 1]} : vector<2x9x96xf32> to vector<2x9x32xf32>
    %114 = vector.extract_strided_slice %112 {offsets = [0, 0, 32], sizes = [2, 9, 32], strides = [1, 1, 1]} : vector<2x9x96xf32> to vector<2x9x32xf32>
    %115 = vector.extract_strided_slice %112 {offsets = [0, 0, 64], sizes = [2, 9, 32], strides = [1, 1, 1]} : vector<2x9x96xf32> to vector<2x9x32xf32>
    %116 = vector.shape_cast %113 : vector<2x9x32xf32> to vector<2x1x9x32xf32>
    %117 = vector.shape_cast %114 : vector<2x9x32xf32> to vector<1x2x9x32xf32>
    %118 = vector.broadcast %116 : vector<2x1x9x32xf32> to vector<2x2x9x32xf32>
    %119 = vector.broadcast %117 : vector<1x2x9x32xf32> to vector<2x2x9x32xf32>
    %120 = arith.mulf %118, %119 : vector<2x2x9x32xf32>
    %121 = vector.shape_cast %120 : vector<2x2x9x32xf32> to vector<36x32xf32>
    %122 = arith.truncf %121 : vector<36x32xf32> to vector<36x32xbf16>
    %c0_45 = arith.constant 0 : index
    %c0_46 = arith.constant 0 : index
    %123 = vector.load %arg6[%c0_45, %c0_46] : memref<32x4xbf16, #tpu.memory_space<vmem>>, vector<32x4xbf16>
    %cst_47 = arith.constant dense<0.000000e+00> : vector<36x4xf32>
    %124 = tpu.matmul %122, %123, %cst_47 {dimension_numbers = #tpu.dot_dimension_numbers<[1], [0], [0], [1], [0, 0, 1, 1], [], []>} : vector<36x32xbf16>, vector<32x4xbf16>, vector<36x4xf32> -> vector<36x4xf32>
    %125 = vector.shape_cast %124 : vector<36x4xf32> to vector<2x2x9x4xf32>
    %cst_48 = arith.constant 0.353553385 : f32
    %126 = vector.broadcast %cst_48 : f32 to vector<2x2x9x4xf32>
    %127 = arith.mulf %125, %126 : vector<2x2x9x4xf32>
    %cst_49 = arith.constant dense<0xFF800000> : vector<2x9x4xf32>
    %128 = vector.multi_reduction <maximumf>, %127, %cst_49 [1] : vector<2x2x9x4xf32> to vector<2x9x4xf32>
    %129 = vector.shape_cast %128 : vector<2x9x4xf32> to vector<2x1x9x4xf32>
    %130 = vector.broadcast %129 : vector<2x1x9x4xf32> to vector<2x2x9x4xf32>
    %131 = arith.subf %127, %130 : vector<2x2x9x4xf32>
    %132 = math.exp %131 : vector<2x2x9x4xf32>
    %cst_50 = arith.constant dense<0.000000e+00> : vector<2x9x4xf32>
    %133 = vector.multi_reduction <add>, %132, %cst_50 [1] : vector<2x2x9x4xf32> to vector<2x9x4xf32>
    %134 = vector.shape_cast %133 : vector<2x9x4xf32> to vector<2x1x9x4xf32>
    %135 = tpu.reciprocal %134 {approx = true} : vector<2x1x9x4xf32> -> vector<2x1x9x4xf32>
    %136 = vector.broadcast %135 : vector<2x1x9x4xf32> to vector<2x2x9x4xf32>
    %137 = arith.mulf %132, %136 : vector<2x2x9x4xf32>
    %138 = vector.shape_cast %137 : vector<2x2x9x4xf32> to vector<36x4xf32>
    %139 = arith.truncf %138 : vector<36x4xf32> to vector<36x4xbf16>
    %c0_51 = arith.constant 0 : index
    %c0_52 = arith.constant 0 : index
    %140 = vector.load %arg7[%c0_51, %c0_52] : memref<4x32xbf16, #tpu.memory_space<vmem>>, vector<4x32xbf16>
    %cst_53 = arith.constant dense<0.000000e+00> : vector<36x32xf32>
    %141 = tpu.matmul %139, %140, %cst_53 {dimension_numbers = #tpu.dot_dimension_numbers<[1], [0], [0], [1], [0, 0, 1, 1], [], []>} : vector<36x4xbf16>, vector<4x32xbf16>, vector<36x32xf32> -> vector<36x32xf32>
    %142 = vector.shape_cast %141 : vector<36x32xf32> to vector<2x2x9x32xf32>
    %143 = vector.shape_cast %115 : vector<2x9x32xf32> to vector<1x2x9x32xf32>
    %144 = vector.broadcast %143 : vector<1x2x9x32xf32> to vector<2x2x9x32xf32>
    %145 = arith.mulf %142, %144 : vector<2x2x9x32xf32>
    %cst_54 = arith.constant dense<0.000000e+00> : vector<2x9x32xf32>
    %146 = vector.multi_reduction <add>, %145, %cst_54 [1] : vector<2x2x9x32xf32> to vector<2x9x32xf32>
    %147 = vector.shape_cast %146 : vector<2x9x32xf32> to vector<18x32xf32>
    %148 = arith.truncf %147 : vector<18x32xf32> to vector<18x32xbf16>
    %c0_55 = arith.constant 0 : index
    %c0_56 = arith.constant 0 : index
    %149 = vector.load %arg8[%c0_55, %c0_56] : memref<32x32xbf16, #tpu.memory_space<vmem>>, vector<32x32xbf16>
    %cst_57 = arith.constant dense<0.000000e+00> : vector<18x32xf32>
    %150 = tpu.matmul %148, %149, %cst_57 {dimension_numbers = #tpu.dot_dimension_numbers<[1], [0], [0], [1], [0, 0, 1, 1], [], []>} : vector<18x32xbf16>, vector<32x32xbf16>, vector<18x32xf32> -> vector<18x32xf32>
    %c0_58 = arith.constant 0 : index
    %c0_59 = arith.constant 0 : index
    %151 = vector.load %arg9[%c0_58, %c0_59] : memref<1x32xf32, #tpu.memory_space<vmem>>, vector<1x32xf32>
    %152 = vector.broadcast %151 : vector<1x32xf32> to vector<18x32xf32>
    %153 = arith.addf %150, %152 : vector<18x32xf32>
    %154 = vector.shape_cast %153 : vector<18x32xf32> to vector<2x9x32xf32>
    %155 = tpu.iota {dimensions = array<i32: 0>} : vector<9x32xi32>
    %156 = vector.broadcast %1 : i32 to vector<9x32xi32>
    %157 = arith.addi %156, %155 : vector<9x32xi32>
    %c16_i32 = arith.constant 16 : i32
    %158 = vector.broadcast %c16_i32 : i32 to vector<9x32xi32>
    %159 = arith.cmpi slt, %157, %158 : vector<9x32xi32>
    %160 = vector.shape_cast %159 : vector<9x32xi1> to vector<1x9x32xi1>
    %cst_60 = arith.constant 0.000000e+00 : f32
    %161 = vector.shape_cast %160 : vector<1x9x32xi1> to vector<1x9x32xi1>
    %162 = vector.broadcast %161 : vector<1x9x32xi1> to vector<2x9x32xi1>
    %163 = vector.broadcast %cst_60 : f32 to vector<2x9x32xf32>
    %164 = arith.select %162, %154, %163 : vector<2x9x32xi1>, vector<2x9x32xf32>
    %cst_61 = arith.constant 0.000000e+00 : f32
    %165 = vector.broadcast %cst_61 : f32 to vector<2x9x1xf32>
    %166 = vector.extract_strided_slice %164 {offsets = [0, 0, 1], sizes = [2, 9, 31], strides = [1, 1, 1]} : vector<2x9x32xf32> to vector<2x9x31xf32>
    %167 = tpu.concatenate %166, %165 in 2 : vector<2x9x31xf32>, vector<2x9x1xf32> -> vector<2x9x32xf32>
    %cst_62 = arith.constant 0.000000e+00 : f32
    %168 = vector.broadcast %cst_62 : f32 to vector<2x1x32xf32>
    %169 = vector.extract_strided_slice %164 {offsets = [0, 1, 0], sizes = [2, 8, 32], strides = [1, 1, 1]} : vector<2x9x32xf32> to vector<2x8x32xf32>
    %170 = tpu.concatenate %169, %168 in 1 : vector<2x8x32xf32>, vector<2x1x32xf32> -> vector<2x9x32xf32>
    %cst_63 = arith.constant 0.000000e+00 : f32
    %171 = vector.broadcast %cst_63 : f32 to vector<2x9x1xf32>
    %172 = vector.extract_strided_slice %170 {offsets = [0, 0, 1], sizes = [2, 9, 31], strides = [1, 1, 1]} : vector<2x9x32xf32> to vector<2x9x31xf32>
    %173 = tpu.concatenate %172, %171 in 2 : vector<2x9x31xf32>, vector<2x9x1xf32> -> vector<2x9x32xf32>
    %174 = vector.extract_strided_slice %164 {offsets = [0, 0, 0], sizes = [2, 8, 32], strides = [1, 1, 1]} : vector<2x9x32xf32> to vector<2x8x32xf32>
    %175 = vector.extract_strided_slice %167 {offsets = [0, 0, 0], sizes = [2, 8, 32], strides = [1, 1, 1]} : vector<2x9x32xf32> to vector<2x8x32xf32>
    %176 = vector.extract_strided_slice %170 {offsets = [0, 0, 0], sizes = [2, 8, 32], strides = [1, 1, 1]} : vector<2x9x32xf32> to vector<2x8x32xf32>
    %177 = vector.extract_strided_slice %173 {offsets = [0, 0, 0], sizes = [2, 8, 32], strides = [1, 1, 1]} : vector<2x9x32xf32> to vector<2x8x32xf32>
    %c0_64 = arith.constant 0 : index
    %c0_65 = arith.constant 0 : index
    %178 = memref.load %arg10[%c0_64, %c0_65] : memref<4x4xf32, #tpu.memory_space<smem>>
    %179 = vector.broadcast %178 : f32 to vector<2x8x32xf32>
    %180 = arith.mulf %174, %179 : vector<2x8x32xf32>
    %c0_66 = arith.constant 0 : index
    %c1_67 = arith.constant 1 : index
    %181 = memref.load %arg10[%c0_66, %c1_67] : memref<4x4xf32, #tpu.memory_space<smem>>
    %182 = vector.broadcast %181 : f32 to vector<2x8x32xf32>
    %183 = arith.mulf %175, %182 : vector<2x8x32xf32>
    %184 = arith.addf %180, %183 : vector<2x8x32xf32>
    %c0_68 = arith.constant 0 : index
    %c2_69 = arith.constant 2 : index
    %185 = memref.load %arg10[%c0_68, %c2_69] : memref<4x4xf32, #tpu.memory_space<smem>>
    %186 = vector.broadcast %185 : f32 to vector<2x8x32xf32>
    %187 = arith.mulf %176, %186 : vector<2x8x32xf32>
    %188 = arith.addf %184, %187 : vector<2x8x32xf32>
    %c0_70 = arith.constant 0 : index
    %c3_71 = arith.constant 3 : index
    %189 = memref.load %arg10[%c0_70, %c3_71] : memref<4x4xf32, #tpu.memory_space<smem>>
    %190 = vector.broadcast %189 : f32 to vector<2x8x32xf32>
    %191 = arith.mulf %177, %190 : vector<2x8x32xf32>
    %192 = arith.addf %188, %191 : vector<2x8x32xf32>
    %c0_72 = arith.constant 0 : index
    %193 = memref.load %arg11[%c0_72] : memref<4xf32, #tpu.memory_space<smem>>
    %194 = vector.broadcast %193 : f32 to vector<2x8x32xf32>
    %195 = arith.addf %192, %194 : vector<2x8x32xf32>
    %196 = arith.negf %195 : vector<2x8x32xf32>
    %197 = math.exp %196 : vector<2x8x32xf32>
    %cst_73 = arith.constant 1.000000e+00 : f32
    %198 = vector.broadcast %cst_73 : f32 to vector<2x8x32xf32>
    %199 = arith.addf %198, %197 : vector<2x8x32xf32>
    %200 = arith.divf %198, %199 : vector<2x8x32xf32>
    %201 = arith.mulf %195, %200 : vector<2x8x32xf32>
    %202 = vector.extract_strided_slice %3 {offsets = [0, 0, 0, 0], sizes = [2, 1, 8, 32], strides = [1, 1, 1, 1]} : vector<2x4x10x32xf32> to vector<2x1x8x32xf32>
    %203 = vector.shape_cast %202 : vector<2x1x8x32xf32> to vector<2x8x32xf32>
    %204 = arith.addf %201, %203 : vector<2x8x32xf32>
    %c0_74 = arith.constant 0 : index
    %c0_75 = arith.constant 0 : index
    %c0_76 = arith.constant 0 : index
    %c0_77 = arith.constant 0 : index
    %205 = vector.load %arg12[%c0_74, %c0_75, %c0_76, %c0_77] : memref<2x4x8x32xf32, #tpu.memory_space<vmem>>, vector<2x1x8x32xf32>
    %206 = vector.shape_cast %205 : vector<2x1x8x32xf32> to vector<2x8x32xf32>
    %207 = vector.shape_cast %204 : vector<2x8x32xf32> to vector<2x1x8x32xf32>
    tpu.vector_store %arg12[%c0_74, %c0_75, %c0_76, %c0_77], %207 {strides = array<i32>} : memref<2x4x8x32xf32, #tpu.memory_space<vmem>>, vector<2x1x8x32xf32>,
    %c1_78 = arith.constant 1 : index
    %c0_79 = arith.constant 0 : index
    %208 = memref.load %arg10[%c1_78, %c0_79] : memref<4x4xf32, #tpu.memory_space<smem>>
    %209 = vector.broadcast %208 : f32 to vector<2x8x32xf32>
    %210 = arith.mulf %174, %209 : vector<2x8x32xf32>
    %c1_80 = arith.constant 1 : index
    %c1_81 = arith.constant 1 : index
    %211 = memref.load %arg10[%c1_80, %c1_81] : memref<4x4xf32, #tpu.memory_space<smem>>
    %212 = vector.broadcast %211 : f32 to vector<2x8x32xf32>
    %213 = arith.mulf %175, %212 : vector<2x8x32xf32>
    %214 = arith.addf %210, %213 : vector<2x8x32xf32>
    %c1_82 = arith.constant 1 : index
    %c2_83 = arith.constant 2 : index
    %215 = memref.load %arg10[%c1_82, %c2_83] : memref<4x4xf32, #tpu.memory_space<smem>>
    %216 = vector.broadcast %215 : f32 to vector<2x8x32xf32>
    %217 = arith.mulf %176, %216 : vector<2x8x32xf32>
    %218 = arith.addf %214, %217 : vector<2x8x32xf32>
    %c1_84 = arith.constant 1 : index
    %c3_85 = arith.constant 3 : index
    %219 = memref.load %arg10[%c1_84, %c3_85] : memref<4x4xf32, #tpu.memory_space<smem>>
    %220 = vector.broadcast %219 : f32 to vector<2x8x32xf32>
    %221 = arith.mulf %177, %220 : vector<2x8x32xf32>
    %222 = arith.addf %218, %221 : vector<2x8x32xf32>
    %c1_86 = arith.constant 1 : index
    %223 = memref.load %arg11[%c1_86] : memref<4xf32, #tpu.memory_space<smem>>
    %224 = vector.broadcast %223 : f32 to vector<2x8x32xf32>
    %225 = arith.addf %222, %224 : vector<2x8x32xf32>
    %226 = arith.negf %225 : vector<2x8x32xf32>
    %227 = math.exp %226 : vector<2x8x32xf32>
    %cst_87 = arith.constant 1.000000e+00 : f32
    %228 = vector.broadcast %cst_87 : f32 to vector<2x8x32xf32>
    %229 = arith.addf %228, %227 : vector<2x8x32xf32>
    %230 = arith.divf %228, %229 : vector<2x8x32xf32>
    %231 = arith.mulf %225, %230 : vector<2x8x32xf32>
    %232 = vector.extract_strided_slice %3 {offsets = [0, 1, 0, 0], sizes = [2, 1, 8, 32], strides = [1, 1, 1, 1]} : vector<2x4x10x32xf32> to vector<2x1x8x32xf32>
    %233 = vector.shape_cast %232 : vector<2x1x8x32xf32> to vector<2x8x32xf32>
    %234 = arith.addf %231, %233 : vector<2x8x32xf32>
    %c0_88 = arith.constant 0 : index
    %c1_89 = arith.constant 1 : index
    %c0_90 = arith.constant 0 : index
    %c0_91 = arith.constant 0 : index
    %235 = vector.load %arg12[%c0_88, %c1_89, %c0_90, %c0_91] : memref<2x4x8x32xf32, #tpu.memory_space<vmem>>, vector<2x1x8x32xf32>
    %236 = vector.shape_cast %235 : vector<2x1x8x32xf32> to vector<2x8x32xf32>
    %237 = vector.shape_cast %234 : vector<2x8x32xf32> to vector<2x1x8x32xf32>
    tpu.vector_store %arg12[%c0_88, %c1_89, %c0_90, %c0_91], %237 {strides = array<i32>} : memref<2x4x8x32xf32, #tpu.memory_space<vmem>>, vector<2x1x8x32xf32>,
    %c2_92 = arith.constant 2 : index
    %c0_93 = arith.constant 0 : index
    %238 = memref.load %arg10[%c2_92, %c0_93] : memref<4x4xf32, #tpu.memory_space<smem>>
    %239 = vector.broadcast %238 : f32 to vector<2x8x32xf32>
    %240 = arith.mulf %174, %239 : vector<2x8x32xf32>
    %c2_94 = arith.constant 2 : index
    %c1_95 = arith.constant 1 : index
    %241 = memref.load %arg10[%c2_94, %c1_95] : memref<4x4xf32, #tpu.memory_space<smem>>
    %242 = vector.broadcast %241 : f32 to vector<2x8x32xf32>
    %243 = arith.mulf %175, %242 : vector<2x8x32xf32>
    %244 = arith.addf %240, %243 : vector<2x8x32xf32>
    %c2_96 = arith.constant 2 : index
    %c2_97 = arith.constant 2 : index
    %245 = memref.load %arg10[%c2_96, %c2_97] : memref<4x4xf32, #tpu.memory_space<smem>>
    %246 = vector.broadcast %245 : f32 to vector<2x8x32xf32>
    %247 = arith.mulf %176, %246 : vector<2x8x32xf32>
    %248 = arith.addf %244, %247 : vector<2x8x32xf32>
    %c2_98 = arith.constant 2 : index
    %c3_99 = arith.constant 3 : index
    %249 = memref.load %arg10[%c2_98, %c3_99] : memref<4x4xf32, #tpu.memory_space<smem>>
    %250 = vector.broadcast %249 : f32 to vector<2x8x32xf32>
    %251 = arith.mulf %177, %250 : vector<2x8x32xf32>
    %252 = arith.addf %248, %251 : vector<2x8x32xf32>
    %c2_100 = arith.constant 2 : index
    %253 = memref.load %arg11[%c2_100] : memref<4xf32, #tpu.memory_space<smem>>
    %254 = vector.broadcast %253 : f32 to vector<2x8x32xf32>
    %255 = arith.addf %252, %254 : vector<2x8x32xf32>
    %256 = arith.negf %255 : vector<2x8x32xf32>
    %257 = math.exp %256 : vector<2x8x32xf32>
    %cst_101 = arith.constant 1.000000e+00 : f32
    %258 = vector.broadcast %cst_101 : f32 to vector<2x8x32xf32>
    %259 = arith.addf %258, %257 : vector<2x8x32xf32>
    %260 = arith.divf %258, %259 : vector<2x8x32xf32>
    %261 = arith.mulf %255, %260 : vector<2x8x32xf32>
    %262 = vector.extract_strided_slice %3 {offsets = [0, 2, 0, 0], sizes = [2, 1, 8, 32], strides = [1, 1, 1, 1]} : vector<2x4x10x32xf32> to vector<2x1x8x32xf32>
    %263 = vector.shape_cast %262 : vector<2x1x8x32xf32> to vector<2x8x32xf32>
    %264 = arith.addf %261, %263 : vector<2x8x32xf32>
    %c0_102 = arith.constant 0 : index
    %c2_103 = arith.constant 2 : index
    %c0_104 = arith.constant 0 : index
    %c0_105 = arith.constant 0 : index
    %265 = vector.load %arg12[%c0_102, %c2_103, %c0_104, %c0_105] : memref<2x4x8x32xf32, #tpu.memory_space<vmem>>, vector<2x1x8x32xf32>
    %266 = vector.shape_cast %265 : vector<2x1x8x32xf32> to vector<2x8x32xf32>
    %267 = vector.shape_cast %264 : vector<2x8x32xf32> to vector<2x1x8x32xf32>
    tpu.vector_store %arg12[%c0_102, %c2_103, %c0_104, %c0_105], %267 {strides = array<i32>} : memref<2x4x8x32xf32, #tpu.memory_space<vmem>>, vector<2x1x8x32xf32>,
    %c3_106 = arith.constant 3 : index
    %c0_107 = arith.constant 0 : index
    %268 = memref.load %arg10[%c3_106, %c0_107] : memref<4x4xf32, #tpu.memory_space<smem>>
    %269 = vector.broadcast %268 : f32 to vector<2x8x32xf32>
    %270 = arith.mulf %174, %269 : vector<2x8x32xf32>
    %c3_108 = arith.constant 3 : index
    %c1_109 = arith.constant 1 : index
    %271 = memref.load %arg10[%c3_108, %c1_109] : memref<4x4xf32, #tpu.memory_space<smem>>
    %272 = vector.broadcast %271 : f32 to vector<2x8x32xf32>
    %273 = arith.mulf %175, %272 : vector<2x8x32xf32>
    %274 = arith.addf %270, %273 : vector<2x8x32xf32>
    %c3_110 = arith.constant 3 : index
    %c2_111 = arith.constant 2 : index
    %275 = memref.load %arg10[%c3_110, %c2_111] : memref<4x4xf32, #tpu.memory_space<smem>>
    %276 = vector.broadcast %275 : f32 to vector<2x8x32xf32>
    %277 = arith.mulf %176, %276 : vector<2x8x32xf32>
    %278 = arith.addf %274, %277 : vector<2x8x32xf32>
    %c3_112 = arith.constant 3 : index
    %c3_113 = arith.constant 3 : index
    %279 = memref.load %arg10[%c3_112, %c3_113] : memref<4x4xf32, #tpu.memory_space<smem>>
    %280 = vector.broadcast %279 : f32 to vector<2x8x32xf32>
    %281 = arith.mulf %177, %280 : vector<2x8x32xf32>
    %282 = arith.addf %278, %281 : vector<2x8x32xf32>
    %c3_114 = arith.constant 3 : index
    %283 = memref.load %arg11[%c3_114] : memref<4xf32, #tpu.memory_space<smem>>
    %284 = vector.broadcast %283 : f32 to vector<2x8x32xf32>
    %285 = arith.addf %282, %284 : vector<2x8x32xf32>
    %286 = arith.negf %285 : vector<2x8x32xf32>
    %287 = math.exp %286 : vector<2x8x32xf32>
    %cst_115 = arith.constant 1.000000e+00 : f32
    %288 = vector.broadcast %cst_115 : f32 to vector<2x8x32xf32>
    %289 = arith.addf %288, %287 : vector<2x8x32xf32>
    %290 = arith.divf %288, %289 : vector<2x8x32xf32>
    %291 = arith.mulf %285, %290 : vector<2x8x32xf32>
    %292 = vector.extract_strided_slice %3 {offsets = [0, 3, 0, 0], sizes = [2, 1, 8, 32], strides = [1, 1, 1, 1]} : vector<2x4x10x32xf32> to vector<2x1x8x32xf32>
    %293 = vector.shape_cast %292 : vector<2x1x8x32xf32> to vector<2x8x32xf32>
    %294 = arith.addf %291, %293 : vector<2x8x32xf32>
    %c0_116 = arith.constant 0 : index
    %c3_117 = arith.constant 3 : index
    %c0_118 = arith.constant 0 : index
    %c0_119 = arith.constant 0 : index
    %295 = vector.load %arg12[%c0_116, %c3_117, %c0_118, %c0_119] : memref<2x4x8x32xf32, #tpu.memory_space<vmem>>, vector<2x1x8x32xf32>
    %296 = vector.shape_cast %295 : vector<2x1x8x32xf32> to vector<2x8x32xf32>
    %297 = vector.shape_cast %294 : vector<2x8x32xf32> to vector<2x1x8x32xf32>
    tpu.vector_store %arg12[%c0_116, %c3_117, %c0_118, %c0_119], %297 {strides = array<i32>} : memref<2x4x8x32xf32, #tpu.memory_space<vmem>>, vector<2x1x8x32xf32>,
    return
  }
  func.func @transform_0(%arg0: i32) -> (i32, i32, i32, i32) {
    %c0_i32 = arith.constant 0 : i32
    %c0_i32_0 = arith.constant 0 : i32
    %c0_i32_1 = arith.constant 0 : i32
    %c0_i32_2 = arith.constant 0 : i32
    %c0_i32_3 = arith.constant 0 : i32
    return %c0_i32, %c0_i32_0, %c0_i32_1, %c0_i32_2 : i32, i32, i32, i32
  }
  func.func @transform_1(%arg0: i32) -> (i32, i32) {
    %c0_i32 = arith.constant 0 : i32
    %c0_i32_0 = arith.constant 0 : i32
    %c0_i32_1 = arith.constant 0 : i32
    return %c0_i32, %c0_i32_0 : i32, i32
  }
  func.func @transform_2(%arg0: i32) -> i32 {
    %c0_i32 = arith.constant 0 : i32
    %c0_i32_0 = arith.constant 0 : i32
    return %c0_i32 : i32
  }
  func.func @transform_3(%arg0: i32) -> (i32, i32) {
    %c0_i32 = arith.constant 0 : i32
    %c0_i32_0 = arith.constant 0 : i32
    %c0_i32_1 = arith.constant 0 : i32
    return %c0_i32, %c0_i32_0 : i32, i32
  }
  func.func @transform_4(%arg0: i32) -> (i32, i32) {
    %c0_i32 = arith.constant 0 : i32
    %c0_i32_0 = arith.constant 0 : i32
    %c0_i32_1 = arith.constant 0 : i32
    return %c0_i32, %c0_i32_0 : i32, i32
  }
  func.func @transform_5(%arg0: i32) -> (i32, i32) {
    %c0_i32 = arith.constant 0 : i32
    %c0_i32_0 = arith.constant 0 : i32
    %c0_i32_1 = arith.constant 0 : i32
    return %c0_i32, %c0_i32_0 : i32, i32
  }
  func.func @transform_6(%arg0: i32) -> (i32, i32) {
    %c0_i32 = arith.constant 0 : i32
    %c0_i32_0 = arith.constant 0 : i32
    %c0_i32_1 = arith.constant 0 : i32
    return %c0_i32, %c0_i32_0 : i32, i32
  }
  func.func @transform_7(%arg0: i32) -> (i32, i32) {
    %c0_i32 = arith.constant 0 : i32
    %c0_i32_0 = arith.constant 0 : i32
    %c0_i32_1 = arith.constant 0 : i32
    return %c0_i32, %c0_i32_0 : i32, i32
  }
  func.func @transform_8(%arg0: i32) -> (i32, i32) {
    %c0_i32 = arith.constant 0 : i32
    %c0_i32_0 = arith.constant 0 : i32
    %c0_i32_1 = arith.constant 0 : i32
    return %c0_i32, %c0_i32_0 : i32, i32
  }
  func.func @transform_9(%arg0: i32) -> (i32, i32) {
    %c0_i32 = arith.constant 0 : i32
    %c0_i32_0 = arith.constant 0 : i32
    %c0_i32_1 = arith.constant 0 : i32
    return %c0_i32, %c0_i32_0 : i32, i32
  }
  func.func @transform_10(%arg0: i32) -> i32 {
    %c0_i32 = arith.constant 0 : i32
    %c0_i32_0 = arith.constant 0 : i32
    return %c0_i32 : i32
  }
  func.func @transform_11(%arg0: i32) -> (i32, i32, i32, i32) {
    %c0_i32 = arith.constant 0 : i32
    %c0_i32_0 = arith.constant 0 : i32
    %c0_i32_1 = arith.constant 0 : i32
    %c0_i32_2 = arith.constant 0 : i32
    return %c0_i32, %c0_i32_0, %arg0, %c0_i32_1 : i32, i32, i32, i32
  }
}

</mosaic_0001>

<llo_original>
// kernel: attention_conv_forward.1
$region0: #{attention_conv_forward.1}
  #allocation0 [shape = 'u32[]', space=smem, size = 0x4, offset = 0x4, fixed_abs, tag = 'smem constant byte address 0x4 - core index']
  #allocation1 [shape = 'u32[144,128]{1,0:T(1,128)}', space=vmem, size = 0x12000, scoped, tag = 'internal scratch']
  #allocation2 [shape = 'f32[1]{0:T(128)S(6)}', space=smem, size = 0x200, scoped, tag = 'scoped memory for attention_conv_forward.1']
  %s0 = inlined_call_operand.vmem [shape: f32[2,4,18,32], index: 0, kind: input, shape index: {}]
  %s1 = inlined_call_operand.vmem [shape: f32[4,4], index: 1, kind: input, shape index: {}]
  %s2 = inlined_call_operand.<no memory space> [shape: f32[1], index: 2, kind: input, shape index: {}]
  %s3 = inlined_call_operand.vmem [shape: bf16[32,96], index: 3, kind: input, shape index: {}]
  %s4 = inlined_call_operand.vmem [shape: f32[1,96], index: 4, kind: input, shape index: {}]
  %s5 = inlined_call_operand.vmem [shape: bf16[32,4], index: 5, kind: input, shape index: {}]
  %s6 = inlined_call_operand.vmem [shape: bf16[4,32], index: 6, kind: input, shape index: {}]
  %s7 = inlined_call_operand.vmem [shape: bf16[32,32], index: 7, kind: input, shape index: {}]
  %s8 = inlined_call_operand.vmem [shape: f32[1,32], index: 8, kind: input, shape index: {}]
  %s9 = inlined_call_operand.vmem [shape: f32[4,4], index: 9, kind: input, shape index: {}]
  %s10 = inlined_call_operand.vmem [shape: f32[4], index: 10, kind: input, shape index: {}]
  %s11 = inlined_call_operand.hbm [shape: f32[2,4,16,32], index: 11, kind: output, shape index: {}]
  %s12 = sld [smem:[#allocation0]]
  $region89: #{attention_conv_forward.1} parent=0
    _
  %s14 = ssub.s32 1, %s12
  %s15 = scalar_select 0, %s14, %s12
  %16 = sst [smem:[#allocation2]] %s2
  $region1: #{attention_conv_forward.1} parent=0
    #allocation3 [shape = 'u8[2048]{0}', space=smem, size = 0x800, scoped, tag = 'input window, operand 1, single buffered']
    #allocation4 [shape = 's32[2]{0}', space=sflag, size = 0x8, scoped, tag = 'scoped memory for attention_conv_forward.1']
    #allocation5 [shape = 's32[2]{0}', space=sflag, size = 0x8, scoped, tag = 'scoped memory for attention_conv_forward.1']
    #allocation6 [shape = 'u8[2048]{0}', space=smem, size = 0x800, scoped, tag = 'input window, operand 9, single buffered']
    #allocation7 [shape = 's32[1]{0}', space=sflag, size = 0x4, scoped, tag = 'scoped memory for attention_conv_forward.1']
    #allocation8 [shape = 'u8[512]{0}', space=smem, size = 0x200, scoped, tag = 'input window, operand 10, single buffered']
    #allocation9 [shape = 'u8[65536]{0}', space=vmem, size = 0x10000, scoped, tag = 'output window, operand 0']
    %17 = vsyncpa [#allocation5], 0
    %18 = vsyncpa [#allocation7], 0
    %19 = vsyncpa [#allocation4], 0
    %s20 = scalar_lea.sflag [#allocation4], 1
    %21 = vsyncpa %s20, 0
    loop: start=0, step=1, limit=4
    $region2: #{attention_conv_forward.1} parent=1 // loop_pre_header
      _
    $region3: #{attention_conv_forward.1} parent=1 // loop_header
      %s23 = sphi 0, %s27
      %p24 = scmp.ge.s32.totalorder %s23, 4
      %s31 = sphi 0, %s31
      %s33 = sphi 0, %s31
      %s34 = sphi 0, %s33
      %s48 = sphi 0, %s34
      %s52 = sphi 0, %s52
      %s54 = sphi 0, %s52
      %s55 = sphi 0, %s54
      %s69 = sphi 0, %s55
      %s73 = sphi 0, %s73
      %s75 = sphi 0, %s73
      %s76 = sphi 0, %s75
      %s90 = sphi 0, %s76
      %s94 = sphi 0, %s94
      %s96 = sphi 0, %s94
      %s97 = sphi 0, %s96
      %s111 = sphi 0, %s97
      %s115 = sphi 0, %s115
      %s117 = sphi 0, %s115
      %s118 = sphi 0, %s117
      %s132 = sphi 0, %s118
      %s136 = sphi 0, %s136
      %s138 = sphi 0, %s136
      %s139 = sphi 0, %s138
      %s153 = sphi 0, %s139
      %s157 = sphi 0, %s157
      %s159 = sphi 0, %s157
      %s160 = sphi 0, %s159
      %s174 = sphi 0, %s160
      %s178 = sphi 0, %s178
      %s180 = sphi 0, %s178
      %s181 = sphi 0, %s180
      %s195 = sphi 0, %s181
      %s199 = sphi 0, %s199
      %s201 = sphi 0, %s199
      %s202 = sphi 0, %s201
      %s216 = sphi 0, %s202
      %s220 = sphi 0, %s220
      %s222 = sphi 0, %s220
      %s223 = sphi 0, %s222
      %s237 = sphi 0, %s223
      %s241 = sphi 0, %s241
      %s243 = sphi 0, %s241
      %s244 = sphi 0, %s243
      %s258 = sphi 0, %s244
      %s264 = sphi 0, %s266
      %s267 = sphi 0, %s264
      %s268 = sphi 0, %s267
      %s284 = sphi 0, %s268
    $region4: #{attention_conv_forward.1} parent=1 // loop_header_branch
      %26 = sbr.rel (%p24) target = $region8
    $region5: #{attention_conv_forward.1} parent=1 // loop_body
      %s28 = ssub.s32 %s23, 1
      %s29 = ssub.s32 %s23, 2
      %s30 = sadd.s32 %s23, 1
      %s32 = sadd.s32 %s31, 1
      %p35 = scmp.eq.s32.totalorder %s23, 1
      %p36 = scmp.ne.s32.totalorder %s31, %s33
      %p37 = scmp.eq.s32.totalorder %s23, 0
      %p38 = por %p36, %p37
      %p39 = scmp.ne.s32.totalorder %s31, %s33
      %p40 = scmp.eq.s32.totalorder %s28, 1
      %p41 = por %p39, %p40
      %p42 = scmp.ne.s32.totalorder %s33, %s34
      %p43 = scmp.eq.s32.totalorder %s28, 0
      %p44 = por %p42, %p43
      %p45 = scmp.ne.s32.totalorder %s33, %s34
      %p46 = scmp.eq.s32.totalorder %s29, 1
      %p47 = por %p45, %p46
      %p49 = scmp.ne.s32.totalorder %s34, %s48
      %p50 = scmp.eq.s32.totalorder %s29, 0
      %p51 = por %p49, %p50
      %s53 = sadd.s32 %s52, 1
      %p56 = scmp.eq.s32.totalorder %s23, 1
      %p57 = scmp.ne.s32.totalorder %s52, %s54
      %p58 = scmp.eq.s32.totalorder %s23, 0
      %p59 = por %p57, %p58
      %p60 = scmp.ne.s32.totalorder %s52, %s54
      %p61 = scmp.eq.s32.totalorder %s28, 1
      %p62 = por %p60, %p61
      %p63 = scmp.ne.s32.totalorder %s54, %s55
      %p64 = scmp.eq.s32.totalorder %s28, 0
      %p65 = por %p63, %p64
      %p66 = scmp.ne.s32.totalorder %s54, %s55
      %p67 = scmp.eq.s32.totalorder %s29, 1
      %p68 = por %p66, %p67
      %p70 = scmp.ne.s32.totalorder %s55, %s69
      %p71 = scmp.eq.s32.totalorder %s29, 0
      %p72 = por %p70, %p71
      %s74 = sadd.s32 %s73, 1
      %p77 = scmp.eq.s32.totalorder %s23, 1
      %p78 = scmp.ne.s32.totalorder %s73, %s75
      %p79 = scmp.eq.s32.totalorder %s23, 0
      %p80 = por %p78, %p79
      %p81 = scmp.ne.s32.totalorder %s73, %s75
      %p82 = scmp.eq.s32.totalorder %s28, 1
      %p83 = por %p81, %p82
      %p84 = scmp.ne.s32.totalorder %s75, %s76
      %p85 = scmp.eq.s32.totalorder %s28, 0
      %p86 = por %p84, %p85
      %p87 = scmp.ne.s32.totalorder %s75, %s76
      %p88 = scmp.eq.s32.totalorder %s29, 1
      %p89 = por %p87, %p88
      %p91 = scmp.ne.s32.totalorder %s76, %s90
      %p92 = scmp.eq.s32.totalorder %s29, 0
      %p93 = por %p91, %p92
      %s95 = sadd.s32 %s94, 1
      %p98 = scmp.eq.s32.totalorder %s23, 1
      %p99 = scmp.ne.s32.totalorder %s94, %s96
      %p100 = scmp.eq.s32.totalorder %s23, 0
      %p101 = por %p99, %p100
      %p102 = scmp.ne.s32.totalorder %s94, %s96
      %p103 = scmp.eq.s32.totalorder %s28, 1
      %p104 = por %p102, %p103
      %p105 = scmp.ne.s32.totalorder %s96, %s97
      %p106 = scmp.eq.s32.totalorder %s28, 0
      %p107 = por %p105, %p106
      %p108 = scmp.ne.s32.totalorder %s96, %s97
      %p109 = scmp.eq.s32.totalorder %s29, 1
      %p110 = por %p108, %p109
      %p112 = scmp.ne.s32.totalorder %s97, %s111
      %p113 = scmp.eq.s32.totalorder %s29, 0
      %p114 = por %p112, %p113
      %s116 = sadd.s32 %s115, 1
      %p119 = scmp.eq.s32.totalorder %s23, 1
      %p120 = scmp.ne.s32.totalorder %s115, %s117
      %p121 = scmp.eq.s32.totalorder %s23, 0
      %p122 = por %p120, %p121
      %p123 = scmp.ne.s32.totalorder %s115, %s117
      %p124 = scmp.eq.s32.totalorder %s28, 1
      %p125 = por %p123, %p124
      %p126 = scmp.ne.s32.totalorder %s117, %s118
      %p127 = scmp.eq.s32.totalorder %s28, 0
      %p128 = por %p126, %p127
      %p129 = scmp.ne.s32.totalorder %s117, %s118
      %p130 = scmp.eq.s32.totalorder %s29, 1
      %p131 = por %p129, %p130
      %p133 = scmp.ne.s32.totalorder %s118, %s132
      %p134 = scmp.eq.s32.totalorder %s29, 0
      %p135 = por %p133, %p134
      %s137 = sadd.s32 %s136, 1
      %p140 = scmp.eq.s32.totalorder %s23, 1
      %p141 = scmp.ne.s32.totalorder %s136, %s138
      %p142 = scmp.eq.s32.totalorder %s23, 0
      %p143 = por %p141, %p142
      %p144 = scmp.ne.s32.totalorder %s136, %s138
      %p145 = scmp.eq.s32.totalorder %s28, 1
      %p146 = por %p144, %p145
      %p147 = scmp.ne.s32.totalorder %s138, %s139
      %p148 = scmp.eq.s32.totalorder %s28, 0
      %p149 = por %p147, %p148
      %p150 = scmp.ne.s32.totalorder %s138, %s139
      %p151 = scmp.eq.s32.totalorder %s29, 1
      %p152 = por %p150, %p151
      %p154 = scmp.ne.s32.totalorder %s139, %s153
      %p155 = scmp.eq.s32.totalorder %s29, 0
      %p156 = por %p154, %p155
      %s158 = sadd.s32 %s157, 1
      %p161 = scmp.eq.s32.totalorder %s23, 1
      %p162 = scmp.ne.s32.totalorder %s157, %s159
      %p163 = scmp.eq.s32.totalorder %s23, 0
      %p164 = por %p162, %p163
      %p165 = scmp.ne.s32.totalorder %s157, %s159
      %p166 = scmp.eq.s32.totalorder %s28, 1
      %p167 = por %p165, %p166
      %p168 = scmp.ne.s32.totalorder %s159, %s160
      %p169 = scmp.eq.s32.totalorder %s28, 0
      %p170 = por %p168, %p169
      %p171 = scmp.ne.s32.totalorder %s159, %s160
      %p172 = scmp.eq.s32.totalorder %s29, 1
      %p173 = por %p171, %p172
      %p175 = scmp.ne.s32.totalorder %s160, %s174
      %p176 = scmp.eq.s32.totalorder %s29, 0
      %p177 = por %p175, %p176
      %s179 = sadd.s32 %s178, 1
      %p182 = scmp.eq.s32.totalorder %s23, 1
      %p183 = scmp.ne.s32.totalorder %s178, %s180
      %p184 = scmp.eq.s32.totalorder %s23, 0
      %p185 = por %p183, %p184
      %p186 = scmp.ne.s32.totalorder %s178, %s180
      %p187 = scmp.eq.s32.totalorder %s28, 1
      %p188 = por %p186, %p187
      %p189 = scmp.ne.s32.totalorder %s180, %s181
      %p190 = scmp.eq.s32.totalorder %s28, 0
      %p191 = por %p189, %p190
      %p192 = scmp.ne.s32.totalorder %s180, %s181
      %p193 = scmp.eq.s32.totalorder %s29, 1
      %p194 = por %p192, %p193
      %p196 = scmp.ne.s32.totalorder %s181, %s195
      %p197 = scmp.eq.s32.totalorder %s29, 0
      %p198 = por %p196, %p197
      %s200 = sadd.s32 %s199, 1
      %p203 = scmp.eq.s32.totalorder %s23, 1
      %p204 = scmp.ne.s32.totalorder %s199, %s201
      %p205 = scmp.eq.s32.totalorder %s23, 0
      %p206 = por %p204, %p205
      %p207 = scmp.ne.s32.totalorder %s199, %s201
      %p208 = scmp.eq.s32.totalorder %s28, 1
      %p209 = por %p207, %p208
      %p210 = scmp.ne.s32.totalorder %s201, %s202
      %p211 = scmp.eq.s32.totalorder %s28, 0
      %p212 = por %p210, %p211
      %p213 = scmp.ne.s32.totalorder %s201, %s202
      %p214 = scmp.eq.s32.totalorder %s29, 1
      %p215 = por %p213, %p214
      %p217 = scmp.ne.s32.totalorder %s202, %s216
      %p218 = scmp.eq.s32.totalorder %s29, 0
      %p219 = por %p217, %p218
      %s221 = sadd.s32 %s220, 1
      %p224 = scmp.eq.s32.totalorder %s23, 1
      %p225 = scmp.ne.s32.totalorder %s220, %s222
      %p226 = scmp.eq.s32.totalorder %s23, 0
      %p227 = por %p225, %p226
      %p228 = scmp.ne.s32.totalorder %s220, %s222
      %p229 = scmp.eq.s32.totalorder %s28, 1
      %p230 = por %p228, %p229
      %p231 = scmp.ne.s32.totalorder %s222, %s223
      %p232 = scmp.eq.s32.totalorder %s28, 0
      %p233 = por %p231, %p232
      %p234 = scmp.ne.s32.totalorder %s222, %s223
      %p235 = scmp.eq.s32.totalorder %s29, 1
      %p236 = por %p234, %p235
      %p238 = scmp.ne.s32.totalorder %s223, %s237
      %p239 = scmp.eq.s32.totalorder %s29, 0
      %p240 = por %p238, %p239
      %s242 = sadd.s32 %s241, 1
      %p245 = scmp.eq.s32.totalorder %s23, 1
      %p246 = scmp.ne.s32.totalorder %s241, %s243
      %p247 = scmp.eq.s32.totalorder %s23, 0
      %p248 = por %p246, %p247
      %p249 = scmp.ne.s32.totalorder %s241, %s243
      %p250 = scmp.eq.s32.totalorder %s28, 1
      %p251 = por %p249, %p250
      %p252 = scmp.ne.s32.totalorder %s243, %s244
      %p253 = scmp.eq.s32.totalorder %s28, 0
      %p254 = por %p252, %p253
      %p255 = scmp.ne.s32.totalorder %s243, %s244
      %p256 = scmp.eq.s32.totalorder %s29, 1
      %p257 = por %p255, %p256
      %p259 = scmp.ne.s32.totalorder %s244, %s258
      %p260 = scmp.eq.s32.totalorder %s29, 0
      %p261 = por %p259, %p260
      %s262 = ssub.s32 %s23, %s30
      %p263 = scmp.eq.s32.totalorder %s262, 0
      %s265 = sadd.s32 %s264, 1
      %s266 = scalar_select %p263, %s264, %s265
      %p269 = pneg %p263
      %p270 = scmp.eq.s32.totalorder %s23, 1
      %p271 = por %p269, %p270
      %p272 = scmp.ne.s32.totalorder %s264, %s267
      %p273 = scmp.eq.s32.totalorder %s23, 0
      %p274 = por %p272, %p273
      %p275 = scmp.ne.s32.totalorder %s264, %s267
      %p276 = scmp.eq.s32.totalorder %s28, 1
      %p277 = por %p275, %p276
      %p278 = scmp.ne.s32.totalorder %s267, %s268
      %p279 = scmp.eq.s32.totalorder %s28, 0
      %p280 = por %p278, %p279
      %p281 = scmp.ne.s32.totalorder %s267, %s268
      %p282 = scmp.eq.s32.totalorder %s29, 1
      %p283 = por %p281, %p282
      %p285 = scmp.ne.s32.totalorder %s268, %s284
      %p286 = scmp.eq.s32.totalorder %s29, 0
      %p287 = por %p285, %p286
      %p288 = scmp.le.s32.totalorder 1, %s23
      %p289 = scmp.lt.s32.totalorder %s23, 3
      %p290 = pnand %p288, %p289
      %p291 = pneg %p290
      // Predicated region
      $region9: #{attention_conv_forward.1} parent=5 // pred_check
        _
      $region10: #{attention_conv_forward.1} parent=5 // pred_check_branch
        %293 = sbr.rel (%p290) target = $region12
      $region11: #{attention_conv_forward.1} parent=5 // pred_region
        %s294 = ssub.s32 %s23, 1
        // Predicated region
        $region13: #{attention_conv_forward.1} parent=11 // pred_check
          %p295 = pneg %p44
        $region14: #{attention_conv_forward.1} parent=11 // pred_check_branch
          %297 = sbr.rel (%p295) target = $region16
        $region15: #{attention_conv_forward.1} parent=11 // pred_region
          _
        $region16: #{attention_conv_forward.1} parent=11 // pred_fallthru
          _
        // Predicated region
        $region17: #{attention_conv_forward.1} parent=11 // pred_check
          %p298 = pneg %p65
        $region18: #{attention_conv_forward.1} parent=11 // pred_check_branch
          %300 = sbr.rel (%p298) target = $region20
        $region19: #{attention_conv_forward.1} parent=11 // pred_region
          %s302 = ssub.s32 64, 64
          %303 = vsyncadd [#allocation5], %s302
          %s305 = sshll.u32 %s1, 4
          %s306 = int_to_ptr.vmem [resolvable:$true] %s305
          %308 = dma.vmem_to_smem %s306, 64, [#allocation3], [#allocation5]
        $region20: #{attention_conv_forward.1} parent=11 // pred_fallthru
          _
        // Predicated region
        $region21: #{attention_conv_forward.1} parent=11 // pred_check
          %p309 = pneg %p86
        $region22: #{attention_conv_forward.1} parent=11 // pred_check_branch
          %311 = sbr.rel (%p309) target = $region24
        $region23: #{attention_conv_forward.1} parent=11 // pred_region
          _
        $region24: #{attention_conv_forward.1} parent=11 // pred_fallthru
          _
        // Predicated region
        $region25: #{attention_conv_forward.1} parent=11 // pred_check
          %p312 = pneg %p107
        $region26: #{attention_conv_forward.1} parent=11 // pred_check_branch
          %314 = sbr.rel (%p312) target = $region28
        $region27: #{attention_conv_forward.1} parent=11 // pred_region
          _
        $region28: #{attention_conv_forward.1} parent=11 // pred_fallthru
          _
        // Predicated region
        $region29: #{attention_conv_forward.1} parent=11 // pred_check
          %p315 = pneg %p128
        $region30: #{attention_conv_forward.1} parent=11 // pred_check_branch
          %317 = sbr.rel (%p315) target = $region32
        $region31: #{attention_conv_forward.1} parent=11 // pred_region
          _
        $region32: #{attention_conv_forward.1} parent=11 // pred_fallthru
          _
        // Predicated region
        $region33: #{attention_conv_forward.1} parent=11 // pred_check
          %p318 = pneg %p149
        $region34: #{attention_conv_forward.1} parent=11 // pred_check_branch
          %320 = sbr.rel (%p318) target = $region36
        $region35: #{attention_conv_forward.1} parent=11 // pred_region
          _
        $region36: #{attention_conv_forward.1} parent=11 // pred_fallthru
          _
        // Predicated region
        $region37: #{attention_conv_forward.1} parent=11 // pred_check
          %p321 = pneg %p170
        $region38: #{attention_conv_forward.1} parent=11 // pred_check_branch
          %323 = sbr.rel (%p321) target = $region40
        $region39: #{attention_conv_forward.1} parent=11 // pred_region
          _
        $region40: #{attention_conv_forward.1} parent=11 // pred_fallthru
          _
        // Predicated region
        $region41: #{attention_conv_forward.1} parent=11 // pred_check
          %p324 = pneg %p191
        $region42: #{attention_conv_forward.1} parent=11 // pred_check_branch
          %326 = sbr.rel (%p324) target = $region44
        $region43: #{attention_conv_forward.1} parent=11 // pred_region
          _
        $region44: #{attention_conv_forward.1} parent=11 // pred_fallthru
          _
        // Predicated region
        $region45: #{attention_conv_forward.1} parent=11 // pred_check
          %p327 = pneg %p212
        $region46: #{attention_conv_forward.1} parent=11 // pred_check_branch
          %329 = sbr.rel (%p327) target = $region48
        $region47: #{attention_conv_forward.1} parent=11 // pred_region
          _
        $region48: #{attention_conv_forward.1} parent=11 // pred_fallthru
          _
        // Predicated region
        $region49: #{attention_conv_forward.1} parent=11 // pred_check
          %p330 = pneg %p233
        $region50: #{attention_conv_forward.1} parent=11 // pred_check_branch
          %332 = sbr.rel (%p330) target = $region52
        $region51: #{attention_conv_forward.1} parent=11 // pred_region
          %s334 = ssub.s32 64, 64
          %335 = vsyncadd [#allocation7], %s334
          %s337 = sshll.u32 %s9, 4
          %s338 = int_to_ptr.vmem [resolvable:$true] %s337
          %340 = dma.vmem_to_smem %s338, 64, [#allocation6], [#allocation7]
        $region52: #{attention_conv_forward.1} parent=11 // pred_fallthru
          _
        // Predicated region
        $region53: #{attention_conv_forward.1} parent=11 // pred_check
          %p341 = pneg %p254
        $region54: #{attention_conv_forward.1} parent=11 // pred_check_branch
          %343 = sbr.rel (%p341) target = $region56
        $region55: #{attention_conv_forward.1} parent=11 // pred_region
          %s345 = ssub.s32 16, 16
          %346 = vsyncadd [#allocation7], %s345
          %s348 = sshll.u32 %s10, 4
          %s349 = int_to_ptr.vmem [resolvable:$true] %s348
          %351 = dma.vmem_to_smem %s349, 16, [#allocation8], [#allocation7]
        $region56: #{attention_conv_forward.1} parent=11 // pred_fallthru
          _
      $region12: #{attention_conv_forward.1} parent=5 // pred_fallthru
        _
      %p352 = scmp.lt.s32.totalorder %s23, 2
      // Predicated region
      $region57: #{attention_conv_forward.1} parent=5 // pred_check
        %p353 = pneg %p352
      $region58: #{attention_conv_forward.1} parent=5 // pred_check_branch
        %355 = sbr.rel (%p353) target = $region60
      $region59: #{attention_conv_forward.1} parent=5 // pred_region
        _
      $region60: #{attention_conv_forward.1} parent=5 // pred_fallthru
        _
      %p356 = scmp.le.s32.totalorder 1, %s23
      %p357 = scmp.lt.s32.totalorder %s23, 3
      %p358 = pnand %p356, %p357
      %p359 = pneg %p358
      // Predicated region
      $region61: #{attention_conv_forward.1} parent=5 // pred_check
        _
      $region62: #{attention_conv_forward.1} parent=5 // pred_check_branch
        %361 = sbr.rel (%p358) target = $region64
      $region63: #{attention_conv_forward.1} parent=5 // pred_region
        %s362 = ssub.s32 %s23, 1
        // Predicated region
        $region65: #{attention_conv_forward.1} parent=63 // pred_check
          %p363 = pneg %p65
        $region66: #{attention_conv_forward.1} parent=63 // pred_check_branch
          %365 = sbr.rel (%p363) target = $region68
        $region67: #{attention_conv_forward.1} parent=63 // pred_region
          %366 = dma.done [#allocation5], 64
        $region68: #{attention_conv_forward.1} parent=63 // pred_fallthru
          _
        // Predicated region
        $region69: #{attention_conv_forward.1} parent=63 // pred_check
          %p367 = pneg %p233
        $region70: #{attention_conv_forward.1} parent=63 // pred_check_branch
          %369 = sbr.rel (%p367) target = $region72
        $region71: #{attention_conv_forward.1} parent=63 // pred_region
          %370 = dma.done [#allocation7], 64
        $region72: #{attention_conv_forward.1} parent=63 // pred_fallthru
          _
        // Predicated region
        $region73: #{attention_conv_forward.1} parent=63 // pred_check
          %p371 = pneg %p254
        $region74: #{attention_conv_forward.1} parent=63 // pred_check_branch
          %373 = sbr.rel (%p371) target = $region76
        $region75: #{attention_conv_forward.1} parent=63 // pred_region
          %374 = dma.done [#allocation7], 16
        $region76: #{attention_conv_forward.1} parent=63 // pred_fallthru
          _
        %375 = sfence
        %p376 = pneg %p44
        %p377 = pneg %p41
        %p378 = pneg %p65
        %p379 = pneg %p62
        %p380 = pneg %p86
        %p381 = pneg %p83
        %p382 = pneg %p107
        %p383 = pneg %p104
        %p384 = pneg %p128
        %p385 = pneg %p125
        %p386 = pneg %p149
        %p387 = pneg %p146
        %p388 = pneg %p170
        %p389 = pneg %p167
        %p390 = pneg %p191
        %p391 = pneg %p188
        %p392 = pneg %p212
        %p393 = pneg %p209
        %p394 = pneg %p233
        %p395 = pneg %p230
        %p396 = pneg %p254
        %p397 = pneg %p251
        %p398 = pneg %p280
        %p399 = pneg %p277
        %s400 = sand.u32 %s267, 1
        %s401 = scalar_lea.sflag [#allocation4], %s400
        %s402 = sand.u32 %s267, 1
        %s403 = smul.addr %s402, 64
        %s404 = scalar_lea.vmem [#allocation9], %s403
        %s406 = smul.u32 %s28, 8
        %s407 = scalar_lea.vmem %s0, %s406
        %v408 = vld [vmem:[%s407] sm:$0xff]
        %v409 = vld [vmem:[%s407 + $0x8] sm:$0x3]
        %v410 = vld [vmem:[%s407 + $0x18] sm:$0xff]
        %v411 = vld [vmem:[%s407 + $0x20] sm:$0x3]
        %v412 = vld [vmem:[%s407 + $0x30] sm:$0xff]
        %v413 = vld [vmem:[%s407 + $0x38] sm:$0x3]
        %v414 = vld [vmem:[%s407 + $0x48] sm:$0xff]
        %v415 = vld [vmem:[%s407 + $0x50] sm:$0x3]
        %v416 = vld [vmem:[%s407 + $0x60] sm:$0xff]
        %v417 = vld [vmem:[%s407 + $0x68] sm:$0x3]
        %v418 = vld [vmem:[%s407 + $0x78] sm:$0xff]
        %v419 = vld [vmem:[%s407 + $0x80] sm:$0x3]
        %v420 = vld [vmem:[%s407 + $0x90] sm:$0xff]
        %v421 = vld [vmem:[%s407 + $0x98] sm:$0x3]
        %v422 = vld [vmem:[%s407 + $0xa8] sm:$0xff]
        %v423 = vld [vmem:[%s407 + $0xb0] sm:$0x3]
        %s424 = sld [smem:[#allocation3]]
        %v425 = vstv %s424
        %v426 = vmul.f32 %v408, %v425
        %v427 = vmul.f32 %v409, %v425
        %v428 = vmul.f32 %v416, %v425
        %v429 = vmul.f32 %v417, %v425
        %v430 = vadd.f32 %v426, 0.0
        %v431 = vadd.f32 %v427, 0.0
        %v432 = vadd.f32 %v428, 0.0
        %v433 = vadd.f32 %v429, 0.0
        %s434 = sld [smem:[#allocation3 + $0x1]]
        %v435 = vstv %s434
        %v436 = vmul.f32 %v408, %v435
        %v437 = vmul.f32 %v409, %v435
        %v438 = vmul.f32 %v416, %v435
        %v439 = vmul.f32 %v417, %v435
        %v440 = vadd.f32 %v436, 0.0
        %v441 = vadd.f32 %v437, 0.0
        %v442 = vadd.f32 %v438, 0.0
        %v443 = vadd.f32 %v439, 0.0
        %s444 = sld [smem:[#allocation3 + $0x2]]
        %v445 = vstv %s444
        %v446 = vmul.f32 %v408, %v445
        %v447 = vmul.f32 %v409, %v445
        %v448 = vmul.f32 %v416, %v445
        %v449 = vmul.f32 %v417, %v445
        %v450 = vadd.f32 %v446, 0.0
        %v451 = vadd.f32 %v447, 0.0
        %v452 = vadd.f32 %v448, 0.0
        %v453 = vadd.f32 %v449, 0.0
        %s454 = sld [smem:[#allocation3 + $0x3]]
        %v455 = vstv %s454
        %v456 = vmul.f32 %v408, %v455
        %v457 = vmul.f32 %v409, %v455
        %v458 = vmul.f32 %v416, %v455
        %v459 = vmul.f32 %v417, %v455
        %v460 = vadd.f32 %v456, 0.0
        %v461 = vadd.f32 %v457, 0.0
        %v462 = vadd.f32 %v458, 0.0
        %v463 = vadd.f32 %v459, 0.0
        %s464 = sld [smem:[#allocation3 + $0x80]]
        %v465 = vstv %s464
        %v466 = vmul.f32 %v410, %v465
        %v467 = vmul.f32 %v411, %v465
        %v468 = vmul.f32 %v418, %v465
        %v469 = vmul.f32 %v419, %v465
        %v470 = vadd.f32 %v430, %v466
        %v471 = vadd.f32 %v431, %v467
        %v472 = vadd.f32 %v432, %v468
        %v473 = vadd.f32 %v433, %v469
        %s474 = sld [smem:[#allocation3 + $0x81]]
        %v475 = vstv %s474
        %v476 = vmul.f32 %v410, %v475
        %v477 = vmul.f32 %v411, %v475
        %v478 = vmul.f32 %v418, %v475
        %v479 = vmul.f32 %v419, %v475
        %v480 = vadd.f32 %v440, %v476
        %v481 = vadd.f32 %v441, %v477
        %v482 = vadd.f32 %v442, %v478
        %v483 = vadd.f32 %v443, %v479
        %s484 = sld [smem:[#allocation3 + $0x82]]
        %v485 = vstv %s484
        %v486 = vmul.f32 %v410, %v485
        %v487 = vmul.f32 %v411, %v485
        %v488 = vmul.f32 %v418, %v485
        %v489 = vmul.f32 %v419, %v485
        %v490 = vadd.f32 %v450, %v486
        %v491 = vadd.f32 %v451, %v487
        %v492 = vadd.f32 %v452, %v488
        %v493 = vadd.f32 %v453, %v489
        %s494 = sld [smem:[#allocation3 + $0x83]]
        %v495 = vstv %s494
        %v496 = vmul.f32 %v410, %v495
        %v497 = vmul.f32 %v411, %v495
        %v498 = vmul.f32 %v418, %v495
        %v499 = vmul.f32 %v419, %v495
        %v500 = vadd.f32 %v460, %v496
        %v501 = vadd.f32 %v461, %v497
        %v502 = vadd.f32 %v462, %v498
        %v503 = vadd.f32 %v463, %v499
        %s504 = sld [smem:[#allocation3 + $0x100]]
        %v505 = vstv %s504
        %v506 = vmul.f32 %v412, %v505
        %v507 = vmul.f32 %v413, %v505
        %v508 = vmul.f32 %v420, %v505
        %v509 = vmul.f32 %v421, %v505
        %v510 = vadd.f32 %v470, %v506
        %v511 = vadd.f32 %v471, %v507
        %v512 = vadd.f32 %v472, %v508
        %v513 = vadd.f32 %v473, %v509
        %s514 = sld [smem:[#allocation3 + $0x101]]
        %v515 = vstv %s514
        %v516 = vmul.f32 %v412, %v515
        %v517 = vmul.f32 %v413, %v515
        %v518 = vmul.f32 %v420, %v515
        %v519 = vmul.f32 %v421, %v515
        %v520 = vadd.f32 %v480, %v516
        %v521 = vadd.f32 %v481, %v517
        %v522 = vadd.f32 %v482, %v518
        %v523 = vadd.f32 %v483, %v519
        %s524 = sld [smem:[#allocation3 + $0x102]]
        %v525 = vstv %s524
        %v526 = vmul.f32 %v412, %v525
        %v527 = vmul.f32 %v413, %v525
        %v528 = vmul.f32 %v420, %v525
        %v529 = vmul.f32 %v421, %v525
        %v530 = vadd.f32 %v490, %v526
        %v531 = vadd.f32 %v491, %v527
        %v532 = vadd.f32 %v492, %v528
        %v533 = vadd.f32 %v493, %v529
        %s534 = sld [smem:[#allocation3 + $0x103]]
        %v535 = vstv %s534
        %v536 = vmul.f32 %v412, %v535
        %v537 = vmul.f32 %v413, %v535
        %v538 = vmul.f32 %v420, %v535
        %v539 = vmul.f32 %v421, %v535
        %v540 = vadd.f32 %v500, %v536
        %v541 = vadd.f32 %v501, %v537
        %v542 = vadd.f32 %v502, %v538
        %v543 = vadd.f32 %v503, %v539
        %s544 = sld [smem:[#allocation3 + $0x180]]
        %v545 = vstv %s544
        %v546 = vmul.f32 %v414, %v545
        %v547 = vmul.f32 %v415, %v545
        %v548 = vmul.f32 %v422, %v545
        %v549 = vmul.f32 %v423, %v545
        %v550 = vadd.f32 %v510, %v546
        %v551 = vadd.f32 %v511, %v547
        %v552 = vadd.f32 %v512, %v548
        %v553 = vadd.f32 %v513, %v549
        %s554 = sld [smem:[#allocation3 + $0x181]]
        %v555 = vstv %s554
        %v556 = vmul.f32 %v414, %v555
        %v557 = vmul.f32 %v415, %v555
        %v558 = vmul.f32 %v422, %v555
        %v559 = vmul.f32 %v423, %v555
        %v560 = vadd.f32 %v520, %v556
        %v561 = vadd.f32 %v521, %v557
        %v562 = vadd.f32 %v522, %v558
        %v563 = vadd.f32 %v523, %v559
        %s564 = sld [smem:[#allocation3 + $0x182]]
        %v565 = vstv %s564
        %v566 = vmul.f32 %v414, %v565
        %v567 = vmul.f32 %v415, %v565
        %v568 = vmul.f32 %v422, %v565
        %v569 = vmul.f32 %v423, %v565
        %v570 = vadd.f32 %v530, %v566
        %v571 = vadd.f32 %v531, %v567
        %v572 = vadd.f32 %v532, %v568
        %v573 = vadd.f32 %v533, %v569
        %s574 = sld [smem:[#allocation3 + $0x183]]
        %v575 = vstv %s574
        %v576 = vmul.f32 %v414, %v575
        %v577 = vmul.f32 %v415, %v575
        %v578 = vmul.f32 %v422, %v575
        %v579 = vmul.f32 %v423, %v575
        %v580 = vadd.f32 %v540, %v576
        %v581 = vadd.f32 %v541, %v577
        %v582 = vadd.f32 %v542, %v578
        %v583 = vadd.f32 %v543, %v579
        %588 = vrot.lane.b32.xlu0 %v560, 127
        %v589 = vpop.permute.xlu0 %588
        %590 = vrot.lane.b32.xlu0 %v561, 127
        %v591 = vpop.permute.xlu0 %590
        %592 = vrot.lane.b32.xlu0 %v562, 127
        %v593 = vpop.permute.xlu0 %592
        %594 = vrot.lane.b32.xlu0 %v563, 127
        %v595 = vpop.permute.xlu0 %594
        %vm600 = vcmask 252928
        %v601 = vsel %vm600, %v589, 0.0
        %v602 = vsel %vm600, %v591, 0.0
        %v603 = vsel %vm600, %v593, 0.0
        %v604 = vsel %vm600, %v595, 0.0
        %v605 = vadd.f32 %v550, %v601
        %v606 = vadd.f32 %v551, %v602
        %v607 = vadd.f32 %v552, %v603
        %v608 = vadd.f32 %v553, %v604
        %vm613 = vcmask 1046528
        %v614 = vrot.slane %v570, 1
        %v615 = vrot.slane %v571, 1
        %v616 = vsel %vm613, %v614, %v615
        %v617 = vrot.slane %v572, 1
        %v618 = vrot.slane %v573, 1
        %v619 = vsel %vm613, %v617, %v618
        %vm624 = vcmask 1040384
        %v625 = vsel %vm624, %v615, 0.0
        %v626 = vsel %vm624, %v618, 0.0
        %v627 = vadd.f32 %v605, %v616
        %v628 = vadd.f32 %v606, %v625
        %v629 = vadd.f32 %v607, %v619
        %v630 = vadd.f32 %v608, %v626
        %v635 = vrot.slane %v580, 1
        %v636 = vrot.slane %v581, 1
        %v637 = vsel %vm613, %v635, %v636
        %v638 = vrot.slane %v582, 1
        %v639 = vrot.slane %v583, 1
        %v640 = vsel %vm613, %v638, %v639
        %v643 = vsel %vm624, %v636, 0.0
        %v644 = vsel %vm624, %v639, 0.0
        %647 = vrot.lane.b32.xlu0 %v637, 127
        %v648 = vpop.permute.xlu0 %647
        %649 = vrot.lane.b32.xlu0 %v643, 127
        %v650 = vpop.permute.xlu0 %649
        %651 = vrot.lane.b32.xlu0 %v640, 127
        %v652 = vpop.permute.xlu0 %651
        %653 = vrot.lane.b32.xlu0 %v644, 127
        %v654 = vpop.permute.xlu0 %653
        %v659 = vsel %vm600, %v648, 0.0
        %v660 = vsel %vm600, %v650, 0.0
        %v661 = vsel %vm600, %v652, 0.0
        %v662 = vsel %vm600, %v654, 0.0
        %v663 = vadd.f32 %v627, %v659
        %v664 = vadd.f32 %v628, %v660
        %v665 = vadd.f32 %v629, %v661
        %v666 = vadd.f32 %v630, %v662
        %s667 = sld [smem:[#allocation2]]
        %v668 = vstv %s667
        %v669 = vadd.f32 %v663, %v668
        %v670 = vadd.f32 %v664, %v668
        %v671 = vadd.f32 %v665, %v668
        %v672 = vadd.f32 %v666, %v668
        %v673 = vxor.u32 %v669, 2147483648
        %v674 = vxor.u32 %v670, 2147483648
        %v675 = vxor.u32 %v671, 2147483648
        %v676 = vxor.u32 %v672, 2147483648
        %v677 = vmul.f32 %v673, 1.442695
        %v678 = vpow.pop %v677
        %v679 = vmul.f32 %v674, 1.442695
        %v680 = vpow.pop %v679
        %v681 = vmul.f32 %v675, 1.442695
        %v682 = vpow.pop %v681
        %v683 = vmul.f32 %v676, 1.442695
        %v684 = vpow.pop %v683
        %v685 = vadd.f32 %v678, 1.0
        %v686 = vadd.f32 %v680, 1.0
        %v687 = vadd.f32 %v682, 1.0
        %v688 = vadd.f32 %v684, 1.0
        %v689 = vrcp.pop %v685
        %v690 = vmul.f32 1.0, %v689
        %v691 = vrcp.pop %v686
        %v692 = vmul.f32 1.0, %v691
        %v693 = vrcp.pop %v687
        %v694 = vmul.f32 1.0, %v693
        %v695 = vrcp.pop %v688
        %v696 = vmul.f32 1.0, %v695
        %v697 = vmul.f32 %v669, %v690
        %v698 = vmul.f32 %v670, %v692
        %v699 = vmul.f32 %v671, %v694
        %v700 = vmul.f32 %v672, %v696
        %v705 = vcombine.high %v697, %v697
        %v707 = vunpack.c.l.s4 1966171168
        %v708 = vunpack.c.0.s8 %v707
        %v709 = vlaneseq
        %v710 = vshrl.u32 %v709, 7
        %v711 = vsub.s32 %v708, %v710
        %v712 = vrot.slane %v697, %v711
        %v714 = vunpack.c.l.s4 1966171168
        %v715 = vunpack.c.0.s8 %v714
        %v716 = vlaneseq
        %v717 = vshrl.u32 %v716, 7
        %v718 = vsub.s32 %v715, %v717
        %v719 = vrot.slane %v705, %v718
        %v720 = vcombine.high %v712, %v712
        %v721 = vcombine.high %v719, %v719
        %v723 = vunpack.c.l.s4 1966171168
        %v724 = vunpack.c.0.s8 %v723
        %v725 = vlaneseq
        %v726 = vshrl.u32 %v725, 7
        %v727 = vsub.s32 %v724, %v726
        %v728 = vrot.slane %v712, %v727
        %v730 = vunpack.c.l.s4 1966171168
        %v731 = vunpack.c.0.s8 %v730
        %v732 = vlaneseq
        %v733 = vshrl.u32 %v732, 7
        %v734 = vsub.s32 %v731, %v733
        %v735 = vrot.slane %v719, %v734
        %v737 = vunpack.c.l.s4 1966171168
        %v738 = vunpack.c.0.s8 %v737
        %v739 = vlaneseq
        %v740 = vshrl.u32 %v739, 7
        %v741 = vsub.s32 %v738, %v740
        %v742 = vrot.slane %v720, %v741
        %v744 = vunpack.c.l.s4 1966171168
        %v745 = vunpack.c.0.s8 %v744
        %v746 = vlaneseq
        %v747 = vshrl.u32 %v746, 7
        %v748 = vsub.s32 %v745, %v747
        %v749 = vrot.slane %v721, %v748
        %v750 = vcombine.high %v728, %v728
        %v751 = vcombine.high %v735, %v735
        %v752 = vcombine.high %v742, %v742
        %v753 = vcombine.high %v749, %v749
        %v755 = vunpack.c.l.s4 1966171168
        %v756 = vunpack.c.0.s8 %v755
        %v757 = vlaneseq
        %v758 = vshrl.u32 %v757, 7
        %v759 = vsub.s32 %v756, %v758
        %v760 = vrot.slane %v698, %v759
        %v762 = vunpack.c.l.s4 1966171168
        %v763 = vunpack.c.0.s8 %v762
        %v764 = vlaneseq
        %v765 = vshrl.u32 %v764, 7
        %v766 = vsub.s32 %v763, %v765
        %v767 = vrot.slane %v760, %v766
        %v768 = vcombine.high %v699, %v699
        %v770 = vunpack.c.l.s4 1966171168
        %v771 = vunpack.c.0.s8 %v770
        %v772 = vlaneseq
        %v773 = vshrl.u32 %v772, 7
        %v774 = vsub.s32 %v771, %v773
        %v775 = vrot.slane %v699, %v774
        %v777 = vunpack.c.l.s4 1966171168
        %v778 = vunpack.c.0.s8 %v777
        %v779 = vlaneseq
        %v780 = vshrl.u32 %v779, 7
        %v781 = vsub.s32 %v778, %v780
        %v782 = vrot.slane %v768, %v781
        %v783 = vcombine.high %v775, %v775
        %v784 = vcombine.high %v782, %v782
        %v786 = vunpack.c.l.s4 1966171168
        %v787 = vunpack.c.0.s8 %v786
        %v788 = vlaneseq
        %v789 = vshrl.u32 %v788, 7
        %v790 = vsub.s32 %v787, %v789
        %v791 = vrot.slane %v775, %v790
        %v793 = vunpack.c.l.s4 1966171168
        %v794 = vunpack.c.0.s8 %v793
        %v795 = vlaneseq
        %v796 = vshrl.u32 %v795, 7
        %v797 = vsub.s32 %v794, %v796
        %v798 = vrot.slane %v782, %v797
        %v800 = vunpack.c.l.s4 1966171168
        %v801 = vunpack.c.0.s8 %v800
        %v802 = vlaneseq
        %v803 = vshrl.u32 %v802, 7
        %v804 = vsub.s32 %v801, %v803
        %v805 = vrot.slane %v783, %v804
        %v807 = vunpack.c.l.s4 1966171168
        %v808 = vunpack.c.0.s8 %v807
        %v809 = vlaneseq
        %v810 = vshrl.u32 %v809, 7
        %v811 = vsub.s32 %v808, %v810
        %v812 = vrot.slane %v784, %v811
        %v813 = vcombine.high %v791, %v791
        %v814 = vcombine.high %v798, %v798
        %v815 = vcombine.high %v805, %v805
        %v816 = vcombine.high %v812, %v812
        %v818 = vunpack.c.l.s4 1966171168
        %v819 = vunpack.c.0.s8 %v818
        %v820 = vlaneseq
        %v821 = vshrl.u32 %v820, 7
        %v822 = vsub.s32 %v819, %v821
        %v823 = vrot.slane %v700, %v822
        %v825 = vunpack.c.l.s4 1966171168
        %v826 = vunpack.c.0.s8 %v825
        %v827 = vlaneseq
        %v828 = vshrl.u32 %v827, 7
        %v829 = vsub.s32 %v826, %v828
        %v830 = vrot.slane %v823, %v829
        %v831 = vcombine.low %v728, %v742
        %v832 = vcombine.low %v750, %v752
        %v833 = vcombine.low %v735, %v749
        %v834 = vcombine.low %v751, %v753
        %v836 = vunpack.c.l.s4 1966171168
        %v837 = vunpack.c.0.s8 %v836
        %v838 = vlaneseq
        %v839 = vshrl.u32 %v838, 7
        %v840 = vsub.s32 %v837, %v839
        %v841 = vrot.slane %v831, %v840
        %v843 = vunpack.c.l.s4 1966171168
        %v844 = vunpack.c.0.s8 %v843
        %v845 = vlaneseq
        %v846 = vshrl.u32 %v845, 7
        %v847 = vsub.s32 %v844, %v846
        %v848 = vrot.slane %v832, %v847
        %v850 = vunpack.c.l.s4 1966171168
        %v851 = vunpack.c.0.s8 %v850
        %v852 = vlaneseq
        %v853 = vshrl.u32 %v852, 7
        %v854 = vsub.s32 %v851, %v853
        %v855 = vrot.slane %v833, %v854
        %v857 = vunpack.c.l.s4 1966171168
        %v858 = vunpack.c.0.s8 %v857
        %v859 = vlaneseq
        %v860 = vshrl.u32 %v859, 7
        %v861 = vsub.s32 %v858, %v860
        %v862 = vrot.slane %v834, %v861
        %v863 = vcombine.low %v841, %v848
        %v864 = vcombine.low %v855, %v862
        %v866 = vunpack.c.l.s4 1966171168
        %v867 = vunpack.c.0.s8 %v866
        %v868 = vlaneseq
        %v869 = vshrl.u32 %v868, 7
        %v870 = vsub.s32 %v867, %v869
        %v871 = vrot.slane %v863, %v870
        %v873 = vunpack.c.l.s4 1966171168
        %v874 = vunpack.c.0.s8 %v873
        %v875 = vlaneseq
        %v876 = vshrl.u32 %v875, 7
        %v877 = vsub.s32 %v874, %v876
        %v878 = vrot.slane %v864, %v877
        %v879 = vcombine.low %v871, %v878
        %v880 = vcombine.low %v767, %v791
        %v881 = vcombine.low %v805, %v813
        %v882 = vcombine.low %v815, %v798
        %v883 = vcombine.low %v812, %v814
        %v885 = vunpack.c.l.s4 1966171168
        %v886 = vunpack.c.0.s8 %v885
        %v887 = vlaneseq
        %v888 = vshrl.u32 %v887, 7
        %v889 = vsub.s32 %v886, %v888
        %v890 = vrot.slane %v880, %v889
        %v892 = vunpack.c.l.s4 1966171168
        %v893 = vunpack.c.0.s8 %v892
        %v894 = vlaneseq
        %v895 = vshrl.u32 %v894, 7
        %v896 = vsub.s32 %v893, %v895
        %v897 = vrot.slane %v881, %v896
        %v899 = vunpack.c.l.s4 1966171168
        %v900 = vunpack.c.0.s8 %v899
        %v901 = vlaneseq
        %v902 = vshrl.u32 %v901, 7
        %v903 = vsub.s32 %v900, %v902
        %v904 = vrot.slane %v882, %v903
        %v906 = vunpack.c.l.s4 1966171168
        %v907 = vunpack.c.0.s8 %v906
        %v908 = vlaneseq
        %v909 = vshrl.u32 %v908, 7
        %v910 = vsub.s32 %v907, %v909
        %v911 = vrot.slane %v883, %v910
        %v912 = vcombine.low %v890, %v897
        %v913 = vcombine.low %v904, %v911
        %v915 = vunpack.c.l.s4 1966171168
        %v916 = vunpack.c.0.s8 %v915
        %v917 = vlaneseq
        %v918 = vshrl.u32 %v917, 7
        %v919 = vsub.s32 %v916, %v918
        %v920 = vrot.slane %v912, %v919
        %v922 = vunpack.c.l.s4 1966171168
        %v923 = vunpack.c.0.s8 %v922
        %v924 = vlaneseq
        %v925 = vshrl.u32 %v924, 7
        %v926 = vsub.s32 %v923, %v925
        %v927 = vrot.slane %v913, %v926
        %v928 = vcombine.low %v920, %v927
        %v929 = vcombine.low %v816, %v830
        %v931 = vunpack.c.l.s4 1966171168
        %v932 = vunpack.c.0.s8 %v931
        %v933 = vlaneseq
        %v934 = vshrl.u32 %v933, 7
        %v935 = vsub.s32 %v932, %v934
        %v936 = vrot.slane %v929, %v935
        %v938 = vunpack.c.l.s4 1966171168
        %v939 = vunpack.c.0.s8 %v938
        %v940 = vlaneseq
        %v941 = vshrl.u32 %v940, 7
        %v942 = vsub.s32 %v939, %v941
        %v943 = vrot.slane %v936, %v942
        %v947 = vpack.c.bf16 %v928, %v879
        %v948 = vpack.c.bf16 %v943, %v943
        %v949 = vld [vmem:[%s3] sm:$0xf]
        %v950 = vld [vmem:[%s3 + $0x4] sm:$0xf]
        %v951 = vld [vmem:[%s3 + $0x8] sm:$0xf]
        %v952 = vld [vmem:[%s3 + $0xc] sm:$0xf]
        %v953 = vld [vmem:[%s4] sm:$0x1]
        %v955 = vlaneseq
        %v956 = vshrl.u32 %v955, 7
        %v957 = vsub.s32 0, %v956
        %v958 = vrot.slane %v953, %v957
        %v964 = vunpack.c.l.b16 %v949
        %v965 = vunpack.c.l.b16 %v950
        %v966 = vunpack.c.l.b16 %v951
        %v967 = vunpack.c.l.b16 %v952
        %v968 = vpack.c.b16 %v965, %v964
        %v969 = vpack.c.b16 %v967, %v966
        %vm972 = vcmask 261120
        %v974 = vsel %vm972, %v947, 0
        %v977 = vsel %vm972, %v948, 0
        %979 = vmatprep.subr.bf16.mxu0 0
        %980 = vmatpush1.bf16.msra.mxu0 %v968
        %981 = vmatprep.subr.bf16.mxu0 0
        %982 = vmatpush1.bf16.msra.mxu0 %v969
        %983 = vmatprep.subr.bf16.mxu0 0
        %984 = vmatpush1.bf16.msra.mxu0 0
        %985 = vmatprep.subr.bf16.mxu0 0
        %986 = vmatpush1.bf16.msra.mxu0 0
        %987 = vmatprep.subr.bf16.mxu0 0
        %988 = vmatpush1.bf16.msra.mxu0 0
        %989 = vmatprep.subr.bf16.mxu0 0
        %990 = vmatpush1.bf16.msra.mxu0 0
        %991 = vmatprep.subr.bf16.mxu0 0
        %992 = vmatpush1.bf16.msra.mxu0 0
        %993 = vmatprep.subr.bf16.mxu0 0
        %994 = vmatpush1.bf16.msra.mxu0 0
        %995 = vmatprep.subr.bf16.mxu0 0
        %996 = vmatpush1.bf16.msra.mxu0 0
        %997 = vmatprep.subr.bf16.mxu0 0
        %998 = vmatpush1.bf16.msra.mxu0 0
        %999 = vmatprep.subr.bf16.mxu0 0
        %1000 = vmatpush1.bf16.msra.mxu0 0
        %1001 = vmatprep.subr.bf16.mxu0 0
        %1002 = vmatpush1.bf16.msra.mxu0 0
        %1003 = vmatprep.subr.bf16.mxu0 0
        %1004 = vmatpush1.bf16.msra.mxu0 0
        %1005 = vmatprep.subr.bf16.mxu0 0
        %1006 = vmatpush1.bf16.msra.mxu0 0
        %1007 = vmatprep.subr.bf16.mxu0 0
        %1008 = vmatpush1.bf16.msra.mxu0 0
        %1009 = vmatprep.subr.bf16.mxu0 0
        %1010 = vmatpush1.bf16.msra.mxu0 0
        %1011 = vmatprep.mubr.bf16.mxu0 0
        %1012 = vmatmul.mubr.bf16.gmra.mrb[0].mxu0 %v974
        %v1013 = vpop.f32.mrb[0].mxu0
        %v1014 = vadd.f32 %v958, %v1013
        %v1015 = vpop.f32.mrb[0].mxu0
        %v1016 = vpop.f32.mrb[0].mxu0
        %v1017 = vadd.f32 %v958, %v1016
        %v1018 = vpop.f32.mrb[0].mxu0
        %1019 = vmatprep.mubr.bf16.mxu0 0
        %1020 = vmatmul.mubr.bf16.gmra.mrb[0].mxu0 %v977
        %v1021 = vpop.f32.mrb[0].mxu0
        %v1022 = vadd.f32 %v958, %v1021
        %v1023 = vpop.f32.mrb[0].mxu0
        %v1024 = vpop.f32.mrb[0].mxu0
        %v1025 = vpop.f32.mrb[0].mxu0
        %1026 = vdwg.mxu0
        %v1030 = vcombine.high %v1014, %v1014
        %v1032 = vunpack.c.l.s4 1966171168
        %v1033 = vunpack.c.0.s8 %v1032
        %v1034 = vlaneseq
        %v1035 = vshrl.u32 %v1034, 7
        %v1036 = vsub.s32 %v1033, %v1035
        %v1037 = vrot.slane %v1014, %v1036
        %v1039 = vunpack.c.l.s4 1966171168
        %v1040 = vunpack.c.0.s8 %v1039
        %v1041 = vlaneseq
        %v1042 = vshrl.u32 %v1041, 7
        %v1043 = vsub.s32 %v1040, %v1042
        %v1044 = vrot.slane %v1030, %v1043
        %v1045 = vcombine.high %v1037, %v1037
        %v1046 = vcombine.high %v1044, %v1044
        %v1048 = vunpack.c.l.s4 1966171168
        %v1049 = vunpack.c.0.s8 %v1048
        %v1050 = vlaneseq
        %v1051 = vshrl.u32 %v1050, 7
        %v1052 = vsub.s32 %v1049, %v1051
        %v1053 = vrot.slane %v1037, %v1052
        %v1055 = vunpack.c.l.s4 1966171168
        %v1056 = vunpack.c.0.s8 %v1055
        %v1057 = vlaneseq
        %v1058 = vshrl.u32 %v1057, 7
        %v1059 = vsub.s32 %v1056, %v1058
        %v1060 = vrot.slane %v1044, %v1059
        %v1062 = vunpack.c.l.s4 1966171168
        %v1063 = vunpack.c.0.s8 %v1062
        %v1064 = vlaneseq
        %v1065 = vshrl.u32 %v1064, 7
        %v1066 = vsub.s32 %v1063, %v1065
        %v1067 = vrot.slane %v1045, %v1066
        %v1069 = vunpack.c.l.s4 1966171168
        %v1070 = vunpack.c.0.s8 %v1069
        %v1071 = vlaneseq
        %v1072 = vshrl.u32 %v1071, 7
        %v1073 = vsub.s32 %v1070, %v1072
        %v1074 = vrot.slane %v1046, %v1073
        %v1075 = vcombine.high %v1053, %v1053
        %v1076 = vcombine.high %v1060, %v1060
        %v1077 = vcombine.high %v1067, %v1067
        %v1078 = vcombine.high %v1074, %v1074
        %v1079 = vcombine.high %v1017, %v1017
        %v1081 = vunpack.c.l.s4 1966171168
        %v1082 = vunpack.c.0.s8 %v1081
        %v1083 = vlaneseq
        %v1084 = vshrl.u32 %v1083, 7
        %v1085 = vsub.s32 %v1082, %v1084
        %v1086 = vrot.slane %v1017, %v1085
        %v1088 = vunpack.c.l.s4 1966171168
        %v1089 = vunpack.c.0.s8 %v1088
        %v1090 = vlaneseq
        %v1091 = vshrl.u32 %v1090, 7
        %v1092 = vsub.s32 %v1089, %v1091
        %v1093 = vrot.slane %v1079, %v1092
        %v1094 = vcombine.high %v1086, %v1086
        %v1095 = vcombine.high %v1093, %v1093
        %v1097 = vunpack.c.l.s4 1966171168
        %v1098 = vunpack.c.0.s8 %v1097
        %v1099 = vlaneseq
        %v1100 = vshrl.u32 %v1099, 7
        %v1101 = vsub.s32 %v1098, %v1100
        %v1102 = vrot.slane %v1086, %v1101
        %v1104 = vunpack.c.l.s4 1966171168
        %v1105 = vunpack.c.0.s8 %v1104
        %v1106 = vlaneseq
        %v1107 = vshrl.u32 %v1106, 7
        %v1108 = vsub.s32 %v1105, %v1107
        %v1109 = vrot.slane %v1093, %v1108
        %v1111 = vunpack.c.l.s4 1966171168
        %v1112 = vunpack.c.0.s8 %v1111
        %v1113 = vlaneseq
        %v1114 = vshrl.u32 %v1113, 7
        %v1115 = vsub.s32 %v1112, %v1114
        %v1116 = vrot.slane %v1094, %v1115
        %v1118 = vunpack.c.l.s4 1966171168
        %v1119 = vunpack.c.0.s8 %v1118
        %v1120 = vlaneseq
        %v1121 = vshrl.u32 %v1120, 7
        %v1122 = vsub.s32 %v1119, %v1121
        %v1123 = vrot.slane %v1095, %v1122
        %v1124 = vcombine.high %v1102, %v1102
        %v1125 = vcombine.high %v1109, %v1109
        %v1126 = vcombine.high %v1116, %v1116
        %v1127 = vcombine.high %v1123, %v1123
        %v1129 = vunpack.c.l.s4 1966171168
        %v1130 = vunpack.c.0.s8 %v1129
        %v1131 = vlaneseq
        %v1132 = vshrl.u32 %v1131, 7
        %v1133 = vsub.s32 %v1130, %v1132
        %v1134 = vrot.slane %v1022, %v1133
        %v1135 = vcombine.high %v1134, %v1134
        %v1137 = vunpack.c.l.s4 1966171168
        %v1138 = vunpack.c.0.s8 %v1137
        %v1139 = vlaneseq
        %v1140 = vshrl.u32 %v1139, 7
        %v1141 = vsub.s32 %v1138, %v1140
        %v1142 = vrot.slane %v1134, %v1141
        %v1144 = vunpack.c.l.s4 1966171168
        %v1145 = vunpack.c.0.s8 %v1144
        %v1146 = vlaneseq
        %v1147 = vshrl.u32 %v1146, 7
        %v1148 = vsub.s32 %v1145, %v1147
        %v1149 = vrot.slane %v1135, %v1148
        %1168 = vrot.lane.b32.xlu0 %v1053, 96
        %v1169 = vpop.permute.xlu0 %1168
        %1170 = vrot.lane.b32.xlu0 %v1067, 96
        %v1171 = vpop.permute.xlu0 %1170
        %1172 = vrot.lane.b32.xlu0 %v1075, 96
        %v1173 = vpop.permute.xlu0 %1172
        %1174 = vrot.lane.b32.xlu0 %v1077, 96
        %v1175 = vpop.permute.xlu0 %1174
        %1176 = vrot.lane.b32.xlu0 %v1060, 96
        %v1177 = vpop.permute.xlu0 %1176
        %1178 = vrot.lane.b32.xlu0 %v1074, 96
        %v1179 = vpop.permute.xlu0 %1178
        %1180 = vrot.lane.b32.xlu0 %v1076, 96
        %v1181 = vpop.permute.xlu0 %1180
        %1182 = vrot.lane.b32.xlu0 %v1078, 96
        %v1183 = vpop.permute.xlu0 %1182
        %1184 = vrot.lane.b32.xlu0 %v1102, 96
        %v1185 = vpop.permute.xlu0 %1184
        %1186 = vrot.lane.b32.xlu0 %v1116, 96
        %v1187 = vpop.permute.xlu0 %1186
        %1188 = vrot.lane.b32.xlu0 %v1124, 96
        %v1189 = vpop.permute.xlu0 %1188
        %1190 = vrot.lane.b32.xlu0 %v1126, 96
        %v1191 = vpop.permute.xlu0 %1190
        %1192 = vrot.lane.b32.xlu0 %v1109, 96
        %v1193 = vpop.permute.xlu0 %1192
        %1194 = vrot.lane.b32.xlu0 %v1123, 96
        %v1195 = vpop.permute.xlu0 %1194
        %1196 = vrot.lane.b32.xlu0 %v1125, 96
        %v1197 = vpop.permute.xlu0 %1196
        %1198 = vrot.lane.b32.xlu0 %v1127, 96
        %v1199 = vpop.permute.xlu0 %1198
        %1200 = vrot.lane.b32.xlu0 %v1142, 96
        %v1201 = vpop.permute.xlu0 %1200
        %1202 = vrot.lane.b32.xlu0 %v1149, 96
        %v1203 = vpop.permute.xlu0 %1202
        %v1222 = vmul.f32 %v1053, %v1169
        %v1223 = vmul.f32 %v1067, %v1171
        %v1224 = vmul.f32 %v1075, %v1173
        %v1225 = vmul.f32 %v1077, %v1175
        %v1226 = vmul.f32 %v1060, %v1177
        %v1227 = vmul.f32 %v1074, %v1179
        %v1228 = vmul.f32 %v1076, %v1181
        %v1229 = vmul.f32 %v1078, %v1183
        %v1230 = vmul.f32 %v1102, %v1185
        %v1231 = vmul.f32 %v1053, %v1187
        %v1232 = vmul.f32 %v1067, %v1189
        %v1233 = vmul.f32 %v1075, %v1191
        %v1234 = vmul.f32 %v1077, %v1193
        %v1235 = vmul.f32 %v1060, %v1195
        %v1236 = vmul.f32 %v1074, %v1197
        %v1237 = vmul.f32 %v1076, %v1199
        %v1238 = vmul.f32 %v1078, %v1201
        %v1239 = vmul.f32 %v1102, %v1203
        %v1240 = vmul.f32 %v1116, %v1169
        %v1241 = vmul.f32 %v1124, %v1171
        %v1242 = vmul.f32 %v1126, %v1173
        %v1243 = vmul.f32 %v1109, %v1175
        %v1244 = vmul.f32 %v1123, %v1177
        %v1245 = vmul.f32 %v1125, %v1179
        %v1246 = vmul.f32 %v1127, %v1181
        %v1247 = vmul.f32 %v1142, %v1183
        %v1248 = vmul.f32 %v1149, %v1185
        %v1249 = vmul.f32 %v1116, %v1187
        %v1250 = vmul.f32 %v1124, %v1189
        %v1251 = vmul.f32 %v1126, %v1191
        %v1252 = vmul.f32 %v1109, %v1193
        %v1253 = vmul.f32 %v1123, %v1195
        %v1254 = vmul.f32 %v1125, %v1197
        %v1255 = vmul.f32 %v1127, %v1199
        %v1256 = vmul.f32 %v1142, %v1201
        %v1257 = vmul.f32 %v1149, %v1203
        %v1294 = vcombine.low %v1222, %v1223
        %v1295 = vcombine.low %v1224, %v1225
        %v1296 = vcombine.low %v1226, %v1227
        %v1297 = vcombine.low %v1228, %v1229
        %v1299 = vunpack.c.l.s4 1966171168
        %v1300 = vunpack.c.0.s8 %v1299
        %v1301 = vlaneseq
        %v1302 = vshrl.u32 %v1301, 7
        %v1303 = vsub.s32 %v1300, %v1302
        %v1304 = vrot.slane %v1294, %v1303
        %v1306 = vunpack.c.l.s4 1966171168
        %v1307 = vunpack.c.0.s8 %v1306
        %v1308 = vlaneseq
        %v1309 = vshrl.u32 %v1308, 7
        %v1310 = vsub.s32 %v1307, %v1309
        %v1311 = vrot.slane %v1295, %v1310
        %v1313 = vunpack.c.l.s4 1966171168
        %v1314 = vunpack.c.0.s8 %v1313
        %v1315 = vlaneseq
        %v1316 = vshrl.u32 %v1315, 7
        %v1317 = vsub.s32 %v1314, %v1316
        %v1318 = vrot.slane %v1296, %v1317
        %v1320 = vunpack.c.l.s4 1966171168
        %v1321 = vunpack.c.0.s8 %v1320
        %v1322 = vlaneseq
        %v1323 = vshrl.u32 %v1322, 7
        %v1324 = vsub.s32 %v1321, %v1323
        %v1325 = vrot.slane %v1297, %v1324
        %v1326 = vcombine.low %v1304, %v1311
        %v1327 = vcombine.low %v1318, %v1325
        %v1329 = vunpack.c.l.s4 1966171168
        %v1330 = vunpack.c.0.s8 %v1329
        %v1331 = vlaneseq
        %v1332 = vshrl.u32 %v1331, 7
        %v1333 = vsub.s32 %v1330, %v1332
        %v1334 = vrot.slane %v1326, %v1333
        %v1336 = vunpack.c.l.s4 1966171168
        %v1337 = vunpack.c.0.s8 %v1336
        %v1338 = vlaneseq
        %v1339 = vshrl.u32 %v1338, 7
        %v1340 = vsub.s32 %v1337, %v1339
        %v1341 = vrot.slane %v1327, %v1340
        %v1342 = vcombine.low %v1334, %v1341
        %v1343 = vcombine.low %v1230, %v1231
        %v1344 = vcombine.low %v1232, %v1233
        %v1345 = vcombine.low %v1234, %v1235
        %v1346 = vcombine.low %v1236, %v1237
        %v1348 = vunpack.c.l.s4 1966171168
        %v1349 = vunpack.c.0.s8 %v1348
        %v1350 = vlaneseq
        %v1351 = vshrl.u32 %v1350, 7
        %v1352 = vsub.s32 %v1349, %v1351
        %v1353 = vrot.slane %v1343, %v1352
        %v1355 = vunpack.c.l.s4 1966171168
        %v1356 = vunpack.c.0.s8 %v1355
        %v1357 = vlaneseq
        %v1358 = vshrl.u32 %v1357, 7
        %v1359 = vsub.s32 %v1356, %v1358
        %v1360 = vrot.slane %v1344, %v1359
        %v1362 = vunpack.c.l.s4 1966171168
        %v1363 = vunpack.c.0.s8 %v1362
        %v1364 = vlaneseq
        %v1365 = vshrl.u32 %v1364, 7
        %v1366 = vsub.s32 %v1363, %v1365
        %v1367 = vrot.slane %v1345, %v1366
        %v1369 = vunpack.c.l.s4 1966171168
        %v1370 = vunpack.c.0.s8 %v1369
        %v1371 = vlaneseq
        %v1372 = vshrl.u32 %v1371, 7
        %v1373 = vsub.s32 %v1370, %v1372
        %v1374 = vrot.slane %v1346, %v1373
        %v1375 = vcombine.low %v1353, %v1360
        %v1376 = vcombine.low %v1367, %v1374
        %v1378 = vunpack.c.l.s4 1966171168
        %v1379 = vunpack.c.0.s8 %v1378
        %v1380 = vlaneseq
        %v1381 = vshrl.u32 %v1380, 7
        %v1382 = vsub.s32 %v1379, %v1381
        %v1383 = vrot.slane %v1375, %v1382
        %v1385 = vunpack.c.l.s4 1966171168
        %v1386 = vunpack.c.0.s8 %v1385
        %v1387 = vlaneseq
        %v1388 = vshrl.u32 %v1387, 7
        %v1389 = vsub.s32 %v1386, %v1388
        %v1390 = vrot.slane %v1376, %v1389
        %v1391 = vcombine.low %v1383, %v1390
        %v1392 = vcombine.low %v1238, %v1239
        %v1393 = vcombine.low %v1240, %v1241
        %v1394 = vcombine.low %v1242, %v1243
        %v1395 = vcombine.low %v1244, %v1245
        %v1397 = vunpack.c.l.s4 1966171168
        %v1398 = vunpack.c.0.s8 %v1397
        %v1399 = vlaneseq
        %v1400 = vshrl.u32 %v1399, 7
        %v1401 = vsub.s32 %v1398, %v1400
        %v1402 = vrot.slane %v1392, %v1401
        %v1404 = vunpack.c.l.s4 1966171168
        %v1405 = vunpack.c.0.s8 %v1404
        %v1406 = vlaneseq
        %v1407 = vshrl.u32 %v1406, 7
        %v1408 = vsub.s32 %v1405, %v1407
        %v1409 = vrot.slane %v1393, %v1408
        %v1411 = vunpack.c.l.s4 1966171168
        %v1412 = vunpack.c.0.s8 %v1411
        %v1413 = vlaneseq
        %v1414 = vshrl.u32 %v1413, 7
        %v1415 = vsub.s32 %v1412, %v1414
        %v1416 = vrot.slane %v1394, %v1415
        %v1418 = vunpack.c.l.s4 1966171168
        %v1419 = vunpack.c.0.s8 %v1418
        %v1420 = vlaneseq
        %v1421 = vshrl.u32 %v1420, 7
        %v1422 = vsub.s32 %v1419, %v1421
        %v1423 = vrot.slane %v1395, %v1422
        %v1424 = vcombine.low %v1402, %v1409
        %v1425 = vcombine.low %v1416, %v1423
        %v1427 = vunpack.c.l.s4 1966171168
        %v1428 = vunpack.c.0.s8 %v1427
        %v1429 = vlaneseq
        %v1430 = vshrl.u32 %v1429, 7
        %v1431 = vsub.s32 %v1428, %v1430
        %v1432 = vrot.slane %v1424, %v1431
        %v1434 = vunpack.c.l.s4 1966171168
        %v1435 = vunpack.c.0.s8 %v1434
        %v1436 = vlaneseq
        %v1437 = vshrl.u32 %v1436, 7
        %v1438 = vsub.s32 %v1435, %v1437
        %v1439 = vrot.slane %v1425, %v1438
        %v1440 = vcombine.low %v1432, %v1439
        %v1441 = vcombine.low %v1246, %v1247
        %v1442 = vcombine.low %v1248, %v1249
        %v1443 = vcombine.low %v1250, %v1251
        %v1444 = vcombine.low %v1252, %v1253
        %v1446 = vunpack.c.l.s4 1966171168
        %v1447 = vunpack.c.0.s8 %v1446
        %v1448 = vlaneseq
        %v1449 = vshrl.u32 %v1448, 7
        %v1450 = vsub.s32 %v1447, %v1449
        %v1451 = vrot.slane %v1441, %v1450
        %v1453 = vunpack.c.l.s4 1966171168
        %v1454 = vunpack.c.0.s8 %v1453
        %v1455 = vlaneseq
        %v1456 = vshrl.u32 %v1455, 7
        %v1457 = vsub.s32 %v1454, %v1456
        %v1458 = vrot.slane %v1442, %v1457
        %v1460 = vunpack.c.l.s4 1966171168
        %v1461 = vunpack.c.0.s8 %v1460
        %v1462 = vlaneseq
        %v1463 = vshrl.u32 %v1462, 7
        %v1464 = vsub.s32 %v1461, %v1463
        %v1465 = vrot.slane %v1443, %v1464
        %v1467 = vunpack.c.l.s4 1966171168
        %v1468 = vunpack.c.0.s8 %v1467
        %v1469 = vlaneseq
        %v1470 = vshrl.u32 %v1469, 7
        %v1471 = vsub.s32 %v1468, %v1470
        %v1472 = vrot.slane %v1444, %v1471
        %v1473 = vcombine.low %v1451, %v1458
        %v1474 = vcombine.low %v1465, %v1472
        %v1476 = vunpack.c.l.s4 1966171168
        %v1477 = vunpack.c.0.s8 %v1476
        %v1478 = vlaneseq
        %v1479 = vshrl.u32 %v1478, 7
        %v1480 = vsub.s32 %v1477, %v1479
        %v1481 = vrot.slane %v1473, %v1480
        %v1483 = vunpack.c.l.s4 1966171168
        %v1484 = vunpack.c.0.s8 %v1483
        %v1485 = vlaneseq
        %v1486 = vshrl.u32 %v1485, 7
        %v1487 = vsub.s32 %v1484, %v1486
        %v1488 = vrot.slane %v1474, %v1487
        %v1489 = vcombine.low %v1481, %v1488
        %v1490 = vcombine.low %v1254, %v1255
        %v1491 = vcombine.low %v1256, %v1257
        %v1493 = vunpack.c.l.s4 1966171168
        %v1494 = vunpack.c.0.s8 %v1493
        %v1495 = vlaneseq
        %v1496 = vshrl.u32 %v1495, 7
        %v1497 = vsub.s32 %v1494, %v1496
        %v1498 = vrot.slane %v1490, %v1497
        %v1500 = vunpack.c.l.s4 1966171168
        %v1501 = vunpack.c.0.s8 %v1500
        %v1502 = vlaneseq
        %v1503 = vshrl.u32 %v1502, 7
        %v1504 = vsub.s32 %v1501, %v1503
        %v1505 = vrot.slane %v1491, %v1504
        %v1506 = vcombine.low %v1498, %v1505
        %v1508 = vunpack.c.l.s4 1966171168
        %v1509 = vunpack.c.0.s8 %v1508
        %v1510 = vlaneseq
        %v1511 = vshrl.u32 %v1510, 7
        %v1512 = vsub.s32 %v1509, %v1511
        %v1513 = vrot.slane %v1506, %v1512
        %v1519 = vpack.c.bf16 %v1391, %v1342
        %v1520 = vpack.c.bf16 %v1489, %v1440
        %v1521 = vpack.c.bf16 %v1513, %v1513
        %v1522 = vld [vmem:[%s5] sm:$0xf]
        %v1523 = vld [vmem:[%s5 + $0x4] sm:$0xf]
        %v1524 = vld [vmem:[%s5 + $0x8] sm:$0xf]
        %v1525 = vld [vmem:[%s5 + $0xc] sm:$0xf]
        %v1530 = vunpack.c.l.b16 %v1522
        %v1531 = vunpack.c.l.b16 %v1523
        %v1532 = vunpack.c.l.b16 %v1524
        %v1533 = vunpack.c.l.b16 %v1525
        %v1534 = vpack.c.b16 %v1531, %v1530
        %v1535 = vpack.c.b16 %v1533, %v1532
        %v1539 = vsel %vm972, %v1519, 0
        %v1542 = vsel %vm972, %v1520, 0
        %v1545 = vsel %vm972, %v1521, 0
        %1547 = vmatprep.subr.bf16.mxu0 0
        %1548 = vmatpush1.bf16.msra.mxu0 %v1534
        %1549 = vmatprep.subr.bf16.mxu0 0
        %1550 = vmatpush1.bf16.msra.mxu0 %v1535
        %1551 = vmatprep.subr.bf16.mxu0 0
        %1552 = vmatpush1.bf16.msra.mxu0 0
        %1553 = vmatprep.subr.bf16.mxu0 0
        %1554 = vmatpush1.bf16.msra.mxu0 0
        %1555 = vmatprep.subr.bf16.mxu0 0
        %1556 = vmatpush1.bf16.msra.mxu0 0
        %1557 = vmatprep.subr.bf16.mxu0 0
        %1558 = vmatpush1.bf16.msra.mxu0 0
        %1559 = vmatprep.subr.bf16.mxu0 0
        %1560 = vmatpush1.bf16.msra.mxu0 0
        %1561 = vmatprep.subr.bf16.mxu0 0
        %1562 = vmatpush1.bf16.msra.mxu0 0
        %1563 = vmatprep.subr.bf16.mxu0 0
        %1564 = vmatpush1.bf16.msra.mxu0 0
        %1565 = vmatprep.subr.bf16.mxu0 0
        %1566 = vmatpush1.bf16.msra.mxu0 0
        %1567 = vmatprep.subr.bf16.mxu0 0
        %1568 = vmatpush1.bf16.msra.mxu0 0
        %1569 = vmatprep.subr.bf16.mxu0 0
        %1570 = vmatpush1.bf16.msra.mxu0 0
        %1571 = vmatprep.subr.bf16.mxu0 0
        %1572 = vmatpush1.bf16.msra.mxu0 0
        %1573 = vmatprep.subr.bf16.mxu0 0
        %1574 = vmatpush1.bf16.msra.mxu0 0
        %1575 = vmatprep.subr.bf16.mxu0 0
        %1576 = vmatpush1.bf16.msra.mxu0 0
        %1577 = vmatprep.subr.bf16.mxu0 0
        %1578 = vmatpush1.bf16.msra.mxu0 0
        %1579 = vmatprep.mubr.bf16.mxu0 0
        %1580 = vmatmul.mubr.bf16.gmra.mrb[0].mxu0 %v1539
        %v1581 = vpop.f32.mrb[0].mxu0
        %v1582 = vadd.f32 0.0, %v1581
        %v1583 = vpop.f32.mrb[0].mxu0
        %v1584 = vpop.f32.mrb[0].mxu0
        %v1585 = vadd.f32 0.0, %v1584
        %v1586 = vpop.f32.mrb[0].mxu0
        %1587 = vmatprep.mubr.bf16.mxu0 0
        %1588 = vmatmul.mubr.bf16.gmra.mrb[0].mxu0 %v1542
        %v1589 = vpop.f32.mrb[0].mxu0
        %v1590 = vadd.f32 0.0, %v1589
        %v1591 = vpop.f32.mrb[0].mxu0
        %v1592 = vpop.f32.mrb[0].mxu0
        %v1593 = vadd.f32 0.0, %v1592
        %v1594 = vpop.f32.mrb[0].mxu0
        %1595 = vmatprep.mubr.bf16.mxu0 0
        %1596 = vmatmul.mubr.bf16.gmra.mrb[0].mxu0 %v1545
        %v1597 = vpop.f32.mrb[0].mxu0
        %v1598 = vadd.f32 0.0, %v1597
        %v1599 = vpop.f32.mrb[0].mxu0
        %v1600 = vpop.f32.mrb[0].mxu0
        %v1601 = vpop.f32.mrb[0].mxu0
        %1602 = vdwg.mxu0
        %v1608 = vcombine.high %v1582, %v1582
        %v1610 = vunpack.c.l.s4 1966171168
        %v1611 = vunpack.c.0.s8 %v1610
        %v1612 = vlaneseq
        %v1613 = vshrl.u32 %v1612, 7
        %v1614 = vsub.s32 %v1611, %v1613
        %v1615 = vrot.slane %v1582, %v1614
        %v1617 = vunpack.c.l.s4 1966171168
        %v1618 = vunpack.c.0.s8 %v1617
        %v1619 = vlaneseq
        %v1620 = vshrl.u32 %v1619, 7
        %v1621 = vsub.s32 %v1618, %v1620
        %v1622 = vrot.slane %v1608, %v1621
        %v1623 = vcombine.high %v1615, %v1615
        %v1624 = vcombine.high %v1622, %v1622
        %v1626 = vunpack.c.l.s4 1966171168
        %v1627 = vunpack.c.0.s8 %v1626
        %v1628 = vlaneseq
        %v1629 = vshrl.u32 %v1628, 7
        %v1630 = vsub.s32 %v1627, %v1629
        %v1631 = vrot.slane %v1615, %v1630
        %v1633 = vunpack.c.l.s4 1966171168
        %v1634 = vunpack.c.0.s8 %v1633
        %v1635 = vlaneseq
        %v1636 = vshrl.u32 %v1635, 7
        %v1637 = vsub.s32 %v1634, %v1636
        %v1638 = vrot.slane %v1622, %v1637
        %v1640 = vunpack.c.l.s4 1966171168
        %v1641 = vunpack.c.0.s8 %v1640
        %v1642 = vlaneseq
        %v1643 = vshrl.u32 %v1642, 7
        %v1644 = vsub.s32 %v1641, %v1643
        %v1645 = vrot.slane %v1623, %v1644
        %v1647 = vunpack.c.l.s4 1966171168
        %v1648 = vunpack.c.0.s8 %v1647
        %v1649 = vlaneseq
        %v1650 = vshrl.u32 %v1649, 7
        %v1651 = vsub.s32 %v1648, %v1650
        %v1652 = vrot.slane %v1624, %v1651
        %v1653 = vcombine.high %v1631, %v1631
        %v1654 = vcombine.high %v1638, %v1638
        %v1655 = vcombine.high %v1645, %v1645
        %v1656 = vcombine.high %v1652, %v1652
        %v1657 = vcombine.high %v1585, %v1585
        %v1659 = vunpack.c.l.s4 1966171168
        %v1660 = vunpack.c.0.s8 %v1659
        %v1661 = vlaneseq
        %v1662 = vshrl.u32 %v1661, 7
        %v1663 = vsub.s32 %v1660, %v1662
        %v1664 = vrot.slane %v1585, %v1663
        %v1666 = vunpack.c.l.s4 1966171168
        %v1667 = vunpack.c.0.s8 %v1666
        %v1668 = vlaneseq
        %v1669 = vshrl.u32 %v1668, 7
        %v1670 = vsub.s32 %v1667, %v1669
        %v1671 = vrot.slane %v1657, %v1670
        %v1672 = vcombine.high %v1664, %v1664
        %v1673 = vcombine.high %v1671, %v1671
        %v1675 = vunpack.c.l.s4 1966171168
        %v1676 = vunpack.c.0.s8 %v1675
        %v1677 = vlaneseq
        %v1678 = vshrl.u32 %v1677, 7
        %v1679 = vsub.s32 %v1676, %v1678
        %v1680 = vrot.slane %v1664, %v1679
        %v1682 = vunpack.c.l.s4 1966171168
        %v1683 = vunpack.c.0.s8 %v1682
        %v1684 = vlaneseq
        %v1685 = vshrl.u32 %v1684, 7
        %v1686 = vsub.s32 %v1683, %v1685
        %v1687 = vrot.slane %v1671, %v1686
        %v1689 = vunpack.c.l.s4 1966171168
        %v1690 = vunpack.c.0.s8 %v1689
        %v1691 = vlaneseq
        %v1692 = vshrl.u32 %v1691, 7
        %v1693 = vsub.s32 %v1690, %v1692
        %v1694 = vrot.slane %v1672, %v1693
        %v1696 = vunpack.c.l.s4 1966171168
        %v1697 = vunpack.c.0.s8 %v1696
        %v1698 = vlaneseq
        %v1699 = vshrl.u32 %v1698, 7
        %v1700 = vsub.s32 %v1697, %v1699
        %v1701 = vrot.slane %v1673, %v1700
        %v1702 = vcombine.high %v1680, %v1680
        %v1703 = vcombine.high %v1687, %v1687
        %v1704 = vcombine.high %v1694, %v1694
        %v1705 = vcombine.high %v1701, %v1701
        %v1706 = vcombine.high %v1590, %v1590
        %v1708 = vunpack.c.l.s4 1966171168
        %v1709 = vunpack.c.0.s8 %v1708
        %v1710 = vlaneseq
        %v1711 = vshrl.u32 %v1710, 7
        %v1712 = vsub.s32 %v1709, %v1711
        %v1713 = vrot.slane %v1590, %v1712
        %v1715 = vunpack.c.l.s4 1966171168
        %v1716 = vunpack.c.0.s8 %v1715
        %v1717 = vlaneseq
        %v1718 = vshrl.u32 %v1717, 7
        %v1719 = vsub.s32 %v1716, %v1718
        %v1720 = vrot.slane %v1706, %v1719
        %v1721 = vcombine.high %v1713, %v1713
        %v1722 = vcombine.high %v1720, %v1720
        %v1724 = vunpack.c.l.s4 1966171168
        %v1725 = vunpack.c.0.s8 %v1724
        %v1726 = vlaneseq
        %v1727 = vshrl.u32 %v1726, 7
        %v1728 = vsub.s32 %v1725, %v1727
        %v1729 = vrot.slane %v1713, %v1728
        %v1731 = vunpack.c.l.s4 1966171168
        %v1732 = vunpack.c.0.s8 %v1731
        %v1733 = vlaneseq
        %v1734 = vshrl.u32 %v1733, 7
        %v1735 = vsub.s32 %v1732, %v1734
        %v1736 = vrot.slane %v1720, %v1735
        %v1738 = vunpack.c.l.s4 1966171168
        %v1739 = vunpack.c.0.s8 %v1738
        %v1740 = vlaneseq
        %v1741 = vshrl.u32 %v1740, 7
        %v1742 = vsub.s32 %v1739, %v1741
        %v1743 = vrot.slane %v1721, %v1742
        %v1745 = vunpack.c.l.s4 1966171168
        %v1746 = vunpack.c.0.s8 %v1745
        %v1747 = vlaneseq
        %v1748 = vshrl.u32 %v1747, 7
        %v1749 = vsub.s32 %v1746, %v1748
        %v1750 = vrot.slane %v1722, %v1749
        %v1751 = vcombine.high %v1729, %v1729
        %v1752 = vcombine.high %v1736, %v1736
        %v1753 = vcombine.high %v1743, %v1743
        %v1754 = vcombine.high %v1750, %v1750
        %v1755 = vcombine.high %v1593, %v1593
        %v1757 = vunpack.c.l.s4 1966171168
        %v1758 = vunpack.c.0.s8 %v1757
        %v1759 = vlaneseq
        %v1760 = vshrl.u32 %v1759, 7
        %v1761 = vsub.s32 %v1758, %v1760
        %v1762 = vrot.slane %v1593, %v1761
        %v1764 = vunpack.c.l.s4 1966171168
        %v1765 = vunpack.c.0.s8 %v1764
        %v1766 = vlaneseq
        %v1767 = vshrl.u32 %v1766, 7
        %v1768 = vsub.s32 %v1765, %v1767
        %v1769 = vrot.slane %v1755, %v1768
        %v1770 = vcombine.high %v1762, %v1762
        %v1771 = vcombine.high %v1769, %v1769
        %v1773 = vunpack.c.l.s4 1966171168
        %v1774 = vunpack.c.0.s8 %v1773
        %v1775 = vlaneseq
        %v1776 = vshrl.u32 %v1775, 7
        %v1777 = vsub.s32 %v1774, %v1776
        %v1778 = vrot.slane %v1762, %v1777
        %v1780 = vunpack.c.l.s4 1966171168
        %v1781 = vunpack.c.0.s8 %v1780
        %v1782 = vlaneseq
        %v1783 = vshrl.u32 %v1782, 7
        %v1784 = vsub.s32 %v1781, %v1783
        %v1785 = vrot.slane %v1769, %v1784
        %v1787 = vunpack.c.l.s4 1966171168
        %v1788 = vunpack.c.0.s8 %v1787
        %v1789 = vlaneseq
        %v1790 = vshrl.u32 %v1789, 7
        %v1791 = vsub.s32 %v1788, %v1790
        %v1792 = vrot.slane %v1770, %v1791
        %v1794 = vunpack.c.l.s4 1966171168
        %v1795 = vunpack.c.0.s8 %v1794
        %v1796 = vlaneseq
        %v1797 = vshrl.u32 %v1796, 7
        %v1798 = vsub.s32 %v1795, %v1797
        %v1799 = vrot.slane %v1771, %v1798
        %v1800 = vcombine.high %v1778, %v1778
        %v1801 = vcombine.high %v1785, %v1785
        %v1802 = vcombine.high %v1792, %v1792
        %v1803 = vcombine.high %v1799, %v1799
        %v1805 = vunpack.c.l.s4 1966171168
        %v1806 = vunpack.c.0.s8 %v1805
        %v1807 = vlaneseq
        %v1808 = vshrl.u32 %v1807, 7
        %v1809 = vsub.s32 %v1806, %v1808
        %v1810 = vrot.slane %v1598, %v1809
        %v1811 = vcombine.high %v1810, %v1810
        %v1813 = vunpack.c.l.s4 1966171168
        %v1814 = vunpack.c.0.s8 %v1813
        %v1815 = vlaneseq
        %v1816 = vshrl.u32 %v1815, 7
        %v1817 = vsub.s32 %v1814, %v1816
        %v1818 = vrot.slane %v1810, %v1817
        %v1820 = vunpack.c.l.s4 1966171168
        %v1821 = vunpack.c.0.s8 %v1820
        %v1822 = vlaneseq
        %v1823 = vshrl.u32 %v1822, 7
        %v1824 = vsub.s32 %v1821, %v1823
        %v1825 = vrot.slane %v1811, %v1824
        %v1826 = vcombine.high %v1818, %v1818
        %v1827 = vcombine.high %v1825, %v1825
        %v1864 = vmul.f32 %v1631, 0.35355338
        %v1865 = vmul.f32 %v1645, 0.35355338
        %v1866 = vmul.f32 %v1653, 0.35355338
        %v1867 = vmul.f32 %v1655, 0.35355338
        %v1868 = vmul.f32 %v1638, 0.35355338
        %v1869 = vmul.f32 %v1652, 0.35355338
        %v1870 = vmul.f32 %v1654, 0.35355338
        %v1871 = vmul.f32 %v1656, 0.35355338
        %v1872 = vmul.f32 %v1680, 0.35355338
        %v1873 = vmul.f32 %v1694, 0.35355338
        %v1874 = vmul.f32 %v1702, 0.35355338
        %v1875 = vmul.f32 %v1704, 0.35355338
        %v1876 = vmul.f32 %v1687, 0.35355338
        %v1877 = vmul.f32 %v1701, 0.35355338
        %v1878 = vmul.f32 %v1703, 0.35355338
        %v1879 = vmul.f32 %v1705, 0.35355338
        %v1880 = vmul.f32 %v1729, 0.35355338
        %v1881 = vmul.f32 %v1743, 0.35355338
        %v1882 = vmul.f32 %v1751, 0.35355338
        %v1883 = vmul.f32 %v1753, 0.35355338
        %v1884 = vmul.f32 %v1736, 0.35355338
        %v1885 = vmul.f32 %v1750, 0.35355338
        %v1886 = vmul.f32 %v1752, 0.35355338
        %v1887 = vmul.f32 %v1754, 0.35355338
        %v1888 = vmul.f32 %v1778, 0.35355338
        %v1889 = vmul.f32 %v1792, 0.35355338
        %v1890 = vmul.f32 %v1800, 0.35355338
        %v1891 = vmul.f32 %v1802, 0.35355338
        %v1892 = vmul.f32 %v1785, 0.35355338
        %v1893 = vmul.f32 %v1799, 0.35355338
        %v1894 = vmul.f32 %v1801, 0.35355338
        %v1895 = vmul.f32 %v1803, 0.35355338
        %v1896 = vmul.f32 %v1818, 0.35355338
        %v1897 = vmul.f32 %v1825, 0.35355338
        %v1898 = vmul.f32 %v1826, 0.35355338
        %v1899 = vmul.f32 %v1827, 0.35355338
        %v1900 = vlaneseq
        %vm1901 = vcmp.ge.s32.totalorder %v1900, 0
        %vm1902 = vcmp.lt.s32.totalorder %v1900, 4
        %vm1903 = vmand %vm1901, %vm1902
        %v1904 = vsel %vm1903, %v1864, -inf
        %v1905 = vsel %vm1903, %v1873, -inf
        %v1906 = vmax.f32 %v1904, %v1905
        %v1907 = vsel %vm1903, %v1865, -inf
        %v1908 = vsel %vm1903, %v1874, -inf
        %v1909 = vmax.f32 %v1907, %v1908
        %v1910 = vsel %vm1903, %v1866, -inf
        %v1911 = vsel %vm1903, %v1875, -inf
        %v1912 = vmax.f32 %v1910, %v1911
        %v1913 = vsel %vm1903, %v1867, -inf
        %v1914 = vsel %vm1903, %v1876, -inf
        %v1915 = vmax.f32 %v1913, %v1914
        %v1916 = vsel %vm1903, %v1868, -inf
        %v1917 = vsel %vm1903, %v1877, -inf
        %v1918 = vmax.f32 %v1916, %v1917
        %v1919 = vsel %vm1903, %v1869, -inf
        %v1920 = vsel %vm1903, %v1878, -inf
        %v1921 = vmax.f32 %v1919, %v1920
        %v1922 = vsel %vm1903, %v1870, -inf
        %v1923 = vsel %vm1903, %v1879, -inf
        %v1924 = vmax.f32 %v1922, %v1923
        %v1925 = vsel %vm1903, %v1871, -inf
        %v1926 = vsel %vm1903, %v1880, -inf
        %v1927 = vmax.f32 %v1925, %v1926
        %v1928 = vsel %vm1903, %v1872, -inf
        %v1929 = vsel %vm1903, %v1881, -inf
        %v1930 = vmax.f32 %v1928, %v1929
        %v1931 = vsel %vm1903, %v1882, -inf
        %v1932 = vsel %vm1903, %v1891, -inf
        %v1933 = vmax.f32 %v1931, %v1932
        %v1934 = vsel %vm1903, %v1883, -inf
        %v1935 = vsel %vm1903, %v1892, -inf
        %v1936 = vmax.f32 %v1934, %v1935
        %v1937 = vsel %vm1903, %v1884, -inf
        %v1938 = vsel %vm1903, %v1893, -inf
        %v1939 = vmax.f32 %v1937, %v1938
        %v1940 = vsel %vm1903, %v1885, -inf
        %v1941 = vsel %vm1903, %v1894, -inf
        %v1942 = vmax.f32 %v1940, %v1941
        %v1943 = vsel %vm1903, %v1886, -inf
        %v1944 = vsel %vm1903, %v1895, -inf
        %v1945 = vmax.f32 %v1943, %v1944
        %v1946 = vsel %vm1903, %v1887, -inf
        %v1947 = vsel %vm1903, %v1896, -inf
        %v1948 = vmax.f32 %v1946, %v1947
        %v1949 = vsel %vm1903, %v1888, -inf
        %v1950 = vsel %vm1903, %v1897, -inf
        %v1951 = vmax.f32 %v1949, %v1950
        %v1952 = vsel %vm1903, %v1889, -inf
        %v1953 = vsel %vm1903, %v1898, -inf
        %v1954 = vmax.f32 %v1952, %v1953
        %v1955 = vsel %vm1903, %v1890, -inf
        %v1956 = vsel %vm1903, %v1899, -inf
        %v1957 = vmax.f32 %v1955, %v1956
        %v1958 = vsub.f32 %v1864, %v1906
        %v1959 = vsub.f32 %v1865, %v1909
        %v1960 = vsub.f32 %v1866, %v1912
        %v1961 = vsub.f32 %v1867, %v1915
        %v1962 = vsub.f32 %v1868, %v1918
        %v1963 = vsub.f32 %v1869, %v1921
        %v1964 = vsub.f32 %v1870, %v1924
        %v1965 = vsub.f32 %v1871, %v1927
        %v1966 = vsub.f32 %v1872, %v1930
        %v1967 = vsub.f32 %v1873, %v1906
        %v1968 = vsub.f32 %v1874, %v1909
        %v1969 = vsub.f32 %v1875, %v1912
        %v1970 = vsub.f32 %v1876, %v1915
        %v1971 = vsub.f32 %v1877, %v1918
        %v1972 = vsub.f32 %v1878, %v1921
        %v1973 = vsub.f32 %v1879, %v1924
        %v1974 = vsub.f32 %v1880, %v1927
        %v1975 = vsub.f32 %v1881, %v1930
        %v1976 = vsub.f32 %v1882, %v1933
        %v1977 = vsub.f32 %v1883, %v1936
        %v1978 = vsub.f32 %v1884, %v1939
        %v1979 = vsub.f32 %v1885, %v1942
        %v1980 = vsub.f32 %v1886, %v1945
        %v1981 = vsub.f32 %v1887, %v1948
        %v1982 = vsub.f32 %v1888, %v1951
        %v1983 = vsub.f32 %v1889, %v1954
        %v1984 = vsub.f32 %v1890, %v1957
        %v1985 = vsub.f32 %v1891, %v1933
        %v1986 = vsub.f32 %v1892, %v1936
        %v1987 = vsub.f32 %v1893, %v1939
        %v1988 = vsub.f32 %v1894, %v1942
        %v1989 = vsub.f32 %v1895, %v1945
        %v1990 = vsub.f32 %v1896, %v1948
        %v1991 = vsub.f32 %v1897, %v1951
        %v1992 = vsub.f32 %v1898, %v1954
        %v1993 = vsub.f32 %v1899, %v1957
        %v1994 = vmul.f32 %v1958, 1.442695
        %v1995 = vpow.pop %v1994
        %v1996 = vmul.f32 %v1959, 1.442695
        %v1997 = vpow.pop %v1996
        %v1998 = vmul.f32 %v1960, 1.442695
        %v1999 = vpow.pop %v1998
        %v2000 = vmul.f32 %v1961, 1.442695
        %v2001 = vpow.pop %v2000
        %v2002 = vmul.f32 %v1962, 1.442695
        %v2003 = vpow.pop %v2002
        %v2004 = vmul.f32 %v1963, 1.442695
        %v2005 = vpow.pop %v2004
        %v2006 = vmul.f32 %v1964, 1.442695
        %v2007 = vpow.pop %v2006
        %v2008 = vmul.f32 %v1965, 1.442695
        %v2009 = vpow.pop %v2008
        %v2010 = vmul.f32 %v1966, 1.442695
        %v2011 = vpow.pop %v2010
        %v2012 = vmul.f32 %v1967, 1.442695
        %v2013 = vpow.pop %v2012
        %v2014 = vmul.f32 %v1968, 1.442695
        %v2015 = vpow.pop %v2014
        %v2016 = vmul.f32 %v1969, 1.442695
        %v2017 = vpow.pop %v2016
        %v2018 = vmul.f32 %v1970, 1.442695
        %v2019 = vpow.pop %v2018
        %v2020 = vmul.f32 %v1971, 1.442695
        %v2021 = vpow.pop %v2020
        %v2022 = vmul.f32 %v1972, 1.442695
        %v2023 = vpow.pop %v2022
        %v2024 = vmul.f32 %v1973, 1.442695
        %v2025 = vpow.pop %v2024
        %v2026 = vmul.f32 %v1974, 1.442695
        %v2027 = vpow.pop %v2026
        %v2028 = vmul.f32 %v1975, 1.442695
        %v2029 = vpow.pop %v2028
        %v2030 = vmul.f32 %v1976, 1.442695
        %v2031 = vpow.pop %v2030
        %v2032 = vmul.f32 %v1977, 1.442695
        %v2033 = vpow.pop %v2032
        %v2034 = vmul.f32 %v1978, 1.442695
        %v2035 = vpow.pop %v2034
        %v2036 = vmul.f32 %v1979, 1.442695
        %v2037 = vpow.pop %v2036
        %v2038 = vmul.f32 %v1980, 1.442695
        %v2039 = vpow.pop %v2038
        %v2040 = vmul.f32 %v1981, 1.442695
        %v2041 = vpow.pop %v2040
        %v2042 = vmul.f32 %v1982, 1.442695
        %v2043 = vpow.pop %v2042
        %v2044 = vmul.f32 %v1983, 1.442695
        %v2045 = vpow.pop %v2044
        %v2046 = vmul.f32 %v1984, 1.442695
        %v2047 = vpow.pop %v2046
        %v2048 = vmul.f32 %v1985, 1.442695
        %v2049 = vpow.pop %v2048
        %v2050 = vmul.f32 %v1986, 1.442695
        %v2051 = vpow.pop %v2050
        %v2052 = vmul.f32 %v1987, 1.442695
        %v2053 = vpow.pop %v2052
        %v2054 = vmul.f32 %v1988, 1.442695
        %v2055 = vpow.pop %v2054
        %v2056 = vmul.f32 %v1989, 1.442695
        %v2057 = vpow.pop %v2056
        %v2058 = vmul.f32 %v1990, 1.442695
        %v2059 = vpow.pop %v2058
        %v2060 = vmul.f32 %v1991, 1.442695
        %v2061 = vpow.pop %v2060
        %v2062 = vmul.f32 %v1992, 1.442695
        %v2063 = vpow.pop %v2062
        %v2064 = vmul.f32 %v1993, 1.442695
        %v2065 = vpow.pop %v2064
        %v2102 = vcombine.low %v1995, %v1997
        %v2103 = vcombine.low %v1999, %v2001
        %v2104 = vcombine.low %v2003, %v2005
        %v2105 = vcombine.low %v2007, %v2009
        %v2107 = vunpack.c.l.s4 1966171168
        %v2108 = vunpack.c.0.s8 %v2107
        %v2109 = vlaneseq
        %v2110 = vshrl.u32 %v2109, 7
        %v2111 = vsub.s32 %v2108, %v2110
        %v2112 = vrot.slane %v2102, %v2111
        %v2114 = vunpack.c.l.s4 1966171168
        %v2115 = vunpack.c.0.s8 %v2114
        %v2116 = vlaneseq
        %v2117 = vshrl.u32 %v2116, 7
        %v2118 = vsub.s32 %v2115, %v2117
        %v2119 = vrot.slane %v2103, %v2118
        %v2121 = vunpack.c.l.s4 1966171168
        %v2122 = vunpack.c.0.s8 %v2121
        %v2123 = vlaneseq
        %v2124 = vshrl.u32 %v2123, 7
        %v2125 = vsub.s32 %v2122, %v2124
        %v2126 = vrot.slane %v2104, %v2125
        %v2128 = vunpack.c.l.s4 1966171168
        %v2129 = vunpack.c.0.s8 %v2128
        %v2130 = vlaneseq
        %v2131 = vshrl.u32 %v2130, 7
        %v2132 = vsub.s32 %v2129, %v2131
        %v2133 = vrot.slane %v2105, %v2132
        %v2134 = vcombine.low %v2112, %v2119
        %v2135 = vcombine.low %v2126, %v2133
        %v2137 = vunpack.c.l.s4 1966171168
        %v2138 = vunpack.c.0.s8 %v2137
        %v2139 = vlaneseq
        %v2140 = vshrl.u32 %v2139, 7
        %v2141 = vsub.s32 %v2138, %v2140
        %v2142 = vrot.slane %v2134, %v2141
        %v2144 = vunpack.c.l.s4 1966171168
        %v2145 = vunpack.c.0.s8 %v2144
        %v2146 = vlaneseq
        %v2147 = vshrl.u32 %v2146, 7
        %v2148 = vsub.s32 %v2145, %v2147
        %v2149 = vrot.slane %v2135, %v2148
        %v2150 = vcombine.low %v2142, %v2149
        %v2152 = vunpack.c.l.s4 1966171168
        %v2153 = vunpack.c.0.s8 %v2152
        %v2154 = vlaneseq
        %v2155 = vshrl.u32 %v2154, 7
        %v2156 = vsub.s32 %v2153, %v2155
        %v2157 = vrot.slane %v2011, %v2156
        %v2159 = vunpack.c.l.s4 1966171168
        %v2160 = vunpack.c.0.s8 %v2159
        %v2161 = vlaneseq
        %v2162 = vshrl.u32 %v2161, 7
        %v2163 = vsub.s32 %v2160, %v2162
        %v2164 = vrot.slane %v2157, %v2163
        %v2165 = vcombine.low %v2013, %v2015
        %v2166 = vcombine.low %v2017, %v2019
        %v2167 = vcombine.low %v2021, %v2023
        %v2168 = vcombine.low %v2025, %v2027
        %v2170 = vunpack.c.l.s4 1966171168
        %v2171 = vunpack.c.0.s8 %v2170
        %v2172 = vlaneseq
        %v2173 = vshrl.u32 %v2172, 7
        %v2174 = vsub.s32 %v2171, %v2173
        %v2175 = vrot.slane %v2165, %v2174
        %v2177 = vunpack.c.l.s4 1966171168
        %v2178 = vunpack.c.0.s8 %v2177
        %v2179 = vlaneseq
        %v2180 = vshrl.u32 %v2179, 7
        %v2181 = vsub.s32 %v2178, %v2180
        %v2182 = vrot.slane %v2166, %v2181
        %v2184 = vunpack.c.l.s4 1966171168
        %v2185 = vunpack.c.0.s8 %v2184
        %v2186 = vlaneseq
        %v2187 = vshrl.u32 %v2186, 7
        %v2188 = vsub.s32 %v2185, %v2187
        %v2189 = vrot.slane %v2167, %v2188
        %v2191 = vunpack.c.l.s4 1966171168
        %v2192 = vunpack.c.0.s8 %v2191
        %v2193 = vlaneseq
        %v2194 = vshrl.u32 %v2193, 7
        %v2195 = vsub.s32 %v2192, %v2194
        %v2196 = vrot.slane %v2168, %v2195
        %v2197 = vcombine.low %v2175, %v2182
        %v2198 = vcombine.low %v2189, %v2196
        %v2200 = vunpack.c.l.s4 1966171168
        %v2201 = vunpack.c.0.s8 %v2200
        %v2202 = vlaneseq
        %v2203 = vshrl.u32 %v2202, 7
        %v2204 = vsub.s32 %v2201, %v2203
        %v2205 = vrot.slane %v2197, %v2204
        %v2207 = vunpack.c.l.s4 1966171168
        %v2208 = vunpack.c.0.s8 %v2207
        %v2209 = vlaneseq
        %v2210 = vshrl.u32 %v2209, 7
        %v2211 = vsub.s32 %v2208, %v2210
        %v2212 = vrot.slane %v2198, %v2211
        %v2213 = vcombine.low %v2205, %v2212
        %v2215 = vunpack.c.l.s4 1966171168
        %v2216 = vunpack.c.0.s8 %v2215
        %v2217 = vlaneseq
        %v2218 = vshrl.u32 %v2217, 7
        %v2219 = vsub.s32 %v2216, %v2218
        %v2220 = vrot.slane %v2029, %v2219
        %v2222 = vunpack.c.l.s4 1966171168
        %v2223 = vunpack.c.0.s8 %v2222
        %v2224 = vlaneseq
        %v2225 = vshrl.u32 %v2224, 7
        %v2226 = vsub.s32 %v2223, %v2225
        %v2227 = vrot.slane %v2220, %v2226
        %v2228 = vcombine.low %v2031, %v2033
        %v2229 = vcombine.low %v2035, %v2037
        %v2230 = vcombine.low %v2039, %v2041
        %v2231 = vcombine.low %v2043, %v2045
        %v2233 = vunpack.c.l.s4 1966171168
        %v2234 = vunpack.c.0.s8 %v2233
        %v2235 = vlaneseq
        %v2236 = vshrl.u32 %v2235, 7
        %v2237 = vsub.s32 %v2234, %v2236
        %v2238 = vrot.slane %v2228, %v2237
        %v2240 = vunpack.c.l.s4 1966171168
        %v2241 = vunpack.c.0.s8 %v2240
        %v2242 = vlaneseq
        %v2243 = vshrl.u32 %v2242, 7
        %v2244 = vsub.s32 %v2241, %v2243
        %v2245 = vrot.slane %v2229, %v2244
        %v2247 = vunpack.c.l.s4 1966171168
        %v2248 = vunpack.c.0.s8 %v2247
        %v2249 = vlaneseq
        %v2250 = vshrl.u32 %v2249, 7
        %v2251 = vsub.s32 %v2248, %v2250
        %v2252 = vrot.slane %v2230, %v2251
        %v2254 = vunpack.c.l.s4 1966171168
        %v2255 = vunpack.c.0.s8 %v2254
        %v2256 = vlaneseq
        %v2257 = vshrl.u32 %v2256, 7
        %v2258 = vsub.s32 %v2255, %v2257
        %v2259 = vrot.slane %v2231, %v2258
        %v2260 = vcombine.low %v2238, %v2245
        %v2261 = vcombine.low %v2252, %v2259
        %v2263 = vunpack.c.l.s4 1966171168
        %v2264 = vunpack.c.0.s8 %v2263
        %v2265 = vlaneseq
        %v2266 = vshrl.u32 %v2265, 7
        %v2267 = vsub.s32 %v2264, %v2266
        %v2268 = vrot.slane %v2260, %v2267
        %v2270 = vunpack.c.l.s4 1966171168
        %v2271 = vunpack.c.0.s8 %v2270
        %v2272 = vlaneseq
        %v2273 = vshrl.u32 %v2272, 7
        %v2274 = vsub.s32 %v2271, %v2273
        %v2275 = vrot.slane %v2261, %v2274
        %v2276 = vcombine.low %v2268, %v2275
        %v2278 = vunpack.c.l.s4 1966171168
        %v2279 = vunpack.c.0.s8 %v2278
        %v2280 = vlaneseq
        %v2281 = vshrl.u32 %v2280, 7
        %v2282 = vsub.s32 %v2279, %v2281
        %v2283 = vrot.slane %v2047, %v2282
        %v2285 = vunpack.c.l.s4 1966171168
        %v2286 = vunpack.c.0.s8 %v2285
        %v2287 = vlaneseq
        %v2288 = vshrl.u32 %v2287, 7
        %v2289 = vsub.s32 %v2286, %v2288
        %v2290 = vrot.slane %v2283, %v2289
        %v2291 = vcombine.low %v2049, %v2051
        %v2292 = vcombine.low %v2053, %v2055
        %v2293 = vcombine.low %v2057, %v2059
        %v2294 = vcombine.low %v2061, %v2063
        %v2296 = vunpack.c.l.s4 1966171168
        %v2297 = vunpack.c.0.s8 %v2296
        %v2298 = vlaneseq
        %v2299 = vshrl.u32 %v2298, 7
        %v2300 = vsub.s32 %v2297, %v2299
        %v2301 = vrot.slane %v2291, %v2300
        %v2303 = vunpack.c.l.s4 1966171168
        %v2304 = vunpack.c.0.s8 %v2303
        %v2305 = vlaneseq
        %v2306 = vshrl.u32 %v2305, 7
        %v2307 = vsub.s32 %v2304, %v2306
        %v2308 = vrot.slane %v2292, %v2307
        %v2310 = vunpack.c.l.s4 1966171168
        %v2311 = vunpack.c.0.s8 %v2310
        %v2312 = vlaneseq
        %v2313 = vshrl.u32 %v2312, 7
        %v2314 = vsub.s32 %v2311, %v2313
        %v2315 = vrot.slane %v2293, %v2314
        %v2317 = vunpack.c.l.s4 1966171168
        %v2318 = vunpack.c.0.s8 %v2317
        %v2319 = vlaneseq
        %v2320 = vshrl.u32 %v2319, 7
        %v2321 = vsub.s32 %v2318, %v2320
        %v2322 = vrot.slane %v2294, %v2321
        %v2323 = vcombine.low %v2301, %v2308
        %v2324 = vcombine.low %v2315, %v2322
        %v2326 = vunpack.c.l.s4 1966171168
        %v2327 = vunpack.c.0.s8 %v2326
        %v2328 = vlaneseq
        %v2329 = vshrl.u32 %v2328, 7
        %v2330 = vsub.s32 %v2327, %v2329
        %v2331 = vrot.slane %v2323, %v2330
        %v2333 = vunpack.c.l.s4 1966171168
        %v2334 = vunpack.c.0.s8 %v2333
        %v2335 = vlaneseq
        %v2336 = vshrl.u32 %v2335, 7
        %v2337 = vsub.s32 %v2334, %v2336
        %v2338 = vrot.slane %v2324, %v2337
        %v2339 = vcombine.low %v2331, %v2338
        %v2341 = vunpack.c.l.s4 1966171168
        %v2342 = vunpack.c.0.s8 %v2341
        %v2343 = vlaneseq
        %v2344 = vshrl.u32 %v2343, 7
        %v2345 = vsub.s32 %v2342, %v2344
        %v2346 = vrot.slane %v2065, %v2345
        %v2348 = vunpack.c.l.s4 1966171168
        %v2349 = vunpack.c.0.s8 %v2348
        %v2350 = vlaneseq
        %v2351 = vshrl.u32 %v2350, 7
        %v2352 = vsub.s32 %v2349, %v2351
        %v2353 = vrot.slane %v2346, %v2352
        %vm2362 = vcmask 31744
        %v2363 = vsel %vm2362, %v2150, 0.0
        %v2364 = vsel %vm2362, %v2213, 0.0
        %v2365 = vadd.f32 %v2363, %v2364
        %vm2366 = vcmask 24576
        %v2367 = vsel %vm2366, %v2164, 0.0
        %v2368 = vsel %vm2366, %v2227, 0.0
        %v2369 = vadd.f32 %v2367, %v2368
        %v2370 = vsel %vm2362, %v2276, 0.0
        %v2371 = vsel %vm2362, %v2339, 0.0
        %v2372 = vadd.f32 %v2370, %v2371
        %v2373 = vsel %vm2366, %v2290, 0.0
        %v2374 = vsel %vm2366, %v2353, 0.0
        %v2375 = vadd.f32 %v2373, %v2374
        %v2376 = vrcp.pop %v2365
        %v2377 = vrcp.pop %v2369
        %v2378 = vrcp.pop %v2372
        %v2379 = vrcp.pop %v2375
        %v2384 = vcombine.high %v2376, %v2376
        %v2386 = vunpack.c.l.s4 1966171168
        %v2387 = vunpack.c.0.s8 %v2386
        %v2388 = vlaneseq
        %v2389 = vshrl.u32 %v2388, 7
        %v2390 = vsub.s32 %v2387, %v2389
        %v2391 = vrot.slane %v2376, %v2390
        %v2393 = vunpack.c.l.s4 1966171168
        %v2394 = vunpack.c.0.s8 %v2393
        %v2395 = vlaneseq
        %v2396 = vshrl.u32 %v2395, 7
        %v2397 = vsub.s32 %v2394, %v2396
        %v2398 = vrot.slane %v2384, %v2397
        %v2399 = vcombine.high %v2391, %v2391
        %v2400 = vcombine.high %v2398, %v2398
        %v2402 = vunpack.c.l.s4 1966171168
        %v2403 = vunpack.c.0.s8 %v2402
        %v2404 = vlaneseq
        %v2405 = vshrl.u32 %v2404, 7
        %v2406 = vsub.s32 %v2403, %v2405
        %v2407 = vrot.slane %v2391, %v2406
        %v2409 = vunpack.c.l.s4 1966171168
        %v2410 = vunpack.c.0.s8 %v2409
        %v2411 = vlaneseq
        %v2412 = vshrl.u32 %v2411, 7
        %v2413 = vsub.s32 %v2410, %v2412
        %v2414 = vrot.slane %v2398, %v2413
        %v2416 = vunpack.c.l.s4 1966171168
        %v2417 = vunpack.c.0.s8 %v2416
        %v2418 = vlaneseq
        %v2419 = vshrl.u32 %v2418, 7
        %v2420 = vsub.s32 %v2417, %v2419
        %v2421 = vrot.slane %v2399, %v2420
        %v2423 = vunpack.c.l.s4 1966171168
        %v2424 = vunpack.c.0.s8 %v2423
        %v2425 = vlaneseq
        %v2426 = vshrl.u32 %v2425, 7
        %v2427 = vsub.s32 %v2424, %v2426
        %v2428 = vrot.slane %v2400, %v2427
        %v2429 = vcombine.high %v2407, %v2407
        %v2430 = vcombine.high %v2414, %v2414
        %v2431 = vcombine.high %v2421, %v2421
        %v2432 = vcombine.high %v2428, %v2428
        %v2434 = vunpack.c.l.s4 1966171168
        %v2435 = vunpack.c.0.s8 %v2434
        %v2436 = vlaneseq
        %v2437 = vshrl.u32 %v2436, 7
        %v2438 = vsub.s32 %v2435, %v2437
        %v2439 = vrot.slane %v2377, %v2438
        %v2441 = vunpack.c.l.s4 1966171168
        %v2442 = vunpack.c.0.s8 %v2441
        %v2443 = vlaneseq
        %v2444 = vshrl.u32 %v2443, 7
        %v2445 = vsub.s32 %v2442, %v2444
        %v2446 = vrot.slane %v2439, %v2445
        %v2447 = vcombine.high %v2378, %v2378
        %v2449 = vunpack.c.l.s4 1966171168
        %v2450 = vunpack.c.0.s8 %v2449
        %v2451 = vlaneseq
        %v2452 = vshrl.u32 %v2451, 7
        %v2453 = vsub.s32 %v2450, %v2452
        %v2454 = vrot.slane %v2378, %v2453
        %v2456 = vunpack.c.l.s4 1966171168
        %v2457 = vunpack.c.0.s8 %v2456
        %v2458 = vlaneseq
        %v2459 = vshrl.u32 %v2458, 7
        %v2460 = vsub.s32 %v2457, %v2459
        %v2461 = vrot.slane %v2447, %v2460
        %v2462 = vcombine.high %v2454, %v2454
        %v2463 = vcombine.high %v2461, %v2461
        %v2465 = vunpack.c.l.s4 1966171168
        %v2466 = vunpack.c.0.s8 %v2465
        %v2467 = vlaneseq
        %v2468 = vshrl.u32 %v2467, 7
        %v2469 = vsub.s32 %v2466, %v2468
        %v2470 = vrot.slane %v2454, %v2469
        %v2472 = vunpack.c.l.s4 1966171168
        %v2473 = vunpack.c.0.s8 %v2472
        %v2474 = vlaneseq
        %v2475 = vshrl.u32 %v2474, 7
        %v2476 = vsub.s32 %v2473, %v2475
        %v2477 = vrot.slane %v2461, %v2476
        %v2479 = vunpack.c.l.s4 1966171168
        %v2480 = vunpack.c.0.s8 %v2479
        %v2481 = vlaneseq
        %v2482 = vshrl.u32 %v2481, 7
        %v2483 = vsub.s32 %v2480, %v2482
        %v2484 = vrot.slane %v2462, %v2483
        %v2486 = vunpack.c.l.s4 1966171168
        %v2487 = vunpack.c.0.s8 %v2486
        %v2488 = vlaneseq
        %v2489 = vshrl.u32 %v2488, 7
        %v2490 = vsub.s32 %v2487, %v2489
        %v2491 = vrot.slane %v2463, %v2490
        %v2492 = vcombine.high %v2470, %v2470
        %v2493 = vcombine.high %v2477, %v2477
        %v2494 = vcombine.high %v2484, %v2484
        %v2495 = vcombine.high %v2491, %v2491
        %v2497 = vunpack.c.l.s4 1966171168
        %v2498 = vunpack.c.0.s8 %v2497
        %v2499 = vlaneseq
        %v2500 = vshrl.u32 %v2499, 7
        %v2501 = vsub.s32 %v2498, %v2500
        %v2502 = vrot.slane %v2379, %v2501
        %v2504 = vunpack.c.l.s4 1966171168
        %v2505 = vunpack.c.0.s8 %v2504
        %v2506 = vlaneseq
        %v2507 = vshrl.u32 %v2506, 7
        %v2508 = vsub.s32 %v2505, %v2507
        %v2509 = vrot.slane %v2502, %v2508
        %v2528 = vmul.f32 %v1995, %v2407
        %v2529 = vmul.f32 %v1997, %v2421
        %v2530 = vmul.f32 %v1999, %v2429
        %v2531 = vmul.f32 %v2001, %v2431
        %v2532 = vmul.f32 %v2003, %v2414
        %v2533 = vmul.f32 %v2005, %v2428
        %v2534 = vmul.f32 %v2007, %v2430
        %v2535 = vmul.f32 %v2009, %v2432
        %v2536 = vmul.f32 %v2011, %v2446
        %v2537 = vmul.f32 %v2013, %v2407
        %v2538 = vmul.f32 %v2015, %v2421
        %v2539 = vmul.f32 %v2017, %v2429
        %v2540 = vmul.f32 %v2019, %v2431
        %v2541 = vmul.f32 %v2021, %v2414
        %v2542 = vmul.f32 %v2023, %v2428
        %v2543 = vmul.f32 %v2025, %v2430
        %v2544 = vmul.f32 %v2027, %v2432
        %v2545 = vmul.f32 %v2029, %v2446
        %v2546 = vmul.f32 %v2031, %v2470
        %v2547 = vmul.f32 %v2033, %v2484
        %v2548 = vmul.f32 %v2035, %v2492
        %v2549 = vmul.f32 %v2037, %v2494
        %v2550 = vmul.f32 %v2039, %v2477
        %v2551 = vmul.f32 %v2041, %v2491
        %v2552 = vmul.f32 %v2043, %v2493
        %v2553 = vmul.f32 %v2045, %v2495
        %v2554 = vmul.f32 %v2047, %v2509
        %v2555 = vmul.f32 %v2049, %v2470
        %v2556 = vmul.f32 %v2051, %v2484
        %v2557 = vmul.f32 %v2053, %v2492
        %v2558 = vmul.f32 %v2055, %v2494
        %v2559 = vmul.f32 %v2057, %v2477
        %v2560 = vmul.f32 %v2059, %v2491
        %v2561 = vmul.f32 %v2061, %v2493
        %v2562 = vmul.f32 %v2063, %v2495
        %v2563 = vmul.f32 %v2065, %v2509
        %v2600 = vcombine.low %v2528, %v2529
        %v2601 = vcombine.low %v2530, %v2531
        %v2602 = vcombine.low %v2532, %v2533
        %v2603 = vcombine.low %v2534, %v2535
        %v2605 = vunpack.c.l.s4 1966171168
        %v2606 = vunpack.c.0.s8 %v2605
        %v2607 = vlaneseq
        %v2608 = vshrl.u32 %v2607, 7
        %v2609 = vsub.s32 %v2606, %v2608
        %v2610 = vrot.slane %v2600, %v2609
        %v2612 = vunpack.c.l.s4 1966171168
        %v2613 = vunpack.c.0.s8 %v2612
        %v2614 = vlaneseq
        %v2615 = vshrl.u32 %v2614, 7
        %v2616 = vsub.s32 %v2613, %v2615
        %v2617 = vrot.slane %v2601, %v2616
        %v2619 = vunpack.c.l.s4 1966171168
        %v2620 = vunpack.c.0.s8 %v2619
        %v2621 = vlaneseq
        %v2622 = vshrl.u32 %v2621, 7
        %v2623 = vsub.s32 %v2620, %v2622
        %v2624 = vrot.slane %v2602, %v2623
        %v2626 = vunpack.c.l.s4 1966171168
        %v2627 = vunpack.c.0.s8 %v2626
        %v2628 = vlaneseq
        %v2629 = vshrl.u32 %v2628, 7
        %v2630 = vsub.s32 %v2627, %v2629
        %v2631 = vrot.slane %v2603, %v2630
        %v2632 = vcombine.low %v2610, %v2617
        %v2633 = vcombine.low %v2624, %v2631
        %v2635 = vunpack.c.l.s4 1966171168
        %v2636 = vunpack.c.0.s8 %v2635
        %v2637 = vlaneseq
        %v2638 = vshrl.u32 %v2637, 7
        %v2639 = vsub.s32 %v2636, %v2638
        %v2640 = vrot.slane %v2632, %v2639
        %v2642 = vunpack.c.l.s4 1966171168
        %v2643 = vunpack.c.0.s8 %v2642
        %v2644 = vlaneseq
        %v2645 = vshrl.u32 %v2644, 7
        %v2646 = vsub.s32 %v2643, %v2645
        %v2647 = vrot.slane %v2633, %v2646
        %v2648 = vcombine.low %v2640, %v2647
        %v2649 = vcombine.low %v2536, %v2537
        %v2650 = vcombine.low %v2538, %v2539
        %v2651 = vcombine.low %v2540, %v2541
        %v2652 = vcombine.low %v2542, %v2543
        %v2654 = vunpack.c.l.s4 1966171168
        %v2655 = vunpack.c.0.s8 %v2654
        %v2656 = vlaneseq
        %v2657 = vshrl.u32 %v2656, 7
        %v2658 = vsub.s32 %v2655, %v2657
        %v2659 = vrot.slane %v2649, %v2658
        %v2661 = vunpack.c.l.s4 1966171168
        %v2662 = vunpack.c.0.s8 %v2661
        %v2663 = vlaneseq
        %v2664 = vshrl.u32 %v2663, 7
        %v2665 = vsub.s32 %v2662, %v2664
        %v2666 = vrot.slane %v2650, %v2665
        %v2668 = vunpack.c.l.s4 1966171168
        %v2669 = vunpack.c.0.s8 %v2668
        %v2670 = vlaneseq
        %v2671 = vshrl.u32 %v2670, 7
        %v2672 = vsub.s32 %v2669, %v2671
        %v2673 = vrot.slane %v2651, %v2672
        %v2675 = vunpack.c.l.s4 1966171168
        %v2676 = vunpack.c.0.s8 %v2675
        %v2677 = vlaneseq
        %v2678 = vshrl.u32 %v2677, 7
        %v2679 = vsub.s32 %v2676, %v2678
        %v2680 = vrot.slane %v2652, %v2679
        %v2681 = vcombine.low %v2659, %v2666
        %v2682 = vcombine.low %v2673, %v2680
        %v2684 = vunpack.c.l.s4 1966171168
        %v2685 = vunpack.c.0.s8 %v2684
        %v2686 = vlaneseq
        %v2687 = vshrl.u32 %v2686, 7
        %v2688 = vsub.s32 %v2685, %v2687
        %v2689 = vrot.slane %v2681, %v2688
        %v2691 = vunpack.c.l.s4 1966171168
        %v2692 = vunpack.c.0.s8 %v2691
        %v2693 = vlaneseq
        %v2694 = vshrl.u32 %v2693, 7
        %v2695 = vsub.s32 %v2692, %v2694
        %v2696 = vrot.slane %v2682, %v2695
        %v2697 = vcombine.low %v2689, %v2696
        %v2698 = vcombine.low %v2544, %v2545
        %v2699 = vcombine.low %v2546, %v2547
        %v2700 = vcombine.low %v2548, %v2549
        %v2701 = vcombine.low %v2550, %v2551
        %v2703 = vunpack.c.l.s4 1966171168
        %v2704 = vunpack.c.0.s8 %v2703
        %v2705 = vlaneseq
        %v2706 = vshrl.u32 %v2705, 7
        %v2707 = vsub.s32 %v2704, %v2706
        %v2708 = vrot.slane %v2698, %v2707
        %v2710 = vunpack.c.l.s4 1966171168
        %v2711 = vunpack.c.0.s8 %v2710
        %v2712 = vlaneseq
        %v2713 = vshrl.u32 %v2712, 7
        %v2714 = vsub.s32 %v2711, %v2713
        %v2715 = vrot.slane %v2699, %v2714
        %v2717 = vunpack.c.l.s4 1966171168
        %v2718 = vunpack.c.0.s8 %v2717
        %v2719 = vlaneseq
        %v2720 = vshrl.u32 %v2719, 7
        %v2721 = vsub.s32 %v2718, %v2720
        %v2722 = vrot.slane %v2700, %v2721
        %v2724 = vunpack.c.l.s4 1966171168
        %v2725 = vunpack.c.0.s8 %v2724
        %v2726 = vlaneseq
        %v2727 = vshrl.u32 %v2726, 7
        %v2728 = vsub.s32 %v2725, %v2727
        %v2729 = vrot.slane %v2701, %v2728
        %v2730 = vcombine.low %v2708, %v2715
        %v2731 = vcombine.low %v2722, %v2729
        %v2733 = vunpack.c.l.s4 1966171168
        %v2734 = vunpack.c.0.s8 %v2733
        %v2735 = vlaneseq
        %v2736 = vshrl.u32 %v2735, 7
        %v2737 = vsub.s32 %v2734, %v2736
        %v2738 = vrot.slane %v2730, %v2737
        %v2740 = vunpack.c.l.s4 1966171168
        %v2741 = vunpack.c.0.s8 %v2740
        %v2742 = vlaneseq
        %v2743 = vshrl.u32 %v2742, 7
        %v2744 = vsub.s32 %v2741, %v2743
        %v2745 = vrot.slane %v2731, %v2744
        %v2746 = vcombine.low %v2738, %v2745
        %v2747 = vcombine.low %v2552, %v2553
        %v2748 = vcombine.low %v2554, %v2555
        %v2749 = vcombine.low %v2556, %v2557
        %v2750 = vcombine.low %v2558, %v2559
        %v2752 = vunpack.c.l.s4 1966171168
        %v2753 = vunpack.c.0.s8 %v2752
        %v2754 = vlaneseq
        %v2755 = vshrl.u32 %v2754, 7
        %v2756 = vsub.s32 %v2753, %v2755
        %v2757 = vrot.slane %v2747, %v2756
        %v2759 = vunpack.c.l.s4 1966171168
        %v2760 = vunpack.c.0.s8 %v2759
        %v2761 = vlaneseq
        %v2762 = vshrl.u32 %v2761, 7
        %v2763 = vsub.s32 %v2760, %v2762
        %v2764 = vrot.slane %v2748, %v2763
        %v2766 = vunpack.c.l.s4 1966171168
        %v2767 = vunpack.c.0.s8 %v2766
        %v2768 = vlaneseq
        %v2769 = vshrl.u32 %v2768, 7
        %v2770 = vsub.s32 %v2767, %v2769
        %v2771 = vrot.slane %v2749, %v2770
        %v2773 = vunpack.c.l.s4 1966171168
        %v2774 = vunpack.c.0.s8 %v2773
        %v2775 = vlaneseq
        %v2776 = vshrl.u32 %v2775, 7
        %v2777 = vsub.s32 %v2774, %v2776
        %v2778 = vrot.slane %v2750, %v2777
        %v2779 = vcombine.low %v2757, %v2764
        %v2780 = vcombine.low %v2771, %v2778
        %v2782 = vunpack.c.l.s4 1966171168
        %v2783 = vunpack.c.0.s8 %v2782
        %v2784 = vlaneseq
        %v2785 = vshrl.u32 %v2784, 7
        %v2786 = vsub.s32 %v2783, %v2785
        %v2787 = vrot.slane %v2779, %v2786
        %v2789 = vunpack.c.l.s4 1966171168
        %v2790 = vunpack.c.0.s8 %v2789
        %v2791 = vlaneseq
        %v2792 = vshrl.u32 %v2791, 7
        %v2793 = vsub.s32 %v2790, %v2792
        %v2794 = vrot.slane %v2780, %v2793
        %v2795 = vcombine.low %v2787, %v2794
        %v2796 = vcombine.low %v2560, %v2561
        %v2797 = vcombine.low %v2562, %v2563
        %v2799 = vunpack.c.l.s4 1966171168
        %v2800 = vunpack.c.0.s8 %v2799
        %v2801 = vlaneseq
        %v2802 = vshrl.u32 %v2801, 7
        %v2803 = vsub.s32 %v2800, %v2802
        %v2804 = vrot.slane %v2796, %v2803
        %v2806 = vunpack.c.l.s4 1966171168
        %v2807 = vunpack.c.0.s8 %v2806
        %v2808 = vlaneseq
        %v2809 = vshrl.u32 %v2808, 7
        %v2810 = vsub.s32 %v2807, %v2809
        %v2811 = vrot.slane %v2797, %v2810
        %v2812 = vcombine.low %v2804, %v2811
        %v2814 = vunpack.c.l.s4 1966171168
        %v2815 = vunpack.c.0.s8 %v2814
        %v2816 = vlaneseq
        %v2817 = vshrl.u32 %v2816, 7
        %v2818 = vsub.s32 %v2815, %v2817
        %v2819 = vrot.slane %v2812, %v2818
        %v2825 = vpack.c.bf16 %v2697, %v2648
        %v2826 = vpack.c.bf16 %v2795, %v2746
        %v2827 = vpack.c.bf16 %v2819, %v2819
        %v2828 = vld [vmem:[%s6] sm:$0x3]
        %v2830 = vsel %vm2362, %v2825, 0
        %v2833 = vsel %vm2362, %v2826, 0
        %v2836 = vsel %vm2362, %v2827, 0
        %vm2838 = vcmask 1041408
        %v2840 = vsel %vm2838, %v2828, 0
        %2842 = vmatprep.subr.bf16.mxu0 0
        %2843 = vmatpush1.bf16.msra.mxu0 %v2840
        %2844 = vmatprep.subr.bf16.mxu0 0
        %2845 = vmatpush1.bf16.msra.mxu0 0
        %2846 = vmatprep.subr.bf16.mxu0 0
        %2847 = vmatpush1.bf16.msra.mxu0 0
        %2848 = vmatprep.subr.bf16.mxu0 0
        %2849 = vmatpush1.bf16.msra.mxu0 0
        %2850 = vmatprep.subr.bf16.mxu0 0
        %2851 = vmatpush1.bf16.msra.mxu0 0
        %2852 = vmatprep.subr.bf16.mxu0 0
        %2853 = vmatpush1.bf16.msra.mxu0 0
        %2854 = vmatprep.subr.bf16.mxu0 0
        %2855 = vmatpush1.bf16.msra.mxu0 0
        %2856 = vmatprep.subr.bf16.mxu0 0
        %2857 = vmatpush1.bf16.msra.mxu0 0
        %2858 = vmatprep.subr.bf16.mxu0 0
        %2859 = vmatpush1.bf16.msra.mxu0 0
        %2860 = vmatprep.subr.bf16.mxu0 0
        %2861 = vmatpush1.bf16.msra.mxu0 0
        %2862 = vmatprep.subr.bf16.mxu0 0
        %2863 = vmatpush1.bf16.msra.mxu0 0
        %2864 = vmatprep.subr.bf16.mxu0 0
        %2865 = vmatpush1.bf16.msra.mxu0 0
        %2866 = vmatprep.subr.bf16.mxu0 0
        %2867 = vmatpush1.bf16.msra.mxu0 0
        %2868 = vmatprep.subr.bf16.mxu0 0
        %2869 = vmatpush1.bf16.msra.mxu0 0
        %2870 = vmatprep.subr.bf16.mxu0 0
        %2871 = vmatpush1.bf16.msra.mxu0 0
        %2872 = vmatprep.subr.bf16.mxu0 0
        %2873 = vmatpush1.bf16.msra.mxu0 0
        %2874 = vmatprep.mubr.bf16.mxu0 0
        %2875 = vmatmul.mubr.bf16.gmra.mrb[0].mxu0 %v2830
        %v2876 = vpop.f32.mrb[0].mxu0
        %v2877 = vadd.f32 0.0, %v2876
        %v2878 = vpop.f32.mrb[0].mxu0
        %v2879 = vpop.f32.mrb[0].mxu0
        %v2880 = vadd.f32 0.0, %v2879
        %v2881 = vpop.f32.mrb[0].mxu0
        %2882 = vmatprep.mubr.bf16.mxu0 0
        %2883 = vmatmul.mubr.bf16.gmra.mrb[0].mxu0 %v2833
        %v2884 = vpop.f32.mrb[0].mxu0
        %v2885 = vadd.f32 0.0, %v2884
        %v2886 = vpop.f32.mrb[0].mxu0
        %v2887 = vpop.f32.mrb[0].mxu0
        %v2888 = vadd.f32 0.0, %v2887
        %v2889 = vpop.f32.mrb[0].mxu0
        %2890 = vmatprep.mubr.bf16.mxu0 0
        %2891 = vmatmul.mubr.bf16.gmra.mrb[0].mxu0 %v2836
        %v2892 = vpop.f32.mrb[0].mxu0
        %v2893 = vadd.f32 0.0, %v2892
        %v2894 = vpop.f32.mrb[0].mxu0
        %v2895 = vpop.f32.mrb[0].mxu0
        %v2896 = vpop.f32.mrb[0].mxu0
        %2897 = vdwg.mxu0
        %v2903 = vcombine.high %v2877, %v2877
        %v2905 = vunpack.c.l.s4 1966171168
        %v2906 = vunpack.c.0.s8 %v2905
        %v2907 = vlaneseq
        %v2908 = vshrl.u32 %v2907, 7
        %v2909 = vsub.s32 %v2906, %v2908
        %v2910 = vrot.slane %v2877, %v2909
        %v2912 = vunpack.c.l.s4 1966171168
        %v2913 = vunpack.c.0.s8 %v2912
        %v2914 = vlaneseq
        %v2915 = vshrl.u32 %v2914, 7
        %v2916 = vsub.s32 %v2913, %v2915
        %v2917 = vrot.slane %v2903, %v2916
        %v2918 = vcombine.high %v2910, %v2910
        %v2919 = vcombine.high %v2917, %v2917
        %v2921 = vunpack.c.l.s4 1966171168
        %v2922 = vunpack.c.0.s8 %v2921
        %v2923 = vlaneseq
        %v2924 = vshrl.u32 %v2923, 7
        %v2925 = vsub.s32 %v2922, %v2924
        %v2926 = vrot.slane %v2910, %v2925
        %v2928 = vunpack.c.l.s4 1966171168
        %v2929 = vunpack.c.0.s8 %v2928
        %v2930 = vlaneseq
        %v2931 = vshrl.u32 %v2930, 7
        %v2932 = vsub.s32 %v2929, %v2931
        %v2933 = vrot.slane %v2917, %v2932
        %v2935 = vunpack.c.l.s4 1966171168
        %v2936 = vunpack.c.0.s8 %v2935
        %v2937 = vlaneseq
        %v2938 = vshrl.u32 %v2937, 7
        %v2939 = vsub.s32 %v2936, %v2938
        %v2940 = vrot.slane %v2918, %v2939
        %v2942 = vunpack.c.l.s4 1966171168
        %v2943 = vunpack.c.0.s8 %v2942
        %v2944 = vlaneseq
        %v2945 = vshrl.u32 %v2944, 7
        %v2946 = vsub.s32 %v2943, %v2945
        %v2947 = vrot.slane %v2919, %v2946
        %v2948 = vcombine.high %v2926, %v2926
        %v2949 = vcombine.high %v2933, %v2933
        %v2950 = vcombine.high %v2940, %v2940
        %v2951 = vcombine.high %v2947, %v2947
        %v2952 = vcombine.high %v2880, %v2880
        %v2954 = vunpack.c.l.s4 1966171168
        %v2955 = vunpack.c.0.s8 %v2954
        %v2956 = vlaneseq
        %v2957 = vshrl.u32 %v2956, 7
        %v2958 = vsub.s32 %v2955, %v2957
        %v2959 = vrot.slane %v2880, %v2958
        %v2961 = vunpack.c.l.s4 1966171168
        %v2962 = vunpack.c.0.s8 %v2961
        %v2963 = vlaneseq
        %v2964 = vshrl.u32 %v2963, 7
        %v2965 = vsub.s32 %v2962, %v2964
        %v2966 = vrot.slane %v2952, %v2965
        %v2967 = vcombine.high %v2959, %v2959
        %v2968 = vcombine.high %v2966, %v2966
        %v2970 = vunpack.c.l.s4 1966171168
        %v2971 = vunpack.c.0.s8 %v2970
        %v2972 = vlaneseq
        %v2973 = vshrl.u32 %v2972, 7
        %v2974 = vsub.s32 %v2971, %v2973
        %v2975 = vrot.slane %v2959, %v2974
        %v2977 = vunpack.c.l.s4 1966171168
        %v2978 = vunpack.c.0.s8 %v2977
        %v2979 = vlaneseq
        %v2980 = vshrl.u32 %v2979, 7
        %v2981 = vsub.s32 %v2978, %v2980
        %v2982 = vrot.slane %v2966, %v2981
        %v2984 = vunpack.c.l.s4 1966171168
        %v2985 = vunpack.c.0.s8 %v2984
        %v2986 = vlaneseq
        %v2987 = vshrl.u32 %v2986, 7
        %v2988 = vsub.s32 %v2985, %v2987
        %v2989 = vrot.slane %v2967, %v2988
        %v2991 = vunpack.c.l.s4 1966171168
        %v2992 = vunpack.c.0.s8 %v2991
        %v2993 = vlaneseq
        %v2994 = vshrl.u32 %v2993, 7
        %v2995 = vsub.s32 %v2992, %v2994
        %v2996 = vrot.slane %v2968, %v2995
        %v2997 = vcombine.high %v2975, %v2975
        %v2998 = vcombine.high %v2982, %v2982
        %v2999 = vcombine.high %v2989, %v2989
        %v3000 = vcombine.high %v2996, %v2996
        %v3001 = vcombine.high %v2885, %v2885
        %v3003 = vunpack.c.l.s4 1966171168
        %v3004 = vunpack.c.0.s8 %v3003
        %v3005 = vlaneseq
        %v3006 = vshrl.u32 %v3005, 7
        %v3007 = vsub.s32 %v3004, %v3006
        %v3008 = vrot.slane %v2885, %v3007
        %v3010 = vunpack.c.l.s4 1966171168
        %v3011 = vunpack.c.0.s8 %v3010
        %v3012 = vlaneseq
        %v3013 = vshrl.u32 %v3012, 7
        %v3014 = vsub.s32 %v3011, %v3013
        %v3015 = vrot.slane %v3001, %v3014
        %v3016 = vcombine.high %v3008, %v3008
        %v3017 = vcombine.high %v3015, %v3015
        %v3019 = vunpack.c.l.s4 1966171168
        %v3020 = vunpack.c.0.s8 %v3019
        %v3021 = vlaneseq
        %v3022 = vshrl.u32 %v3021, 7
        %v3023 = vsub.s32 %v3020, %v3022
        %v3024 = vrot.slane %v3008, %v3023
        %v3026 = vunpack.c.l.s4 1966171168
        %v3027 = vunpack.c.0.s8 %v3026
        %v3028 = vlaneseq
        %v3029 = vshrl.u32 %v3028, 7
        %v3030 = vsub.s32 %v3027, %v3029
        %v3031 = vrot.slane %v3015, %v3030
        %v3033 = vunpack.c.l.s4 1966171168
        %v3034 = vunpack.c.0.s8 %v3033
        %v3035 = vlaneseq
        %v3036 = vshrl.u32 %v3035, 7
        %v3037 = vsub.s32 %v3034, %v3036
        %v3038 = vrot.slane %v3016, %v3037
        %v3040 = vunpack.c.l.s4 1966171168
        %v3041 = vunpack.c.0.s8 %v3040
        %v3042 = vlaneseq
        %v3043 = vshrl.u32 %v3042, 7
        %v3044 = vsub.s32 %v3041, %v3043
        %v3045 = vrot.slane %v3017, %v3044
        %v3046 = vcombine.high %v3024, %v3024
        %v3047 = vcombine.high %v3031, %v3031
        %v3048 = vcombine.high %v3038, %v3038
        %v3049 = vcombine.high %v3045, %v3045
        %v3050 = vcombine.high %v2888, %v2888
        %v3052 = vunpack.c.l.s4 1966171168
        %v3053 = vunpack.c.0.s8 %v3052
        %v3054 = vlaneseq
        %v3055 = vshrl.u32 %v3054, 7
        %v3056 = vsub.s32 %v3053, %v3055
        %v3057 = vrot.slane %v2888, %v3056
        %v3059 = vunpack.c.l.s4 1966171168
        %v3060 = vunpack.c.0.s8 %v3059
        %v3061 = vlaneseq
        %v3062 = vshrl.u32 %v3061, 7
        %v3063 = vsub.s32 %v3060, %v3062
        %v3064 = vrot.slane %v3050, %v3063
        %v3065 = vcombine.high %v3057, %v3057
        %v3066 = vcombine.high %v3064, %v3064
        %v3068 = vunpack.c.l.s4 1966171168
        %v3069 = vunpack.c.0.s8 %v3068
        %v3070 = vlaneseq
        %v3071 = vshrl.u32 %v3070, 7
        %v3072 = vsub.s32 %v3069, %v3071
        %v3073 = vrot.slane %v3057, %v3072
        %v3075 = vunpack.c.l.s4 1966171168
        %v3076 = vunpack.c.0.s8 %v3075
        %v3077 = vlaneseq
        %v3078 = vshrl.u32 %v3077, 7
        %v3079 = vsub.s32 %v3076, %v3078
        %v3080 = vrot.slane %v3064, %v3079
        %v3082 = vunpack.c.l.s4 1966171168
        %v3083 = vunpack.c.0.s8 %v3082
        %v3084 = vlaneseq
        %v3085 = vshrl.u32 %v3084, 7
        %v3086 = vsub.s32 %v3083, %v3085
        %v3087 = vrot.slane %v3065, %v3086
        %v3089 = vunpack.c.l.s4 1966171168
        %v3090 = vunpack.c.0.s8 %v3089
        %v3091 = vlaneseq
        %v3092 = vshrl.u32 %v3091, 7
        %v3093 = vsub.s32 %v3090, %v3092
        %v3094 = vrot.slane %v3066, %v3093
        %v3095 = vcombine.high %v3073, %v3073
        %v3096 = vcombine.high %v3080, %v3080
        %v3097 = vcombine.high %v3087, %v3087
        %v3098 = vcombine.high %v3094, %v3094
        %v3100 = vunpack.c.l.s4 1966171168
        %v3101 = vunpack.c.0.s8 %v3100
        %v3102 = vlaneseq
        %v3103 = vshrl.u32 %v3102, 7
        %v3104 = vsub.s32 %v3101, %v3103
        %v3105 = vrot.slane %v2893, %v3104
        %v3106 = vcombine.high %v3105, %v3105
        %v3108 = vunpack.c.l.s4 1966171168
        %v3109 = vunpack.c.0.s8 %v3108
        %v3110 = vlaneseq
        %v3111 = vshrl.u32 %v3110, 7
        %v3112 = vsub.s32 %v3109, %v3111
        %v3113 = vrot.slane %v3105, %v3112
        %v3115 = vunpack.c.l.s4 1966171168
        %v3116 = vunpack.c.0.s8 %v3115
        %v3117 = vlaneseq
        %v3118 = vshrl.u32 %v3117, 7
        %v3119 = vsub.s32 %v3116, %v3118
        %v3120 = vrot.slane %v3106, %v3119
        %v3121 = vcombine.high %v3113, %v3113
        %v3122 = vcombine.high %v3120, %v3120
        %3159 = vrot.lane.b32.xlu0 %v1053, 64
        %v3160 = vpop.permute.xlu0 %3159
        %3161 = vrot.lane.b32.xlu0 %v1067, 64
        %v3162 = vpop.permute.xlu0 %3161
        %3163 = vrot.lane.b32.xlu0 %v1075, 64
        %v3164 = vpop.permute.xlu0 %3163
        %3165 = vrot.lane.b32.xlu0 %v1077, 64
        %v3166 = vpop.permute.xlu0 %3165
        %3167 = vrot.lane.b32.xlu0 %v1060, 64
        %v3168 = vpop.permute.xlu0 %3167
        %3169 = vrot.lane.b32.xlu0 %v1074, 64
        %v3170 = vpop.permute.xlu0 %3169
        %3171 = vrot.lane.b32.xlu0 %v1076, 64
        %v3172 = vpop.permute.xlu0 %3171
        %3173 = vrot.lane.b32.xlu0 %v1078, 64
        %v3174 = vpop.permute.xlu0 %3173
        %3175 = vrot.lane.b32.xlu0 %v1102, 64
        %v3176 = vpop.permute.xlu0 %3175
        %3177 = vrot.lane.b32.xlu0 %v1116, 64
        %v3178 = vpop.permute.xlu0 %3177
        %3179 = vrot.lane.b32.xlu0 %v1124, 64
        %v3180 = vpop.permute.xlu0 %3179
        %3181 = vrot.lane.b32.xlu0 %v1126, 64
        %v3182 = vpop.permute.xlu0 %3181
        %3183 = vrot.lane.b32.xlu0 %v1109, 64
        %v3184 = vpop.permute.xlu0 %3183
        %3185 = vrot.lane.b32.xlu0 %v1123, 64
        %v3186 = vpop.permute.xlu0 %3185
        %3187 = vrot.lane.b32.xlu0 %v1125, 64
        %v3188 = vpop.permute.xlu0 %3187
        %3189 = vrot.lane.b32.xlu0 %v1127, 64
        %v3190 = vpop.permute.xlu0 %3189
        %3191 = vrot.lane.b32.xlu0 %v1142, 64
        %v3192 = vpop.permute.xlu0 %3191
        %3193 = vrot.lane.b32.xlu0 %v1149, 64
        %v3194 = vpop.permute.xlu0 %3193
        %v3213 = vmul.f32 %v2926, %v3160
        %v3214 = vmul.f32 %v2940, %v3162
        %v3215 = vmul.f32 %v2948, %v3164
        %v3216 = vmul.f32 %v2950, %v3166
        %v3217 = vmul.f32 %v2933, %v3168
        %v3218 = vmul.f32 %v2947, %v3170
        %v3219 = vmul.f32 %v2949, %v3172
        %v3220 = vmul.f32 %v2951, %v3174
        %v3221 = vmul.f32 %v2975, %v3176
        %v3222 = vmul.f32 %v2989, %v3178
        %v3223 = vmul.f32 %v2997, %v3180
        %v3224 = vmul.f32 %v2999, %v3182
        %v3225 = vmul.f32 %v2982, %v3184
        %v3226 = vmul.f32 %v2996, %v3186
        %v3227 = vmul.f32 %v2998, %v3188
        %v3228 = vmul.f32 %v3000, %v3190
        %v3229 = vmul.f32 %v3024, %v3192
        %v3230 = vmul.f32 %v3038, %v3194
        %v3231 = vmul.f32 %v3046, %v3160
        %v3232 = vmul.f32 %v3048, %v3162
        %v3233 = vmul.f32 %v3031, %v3164
        %v3234 = vmul.f32 %v3045, %v3166
        %v3235 = vmul.f32 %v3047, %v3168
        %v3236 = vmul.f32 %v3049, %v3170
        %v3237 = vmul.f32 %v3073, %v3172
        %v3238 = vmul.f32 %v3087, %v3174
        %v3239 = vmul.f32 %v3095, %v3176
        %v3240 = vmul.f32 %v3097, %v3178
        %v3241 = vmul.f32 %v3080, %v3180
        %v3242 = vmul.f32 %v3094, %v3182
        %v3243 = vmul.f32 %v3096, %v3184
        %v3244 = vmul.f32 %v3098, %v3186
        %v3245 = vmul.f32 %v3113, %v3188
        %v3246 = vmul.f32 %v3120, %v3190
        %v3247 = vmul.f32 %v3121, %v3192
        %v3248 = vmul.f32 %v3122, %v3194
        %v3285 = vcombine.low %v3213, %v3214
        %v3286 = vcombine.low %v3215, %v3216
        %v3287 = vcombine.low %v3217, %v3218
        %v3288 = vcombine.low %v3219, %v3220
        %v3290 = vunpack.c.l.s4 1966171168
        %v3291 = vunpack.c.0.s8 %v3290
        %v3292 = vlaneseq
        %v3293 = vshrl.u32 %v3292, 7
        %v3294 = vsub.s32 %v3291, %v3293
        %v3295 = vrot.slane %v3285, %v3294
        %v3297 = vunpack.c.l.s4 1966171168
        %v3298 = vunpack.c.0.s8 %v3297
        %v3299 = vlaneseq
        %v3300 = vshrl.u32 %v3299, 7
        %v3301 = vsub.s32 %v3298, %v3300
        %v3302 = vrot.slane %v3286, %v3301
        %v3304 = vunpack.c.l.s4 1966171168
        %v3305 = vunpack.c.0.s8 %v3304
        %v3306 = vlaneseq
        %v3307 = vshrl.u32 %v3306, 7
        %v3308 = vsub.s32 %v3305, %v3307
        %v3309 = vrot.slane %v3287, %v3308
        %v3311 = vunpack.c.l.s4 1966171168
        %v3312 = vunpack.c.0.s8 %v3311
        %v3313 = vlaneseq
        %v3314 = vshrl.u32 %v3313, 7
        %v3315 = vsub.s32 %v3312, %v3314
        %v3316 = vrot.slane %v3288, %v3315
        %v3317 = vcombine.low %v3295, %v3302
        %v3318 = vcombine.low %v3309, %v3316
        %v3320 = vunpack.c.l.s4 1966171168
        %v3321 = vunpack.c.0.s8 %v3320
        %v3322 = vlaneseq
        %v3323 = vshrl.u32 %v3322, 7
        %v3324 = vsub.s32 %v3321, %v3323
        %v3325 = vrot.slane %v3317, %v3324
        %v3327 = vunpack.c.l.s4 1966171168
        %v3328 = vunpack.c.0.s8 %v3327
        %v3329 = vlaneseq
        %v3330 = vshrl.u32 %v3329, 7
        %v3331 = vsub.s32 %v3328, %v3330
        %v3332 = vrot.slane %v3318, %v3331
        %v3333 = vcombine.low %v3325, %v3332
        %v3335 = vunpack.c.l.s4 1966171168
        %v3336 = vunpack.c.0.s8 %v3335
        %v3337 = vlaneseq
        %v3338 = vshrl.u32 %v3337, 7
        %v3339 = vsub.s32 %v3336, %v3338
        %v3340 = vrot.slane %v3221, %v3339
        %v3342 = vunpack.c.l.s4 1966171168
        %v3343 = vunpack.c.0.s8 %v3342
        %v3344 = vlaneseq
        %v3345 = vshrl.u32 %v3344, 7
        %v3346 = vsub.s32 %v3343, %v3345
        %v3347 = vrot.slane %v3340, %v3346
        %v3348 = vcombine.low %v3222, %v3223
        %v3349 = vcombine.low %v3224, %v3225
        %v3350 = vcombine.low %v3226, %v3227
        %v3351 = vcombine.low %v3228, %v3229
        %v3353 = vunpack.c.l.s4 1966171168
        %v3354 = vunpack.c.0.s8 %v3353
        %v3355 = vlaneseq
        %v3356 = vshrl.u32 %v3355, 7
        %v3357 = vsub.s32 %v3354, %v3356
        %v3358 = vrot.slane %v3348, %v3357
        %v3360 = vunpack.c.l.s4 1966171168
        %v3361 = vunpack.c.0.s8 %v3360
        %v3362 = vlaneseq
        %v3363 = vshrl.u32 %v3362, 7
        %v3364 = vsub.s32 %v3361, %v3363
        %v3365 = vrot.slane %v3349, %v3364
        %v3367 = vunpack.c.l.s4 1966171168
        %v3368 = vunpack.c.0.s8 %v3367
        %v3369 = vlaneseq
        %v3370 = vshrl.u32 %v3369, 7
        %v3371 = vsub.s32 %v3368, %v3370
        %v3372 = vrot.slane %v3350, %v3371
        %v3374 = vunpack.c.l.s4 1966171168
        %v3375 = vunpack.c.0.s8 %v3374
        %v3376 = vlaneseq
        %v3377 = vshrl.u32 %v3376, 7
        %v3378 = vsub.s32 %v3375, %v3377
        %v3379 = vrot.slane %v3351, %v3378
        %v3380 = vcombine.low %v3358, %v3365
        %v3381 = vcombine.low %v3372, %v3379
        %v3383 = vunpack.c.l.s4 1966171168
        %v3384 = vunpack.c.0.s8 %v3383
        %v3385 = vlaneseq
        %v3386 = vshrl.u32 %v3385, 7
        %v3387 = vsub.s32 %v3384, %v3386
        %v3388 = vrot.slane %v3380, %v3387
        %v3390 = vunpack.c.l.s4 1966171168
        %v3391 = vunpack.c.0.s8 %v3390
        %v3392 = vlaneseq
        %v3393 = vshrl.u32 %v3392, 7
        %v3394 = vsub.s32 %v3391, %v3393
        %v3395 = vrot.slane %v3381, %v3394
        %v3396 = vcombine.low %v3388, %v3395
        %v3398 = vunpack.c.l.s4 1966171168
        %v3399 = vunpack.c.0.s8 %v3398
        %v3400 = vlaneseq
        %v3401 = vshrl.u32 %v3400, 7
        %v3402 = vsub.s32 %v3399, %v3401
        %v3403 = vrot.slane %v3230, %v3402
        %v3405 = vunpack.c.l.s4 1966171168
        %v3406 = vunpack.c.0.s8 %v3405
        %v3407 = vlaneseq
        %v3408 = vshrl.u32 %v3407, 7
        %v3409 = vsub.s32 %v3406, %v3408
        %v3410 = vrot.slane %v3403, %v3409
        %v3411 = vcombine.low %v3231, %v3232
        %v3412 = vcombine.low %v3233, %v3234
        %v3413 = vcombine.low %v3235, %v3236
        %v3414 = vcombine.low %v3237, %v3238
        %v3416 = vunpack.c.l.s4 1966171168
        %v3417 = vunpack.c.0.s8 %v3416
        %v3418 = vlaneseq
        %v3419 = vshrl.u32 %v3418, 7
        %v3420 = vsub.s32 %v3417, %v3419
        %v3421 = vrot.slane %v3411, %v3420
        %v3423 = vunpack.c.l.s4 1966171168
        %v3424 = vunpack.c.0.s8 %v3423
        %v3425 = vlaneseq
        %v3426 = vshrl.u32 %v3425, 7
        %v3427 = vsub.s32 %v3424, %v3426
        %v3428 = vrot.slane %v3412, %v3427
        %v3430 = vunpack.c.l.s4 1966171168
        %v3431 = vunpack.c.0.s8 %v3430
        %v3432 = vlaneseq
        %v3433 = vshrl.u32 %v3432, 7
        %v3434 = vsub.s32 %v3431, %v3433
        %v3435 = vrot.slane %v3413, %v3434
        %v3437 = vunpack.c.l.s4 1966171168
        %v3438 = vunpack.c.0.s8 %v3437
        %v3439 = vlaneseq
        %v3440 = vshrl.u32 %v3439, 7
        %v3441 = vsub.s32 %v3438, %v3440
        %v3442 = vrot.slane %v3414, %v3441
        %v3443 = vcombine.low %v3421, %v3428
        %v3444 = vcombine.low %v3435, %v3442
        %v3446 = vunpack.c.l.s4 1966171168
        %v3447 = vunpack.c.0.s8 %v3446
        %v3448 = vlaneseq
        %v3449 = vshrl.u32 %v3448, 7
        %v3450 = vsub.s32 %v3447, %v3449
        %v3451 = vrot.slane %v3443, %v3450
        %v3453 = vunpack.c.l.s4 1966171168
        %v3454 = vunpack.c.0.s8 %v3453
        %v3455 = vlaneseq
        %v3456 = vshrl.u32 %v3455, 7
        %v3457 = vsub.s32 %v3454, %v3456
        %v3458 = vrot.slane %v3444, %v3457
        %v3459 = vcombine.low %v3451, %v3458
        %v3461 = vunpack.c.l.s4 1966171168
        %v3462 = vunpack.c.0.s8 %v3461
        %v3463 = vlaneseq
        %v3464 = vshrl.u32 %v3463, 7
        %v3465 = vsub.s32 %v3462, %v3464
        %v3466 = vrot.slane %v3239, %v3465
        %v3468 = vunpack.c.l.s4 1966171168
        %v3469 = vunpack.c.0.s8 %v3468
        %v3470 = vlaneseq
        %v3471 = vshrl.u32 %v3470, 7
        %v3472 = vsub.s32 %v3469, %v3471
        %v3473 = vrot.slane %v3466, %v3472
        %v3474 = vcombine.low %v3240, %v3241
        %v3475 = vcombine.low %v3242, %v3243
        %v3476 = vcombine.low %v3244, %v3245
        %v3477 = vcombine.low %v3246, %v3247
        %v3479 = vunpack.c.l.s4 1966171168
        %v3480 = vunpack.c.0.s8 %v3479
        %v3481 = vlaneseq
        %v3482 = vshrl.u32 %v3481, 7
        %v3483 = vsub.s32 %v3480, %v3482
        %v3484 = vrot.slane %v3474, %v3483
        %v3486 = vunpack.c.l.s4 1966171168
        %v3487 = vunpack.c.0.s8 %v3486
        %v3488 = vlaneseq
        %v3489 = vshrl.u32 %v3488, 7
        %v3490 = vsub.s32 %v3487, %v3489
        %v3491 = vrot.slane %v3475, %v3490
        %v3493 = vunpack.c.l.s4 1966171168
        %v3494 = vunpack.c.0.s8 %v3493
        %v3495 = vlaneseq
        %v3496 = vshrl.u32 %v3495, 7
        %v3497 = vsub.s32 %v3494, %v3496
        %v3498 = vrot.slane %v3476, %v3497
        %v3500 = vunpack.c.l.s4 1966171168
        %v3501 = vunpack.c.0.s8 %v3500
        %v3502 = vlaneseq
        %v3503 = vshrl.u32 %v3502, 7
        %v3504 = vsub.s32 %v3501, %v3503
        %v3505 = vrot.slane %v3477, %v3504
        %v3506 = vcombine.low %v3484, %v3491
        %v3507 = vcombine.low %v3498, %v3505
        %v3509 = vunpack.c.l.s4 1966171168
        %v3510 = vunpack.c.0.s8 %v3509
        %v3511 = vlaneseq
        %v3512 = vshrl.u32 %v3511, 7
        %v3513 = vsub.s32 %v3510, %v3512
        %v3514 = vrot.slane %v3506, %v3513
        %v3516 = vunpack.c.l.s4 1966171168
        %v3517 = vunpack.c.0.s8 %v3516
        %v3518 = vlaneseq
        %v3519 = vshrl.u32 %v3518, 7
        %v3520 = vsub.s32 %v3517, %v3519
        %v3521 = vrot.slane %v3507, %v3520
        %v3522 = vcombine.low %v3514, %v3521
        %v3524 = vunpack.c.l.s4 1966171168
        %v3525 = vunpack.c.0.s8 %v3524
        %v3526 = vlaneseq
        %v3527 = vshrl.u32 %v3526, 7
        %v3528 = vsub.s32 %v3525, %v3527
        %v3529 = vrot.slane %v3248, %v3528
        %v3531 = vunpack.c.l.s4 1966171168
        %v3532 = vunpack.c.0.s8 %v3531
        %v3533 = vlaneseq
        %v3534 = vshrl.u32 %v3533, 7
        %v3535 = vsub.s32 %v3532, %v3534
        %v3536 = vrot.slane %v3529, %v3535
        %v3545 = vsel %vm972, %v3333, 0.0
        %v3546 = vsel %vm972, %v3396, 0.0
        %v3547 = vadd.f32 %v3545, %v3546
        %vm3548 = vcmask 253952
        %v3549 = vsel %vm3548, %v3347, 0.0
        %v3550 = vsel %vm3548, %v3410, 0.0
        %v3551 = vadd.f32 %v3549, %v3550
        %v3552 = vsel %vm972, %v3459, 0.0
        %v3553 = vsel %vm972, %v3522, 0.0
        %v3554 = vadd.f32 %v3552, %v3553
        %v3555 = vsel %vm3548, %v3473, 0.0
        %v3556 = vsel %vm3548, %v3536, 0.0
        %v3557 = vadd.f32 %v3555, %v3556
        %v3562 = vcombine.high %v3547, %v3547
        %v3564 = vunpack.c.l.s4 1966171168
        %v3565 = vunpack.c.0.s8 %v3564
        %v3566 = vlaneseq
        %v3567 = vshrl.u32 %v3566, 7
        %v3568 = vsub.s32 %v3565, %v3567
        %v3569 = vrot.slane %v3547, %v3568
        %v3571 = vunpack.c.l.s4 1966171168
        %v3572 = vunpack.c.0.s8 %v3571
        %v3573 = vlaneseq
        %v3574 = vshrl.u32 %v3573, 7
        %v3575 = vsub.s32 %v3572, %v3574
        %v3576 = vrot.slane %v3562, %v3575
        %v3577 = vcombine.high %v3569, %v3569
        %v3578 = vcombine.high %v3576, %v3576
        %v3580 = vunpack.c.l.s4 1966171168
        %v3581 = vunpack.c.0.s8 %v3580
        %v3582 = vlaneseq
        %v3583 = vshrl.u32 %v3582, 7
        %v3584 = vsub.s32 %v3581, %v3583
        %v3585 = vrot.slane %v3569, %v3584
        %v3587 = vunpack.c.l.s4 1966171168
        %v3588 = vunpack.c.0.s8 %v3587
        %v3589 = vlaneseq
        %v3590 = vshrl.u32 %v3589, 7
        %v3591 = vsub.s32 %v3588, %v3590
        %v3592 = vrot.slane %v3576, %v3591
        %v3594 = vunpack.c.l.s4 1966171168
        %v3595 = vunpack.c.0.s8 %v3594
        %v3596 = vlaneseq
        %v3597 = vshrl.u32 %v3596, 7
        %v3598 = vsub.s32 %v3595, %v3597
        %v3599 = vrot.slane %v3577, %v3598
        %v3601 = vunpack.c.l.s4 1966171168
        %v3602 = vunpack.c.0.s8 %v3601
        %v3603 = vlaneseq
        %v3604 = vshrl.u32 %v3603, 7
        %v3605 = vsub.s32 %v3602, %v3604
        %v3606 = vrot.slane %v3578, %v3605
        %v3607 = vcombine.high %v3585, %v3585
        %v3608 = vcombine.high %v3592, %v3592
        %v3609 = vcombine.high %v3599, %v3599
        %v3610 = vcombine.high %v3606, %v3606
        %v3612 = vunpack.c.l.s4 1966171168
        %v3613 = vunpack.c.0.s8 %v3612
        %v3614 = vlaneseq
        %v3615 = vshrl.u32 %v3614, 7
        %v3616 = vsub.s32 %v3613, %v3615
        %v3617 = vrot.slane %v3551, %v3616
        %v3619 = vunpack.c.l.s4 1966171168
        %v3620 = vunpack.c.0.s8 %v3619
        %v3621 = vlaneseq
        %v3622 = vshrl.u32 %v3621, 7
        %v3623 = vsub.s32 %v3620, %v3622
        %v3624 = vrot.slane %v3617, %v3623
        %v3625 = vcombine.high %v3554, %v3554
        %v3627 = vunpack.c.l.s4 1966171168
        %v3628 = vunpack.c.0.s8 %v3627
        %v3629 = vlaneseq
        %v3630 = vshrl.u32 %v3629, 7
        %v3631 = vsub.s32 %v3628, %v3630
        %v3632 = vrot.slane %v3554, %v3631
        %v3634 = vunpack.c.l.s4 1966171168
        %v3635 = vunpack.c.0.s8 %v3634
        %v3636 = vlaneseq
        %v3637 = vshrl.u32 %v3636, 7
        %v3638 = vsub.s32 %v3635, %v3637
        %v3639 = vrot.slane %v3625, %v3638
        %v3640 = vcombine.high %v3632, %v3632
        %v3641 = vcombine.high %v3639, %v3639
        %v3643 = vunpack.c.l.s4 1966171168
        %v3644 = vunpack.c.0.s8 %v3643
        %v3645 = vlaneseq
        %v3646 = vshrl.u32 %v3645, 7
        %v3647 = vsub.s32 %v3644, %v3646
        %v3648 = vrot.slane %v3632, %v3647
        %v3650 = vunpack.c.l.s4 1966171168
        %v3651 = vunpack.c.0.s8 %v3650
        %v3652 = vlaneseq
        %v3653 = vshrl.u32 %v3652, 7
        %v3654 = vsub.s32 %v3651, %v3653
        %v3655 = vrot.slane %v3639, %v3654
        %v3657 = vunpack.c.l.s4 1966171168
        %v3658 = vunpack.c.0.s8 %v3657
        %v3659 = vlaneseq
        %v3660 = vshrl.u32 %v3659, 7
        %v3661 = vsub.s32 %v3658, %v3660
        %v3662 = vrot.slane %v3640, %v3661
        %v3664 = vunpack.c.l.s4 1966171168
        %v3665 = vunpack.c.0.s8 %v3664
        %v3666 = vlaneseq
        %v3667 = vshrl.u32 %v3666, 7
        %v3668 = vsub.s32 %v3665, %v3667
        %v3669 = vrot.slane %v3641, %v3668
        %v3670 = vcombine.high %v3648, %v3648
        %v3671 = vcombine.high %v3655, %v3655
        %v3672 = vcombine.high %v3662, %v3662
        %v3673 = vcombine.high %v3669, %v3669
        %v3675 = vunpack.c.l.s4 1966171168
        %v3676 = vunpack.c.0.s8 %v3675
        %v3677 = vlaneseq
        %v3678 = vshrl.u32 %v3677, 7
        %v3679 = vsub.s32 %v3676, %v3678
        %v3680 = vrot.slane %v3557, %v3679
        %v3682 = vunpack.c.l.s4 1966171168
        %v3683 = vunpack.c.0.s8 %v3682
        %v3684 = vlaneseq
        %v3685 = vshrl.u32 %v3684, 7
        %v3686 = vsub.s32 %v3683, %v3685
        %v3687 = vrot.slane %v3680, %v3686
        %v3688 = vcombine.low %v3585, %v3599
        %v3689 = vcombine.low %v3607, %v3609
        %v3690 = vcombine.low %v3592, %v3606
        %v3691 = vcombine.low %v3608, %v3610
        %v3693 = vunpack.c.l.s4 1966171168
        %v3694 = vunpack.c.0.s8 %v3693
        %v3695 = vlaneseq
        %v3696 = vshrl.u32 %v3695, 7
        %v3697 = vsub.s32 %v3694, %v3696
        %v3698 = vrot.slane %v3688, %v3697
        %v3700 = vunpack.c.l.s4 1966171168
        %v3701 = vunpack.c.0.s8 %v3700
        %v3702 = vlaneseq
        %v3703 = vshrl.u32 %v3702, 7
        %v3704 = vsub.s32 %v3701, %v3703
        %v3705 = vrot.slane %v3689, %v3704
        %v3707 = vunpack.c.l.s4 1966171168
        %v3708 = vunpack.c.0.s8 %v3707
        %v3709 = vlaneseq
        %v3710 = vshrl.u32 %v3709, 7
        %v3711 = vsub.s32 %v3708, %v3710
        %v3712 = vrot.slane %v3690, %v3711
        %v3714 = vunpack.c.l.s4 1966171168
        %v3715 = vunpack.c.0.s8 %v3714
        %v3716 = vlaneseq
        %v3717 = vshrl.u32 %v3716, 7
        %v3718 = vsub.s32 %v3715, %v3717
        %v3719 = vrot.slane %v3691, %v3718
        %v3720 = vcombine.low %v3698, %v3705
        %v3721 = vcombine.low %v3712, %v3719
        %v3723 = vunpack.c.l.s4 1966171168
        %v3724 = vunpack.c.0.s8 %v3723
        %v3725 = vlaneseq
        %v3726 = vshrl.u32 %v3725, 7
        %v3727 = vsub.s32 %v3724, %v3726
        %v3728 = vrot.slane %v3720, %v3727
        %v3730 = vunpack.c.l.s4 1966171168
        %v3731 = vunpack.c.0.s8 %v3730
        %v3732 = vlaneseq
        %v3733 = vshrl.u32 %v3732, 7
        %v3734 = vsub.s32 %v3731, %v3733
        %v3735 = vrot.slane %v3721, %v3734
        %v3736 = vcombine.low %v3728, %v3735
        %v3737 = vcombine.low %v3624, %v3648
        %v3738 = vcombine.low %v3662, %v3670
        %v3739 = vcombine.low %v3672, %v3655
        %v3740 = vcombine.low %v3669, %v3671
        %v3742 = vunpack.c.l.s4 1966171168
        %v3743 = vunpack.c.0.s8 %v3742
        %v3744 = vlaneseq
        %v3745 = vshrl.u32 %v3744, 7
        %v3746 = vsub.s32 %v3743, %v3745
        %v3747 = vrot.slane %v3737, %v3746
        %v3749 = vunpack.c.l.s4 1966171168
        %v3750 = vunpack.c.0.s8 %v3749
        %v3751 = vlaneseq
        %v3752 = vshrl.u32 %v3751, 7
        %v3753 = vsub.s32 %v3750, %v3752
        %v3754 = vrot.slane %v3738, %v3753
        %v3756 = vunpack.c.l.s4 1966171168
        %v3757 = vunpack.c.0.s8 %v3756
        %v3758 = vlaneseq
        %v3759 = vshrl.u32 %v3758, 7
        %v3760 = vsub.s32 %v3757, %v3759
        %v3761 = vrot.slane %v3739, %v3760
        %v3763 = vunpack.c.l.s4 1966171168
        %v3764 = vunpack.c.0.s8 %v3763
        %v3765 = vlaneseq
        %v3766 = vshrl.u32 %v3765, 7
        %v3767 = vsub.s32 %v3764, %v3766
        %v3768 = vrot.slane %v3740, %v3767
        %v3769 = vcombine.low %v3747, %v3754
        %v3770 = vcombine.low %v3761, %v3768
        %v3772 = vunpack.c.l.s4 1966171168
        %v3773 = vunpack.c.0.s8 %v3772
        %v3774 = vlaneseq
        %v3775 = vshrl.u32 %v3774, 7
        %v3776 = vsub.s32 %v3773, %v3775
        %v3777 = vrot.slane %v3769, %v3776
        %v3779 = vunpack.c.l.s4 1966171168
        %v3780 = vunpack.c.0.s8 %v3779
        %v3781 = vlaneseq
        %v3782 = vshrl.u32 %v3781, 7
        %v3783 = vsub.s32 %v3780, %v3782
        %v3784 = vrot.slane %v3770, %v3783
        %v3785 = vcombine.low %v3777, %v3784
        %v3786 = vcombine.low %v3673, %v3687
        %v3788 = vunpack.c.l.s4 1966171168
        %v3789 = vunpack.c.0.s8 %v3788
        %v3790 = vlaneseq
        %v3791 = vshrl.u32 %v3790, 7
        %v3792 = vsub.s32 %v3789, %v3791
        %v3793 = vrot.slane %v3786, %v3792
        %v3795 = vunpack.c.l.s4 1966171168
        %v3796 = vunpack.c.0.s8 %v3795
        %v3797 = vlaneseq
        %v3798 = vshrl.u32 %v3797, 7
        %v3799 = vsub.s32 %v3796, %v3798
        %v3800 = vrot.slane %v3793, %v3799
        %v3804 = vpack.c.bf16 %v3785, %v3736
        %v3805 = vpack.c.bf16 %v3800, %v3800
        %v3806 = vld [vmem:[%s7] sm:$0xf]
        %v3807 = vld [vmem:[%s7 + $0x4] sm:$0xf]
        %v3808 = vld [vmem:[%s7 + $0x8] sm:$0xf]
        %v3809 = vld [vmem:[%s7 + $0xc] sm:$0xf]
        %v3810 = vld [vmem:[%s8] sm:$0x1]
        %v3812 = vlaneseq
        %v3813 = vshrl.u32 %v3812, 7
        %v3814 = vsub.s32 0, %v3813
        %v3815 = vrot.slane %v3810, %v3814
        %v3821 = vunpack.c.l.b16 %v3806
        %v3822 = vunpack.c.l.b16 %v3807
        %v3823 = vunpack.c.l.b16 %v3808
        %v3824 = vunpack.c.l.b16 %v3809
        %v3825 = vpack.c.b16 %v3822, %v3821
        %v3826 = vpack.c.b16 %v3824, %v3823
        %v3830 = vsel %vm972, %v3804, 0
        %v3833 = vsel %vm972, %v3805, 0
        %3835 = vmatprep.subr.bf16.mxu0 0
        %3836 = vmatpush1.bf16.msra.mxu0 %v3825
        %3837 = vmatprep.subr.bf16.mxu0 0
        %3838 = vmatpush1.bf16.msra.mxu0 %v3826
        %3839 = vmatprep.subr.bf16.mxu0 0
        %3840 = vmatpush1.bf16.msra.mxu0 0
        %3841 = vmatprep.subr.bf16.mxu0 0
        %3842 = vmatpush1.bf16.msra.mxu0 0
        %3843 = vmatprep.subr.bf16.mxu0 0
        %3844 = vmatpush1.bf16.msra.mxu0 0
        %3845 = vmatprep.subr.bf16.mxu0 0
        %3846 = vmatpush1.bf16.msra.mxu0 0
        %3847 = vmatprep.subr.bf16.mxu0 0
        %3848 = vmatpush1.bf16.msra.mxu0 0
        %3849 = vmatprep.subr.bf16.mxu0 0
        %3850 = vmatpush1.bf16.msra.mxu0 0
        %3851 = vmatprep.subr.bf16.mxu0 0
        %3852 = vmatpush1.bf16.msra.mxu0 0
        %3853 = vmatprep.subr.bf16.mxu0 0
        %3854 = vmatpush1.bf16.msra.mxu0 0
        %3855 = vmatprep.subr.bf16.mxu0 0
        %3856 = vmatpush1.bf16.msra.mxu0 0
        %3857 = vmatprep.subr.bf16.mxu0 0
        %3858 = vmatpush1.bf16.msra.mxu0 0
        %3859 = vmatprep.subr.bf16.mxu0 0
        %3860 = vmatpush1.bf16.msra.mxu0 0
        %3861 = vmatprep.subr.bf16.mxu0 0
        %3862 = vmatpush1.bf16.msra.mxu0 0
        %3863 = vmatprep.subr.bf16.mxu0 0
        %3864 = vmatpush1.bf16.msra.mxu0 0
        %3865 = vmatprep.subr.bf16.mxu0 0
        %3866 = vmatpush1.bf16.msra.mxu0 0
        %3867 = vmatprep.mubr.bf16.mxu0 0
        %3868 = vmatmul.mubr.bf16.gmra.mrb[0].mxu0 %v3830
        %v3869 = vpop.f32.mrb[0].mxu0
        %v3870 = vadd.f32 %v3815, %v3869
        %v3871 = vpop.f32.mrb[0].mxu0
        %v3872 = vpop.f32.mrb[0].mxu0
        %v3873 = vadd.f32 %v3815, %v3872
        %v3874 = vpop.f32.mrb[0].mxu0
        %3875 = vmatprep.mubr.bf16.mxu0 0
        %3876 = vmatmul.mubr.bf16.gmra.mrb[0].mxu0 %v3833
        %v3877 = vpop.f32.mrb[0].mxu0
        %v3878 = vadd.f32 %v3815, %v3877
        %v3879 = vpop.f32.mrb[0].mxu0
        %v3880 = vpop.f32.mrb[0].mxu0
        %v3881 = vpop.f32.mrb[0].mxu0
        %3882 = vdwg.mxu0
        %v3886 = vcombine.high %v3870, %v3870
        %v3888 = vunpack.c.l.s4 1966171168
        %v3889 = vunpack.c.0.s8 %v3888
        %v3890 = vlaneseq
        %v3891 = vshrl.u32 %v3890, 7
        %v3892 = vsub.s32 %v3889, %v3891
        %v3893 = vrot.slane %v3870, %v3892
        %v3895 = vunpack.c.l.s4 1966171168
        %v3896 = vunpack.c.0.s8 %v3895
        %v3897 = vlaneseq
        %v3898 = vshrl.u32 %v3897, 7
        %v3899 = vsub.s32 %v3896, %v3898
        %v3900 = vrot.slane %v3886, %v3899
        %v3901 = vcombine.high %v3893, %v3893
        %v3902 = vcombine.high %v3900, %v3900
        %v3904 = vunpack.c.l.s4 1966171168
        %v3905 = vunpack.c.0.s8 %v3904
        %v3906 = vlaneseq
        %v3907 = vshrl.u32 %v3906, 7
        %v3908 = vsub.s32 %v3905, %v3907
        %v3909 = vrot.slane %v3893, %v3908
        %v3911 = vunpack.c.l.s4 1966171168
        %v3912 = vunpack.c.0.s8 %v3911
        %v3913 = vlaneseq
        %v3914 = vshrl.u32 %v3913, 7
        %v3915 = vsub.s32 %v3912, %v3914
        %v3916 = vrot.slane %v3900, %v3915
        %v3918 = vunpack.c.l.s4 1966171168
        %v3919 = vunpack.c.0.s8 %v3918
        %v3920 = vlaneseq
        %v3921 = vshrl.u32 %v3920, 7
        %v3922 = vsub.s32 %v3919, %v3921
        %v3923 = vrot.slane %v3901, %v3922
        %v3925 = vunpack.c.l.s4 1966171168
        %v3926 = vunpack.c.0.s8 %v3925
        %v3927 = vlaneseq
        %v3928 = vshrl.u32 %v3927, 7
        %v3929 = vsub.s32 %v3926, %v3928
        %v3930 = vrot.slane %v3902, %v3929
        %v3931 = vcombine.high %v3909, %v3909
        %v3932 = vcombine.high %v3916, %v3916
        %v3933 = vcombine.high %v3923, %v3923
        %v3934 = vcombine.high %v3930, %v3930
        %v3935 = vcombine.high %v3873, %v3873
        %v3937 = vunpack.c.l.s4 1966171168
        %v3938 = vunpack.c.0.s8 %v3937
        %v3939 = vlaneseq
        %v3940 = vshrl.u32 %v3939, 7
        %v3941 = vsub.s32 %v3938, %v3940
        %v3942 = vrot.slane %v3873, %v3941
        %v3944 = vunpack.c.l.s4 1966171168
        %v3945 = vunpack.c.0.s8 %v3944
        %v3946 = vlaneseq
        %v3947 = vshrl.u32 %v3946, 7
        %v3948 = vsub.s32 %v3945, %v3947
        %v3949 = vrot.slane %v3935, %v3948
        %v3950 = vcombine.high %v3942, %v3942
        %v3951 = vcombine.high %v3949, %v3949
        %v3953 = vunpack.c.l.s4 1966171168
        %v3954 = vunpack.c.0.s8 %v3953
        %v3955 = vlaneseq
        %v3956 = vshrl.u32 %v3955, 7
        %v3957 = vsub.s32 %v3954, %v3956
        %v3958 = vrot.slane %v3942, %v3957
        %v3960 = vunpack.c.l.s4 1966171168
        %v3961 = vunpack.c.0.s8 %v3960
        %v3962 = vlaneseq
        %v3963 = vshrl.u32 %v3962, 7
        %v3964 = vsub.s32 %v3961, %v3963
        %v3965 = vrot.slane %v3949, %v3964
        %v3967 = vunpack.c.l.s4 1966171168
        %v3968 = vunpack.c.0.s8 %v3967
        %v3969 = vlaneseq
        %v3970 = vshrl.u32 %v3969, 7
        %v3971 = vsub.s32 %v3968, %v3970
        %v3972 = vrot.slane %v3950, %v3971
        %v3974 = vunpack.c.l.s4 1966171168
        %v3975 = vunpack.c.0.s8 %v3974
        %v3976 = vlaneseq
        %v3977 = vshrl.u32 %v3976, 7
        %v3978 = vsub.s32 %v3975, %v3977
        %v3979 = vrot.slane %v3951, %v3978
        %v3980 = vcombine.high %v3958, %v3958
        %v3981 = vcombine.high %v3965, %v3965
        %v3982 = vcombine.high %v3972, %v3972
        %v3983 = vcombine.high %v3979, %v3979
        %v3985 = vunpack.c.l.s4 1966171168
        %v3986 = vunpack.c.0.s8 %v3985
        %v3987 = vlaneseq
        %v3988 = vshrl.u32 %v3987, 7
        %v3989 = vsub.s32 %v3986, %v3988
        %v3990 = vrot.slane %v3878, %v3989
        %v3991 = vcombine.high %v3990, %v3990
        %v3993 = vunpack.c.l.s4 1966171168
        %v3994 = vunpack.c.0.s8 %v3993
        %v3995 = vlaneseq
        %v3996 = vshrl.u32 %v3995, 7
        %v3997 = vsub.s32 %v3994, %v3996
        %v3998 = vrot.slane %v3990, %v3997
        %v4000 = vunpack.c.l.s4 1966171168
        %v4001 = vunpack.c.0.s8 %v4000
        %v4002 = vlaneseq
        %v4003 = vshrl.u32 %v4002, 7
        %v4004 = vsub.s32 %v4001, %v4003
        %v4005 = vrot.slane %v3991, %v4004
        %v4006 = vlaneseq
        %v4007 = vshrl.u32 %v4006, 7
        %v4008 = vadd.s32 %v4007, 8
        %v4009 = vstv %s406
        %v4010 = vadd.s32 %v4009, %v4007
        %v4011 = vadd.s32 %v4009, %v4008
        %vm4012 = vcmp.lt.s32.totalorder %v4010, 16
        %vm4013 = vcmp.lt.s32.totalorder %v4011, 16
        %v4014 = vsel %vm4012, 1, 0
        %v4015 = vsel %vm4013, 1, 0
        %vm4016 = vcmp.eq.s32.totalorder %v4014, 1
        %vm4017 = vcmp.eq.s32.totalorder %v4015, 1
        %v4018 = vcombine.low %v3909, %v3923
        %v4019 = vcombine.low %v3931, %v3933
        %v4020 = vcombine.low %v3916, %v3930
        %v4021 = vcombine.low %v3932, %v3934
        %v4023 = vunpack.c.l.s4 1966171168
        %v4024 = vunpack.c.0.s8 %v4023
        %v4025 = vlaneseq
        %v4026 = vshrl.u32 %v4025, 7
        %v4027 = vsub.s32 %v4024, %v4026
        %v4028 = vrot.slane %v4018, %v4027
        %v4030 = vunpack.c.l.s4 1966171168
        %v4031 = vunpack.c.0.s8 %v4030
        %v4032 = vlaneseq
        %v4033 = vshrl.u32 %v4032, 7
        %v4034 = vsub.s32 %v4031, %v4033
        %v4035 = vrot.slane %v4019, %v4034
        %v4037 = vunpack.c.l.s4 1966171168
        %v4038 = vunpack.c.0.s8 %v4037
        %v4039 = vlaneseq
        %v4040 = vshrl.u32 %v4039, 7
        %v4041 = vsub.s32 %v4038, %v4040
        %v4042 = vrot.slane %v4020, %v4041
        %v4044 = vunpack.c.l.s4 1966171168
        %v4045 = vunpack.c.0.s8 %v4044
        %v4046 = vlaneseq
        %v4047 = vshrl.u32 %v4046, 7
        %v4048 = vsub.s32 %v4045, %v4047
        %v4049 = vrot.slane %v4021, %v4048
        %v4050 = vcombine.low %v4028, %v4035
        %v4051 = vcombine.low %v4042, %v4049
        %v4053 = vunpack.c.l.s4 1966171168
        %v4054 = vunpack.c.0.s8 %v4053
        %v4055 = vlaneseq
        %v4056 = vshrl.u32 %v4055, 7
        %v4057 = vsub.s32 %v4054, %v4056
        %v4058 = vrot.slane %v4050, %v4057
        %v4060 = vunpack.c.l.s4 1966171168
        %v4061 = vunpack.c.0.s8 %v4060
        %v4062 = vlaneseq
        %v4063 = vshrl.u32 %v4062, 7
        %v4064 = vsub.s32 %v4061, %v4063
        %v4065 = vrot.slane %v4051, %v4064
        %v4066 = vcombine.low %v4058, %v4065
        %v4068 = vunpack.c.l.s4 1966171168
        %v4069 = vunpack.c.0.s8 %v4068
        %v4070 = vlaneseq
        %v4071 = vshrl.u32 %v4070, 7
        %v4072 = vsub.s32 %v4069, %v4071
        %v4073 = vrot.slane %v3958, %v4072
        %v4075 = vunpack.c.l.s4 1966171168
        %v4076 = vunpack.c.0.s8 %v4075
        %v4077 = vlaneseq
        %v4078 = vshrl.u32 %v4077, 7
        %v4079 = vsub.s32 %v4076, %v4078
        %v4080 = vrot.slane %v4073, %v4079
        %v4081 = vcombine.low %v3972, %v3980
        %v4082 = vcombine.low %v3982, %v3965
        %v4083 = vcombine.low %v3979, %v3981
        %v4084 = vcombine.low %v3983, %v3998
        %v4086 = vunpack.c.l.s4 1966171168
        %v4087 = vunpack.c.0.s8 %v4086
        %v4088 = vlaneseq
        %v4089 = vshrl.u32 %v4088, 7
        %v4090 = vsub.s32 %v4087, %v4089
        %v4091 = vrot.slane %v4081, %v4090
        %v4093 = vunpack.c.l.s4 1966171168
        %v4094 = vunpack.c.0.s8 %v4093
        %v4095 = vlaneseq
        %v4096 = vshrl.u32 %v4095, 7
        %v4097 = vsub.s32 %v4094, %v4096
        %v4098 = vrot.slane %v4082, %v4097
        %v4100 = vunpack.c.l.s4 1966171168
        %v4101 = vunpack.c.0.s8 %v4100
        %v4102 = vlaneseq
        %v4103 = vshrl.u32 %v4102, 7
        %v4104 = vsub.s32 %v4101, %v4103
        %v4105 = vrot.slane %v4083, %v4104
        %v4107 = vunpack.c.l.s4 1966171168
        %v4108 = vunpack.c.0.s8 %v4107
        %v4109 = vlaneseq
        %v4110 = vshrl.u32 %v4109, 7
        %v4111 = vsub.s32 %v4108, %v4110
        %v4112 = vrot.slane %v4084, %v4111
        %v4113 = vcombine.low %v4091, %v4098
        %v4114 = vcombine.low %v4105, %v4112
        %v4116 = vunpack.c.l.s4 1966171168
        %v4117 = vunpack.c.0.s8 %v4116
        %v4118 = vlaneseq
        %v4119 = vshrl.u32 %v4118, 7
        %v4120 = vsub.s32 %v4117, %v4119
        %v4121 = vrot.slane %v4113, %v4120
        %v4123 = vunpack.c.l.s4 1966171168
        %v4124 = vunpack.c.0.s8 %v4123
        %v4125 = vlaneseq
        %v4126 = vshrl.u32 %v4125, 7
        %v4127 = vsub.s32 %v4124, %v4126
        %v4128 = vrot.slane %v4114, %v4127
        %v4129 = vcombine.low %v4121, %v4128
        %v4131 = vunpack.c.l.s4 1966171168
        %v4132 = vunpack.c.0.s8 %v4131
        %v4133 = vlaneseq
        %v4134 = vshrl.u32 %v4133, 7
        %v4135 = vsub.s32 %v4132, %v4134
        %v4136 = vrot.slane %v4005, %v4135
        %v4138 = vunpack.c.l.s4 1966171168
        %v4139 = vunpack.c.0.s8 %v4138
        %v4140 = vlaneseq
        %v4141 = vshrl.u32 %v4140, 7
        %v4142 = vsub.s32 %v4139, %v4141
        %v4143 = vrot.slane %v4136, %v4142
        %v4148 = vsel %vm4016, %v4066, 0.0
        %v4149 = vsel %vm4017, %v4080, 0.0
        %v4150 = vsel %vm4016, %v4129, 0.0
        %v4151 = vsel %vm4017, %v4143, 0.0
        %4154 = vrot.lane.b32.xlu0 %v4148, 127
        %v4155 = vpop.permute.xlu0 %4154
        %4156 = vrot.lane.b32.xlu0 %v4150, 127
        %v4157 = vpop.permute.xlu0 %4156
        %v4160 = vsel %vm600, %v4155, 0.0
        %v4161 = vsel %vm600, %v4157, 0.0
        %v4164 = vrot.slane %v4148, 1
        %v4165 = vrot.slane %v4149, 1
        %v4166 = vsel %vm613, %v4164, %v4165
        %v4167 = vrot.slane %v4150, 1
        %v4168 = vrot.slane %v4151, 1
        %v4169 = vsel %vm613, %v4167, %v4168
        %4172 = vrot.lane.b32.xlu0 %v4166, 127
        %v4173 = vpop.permute.xlu0 %4172
        %4174 = vrot.lane.b32.xlu0 %v4169, 127
        %v4175 = vpop.permute.xlu0 %4174
        %v4178 = vsel %vm600, %v4173, 0.0
        %v4179 = vsel %vm600, %v4175, 0.0
        %s4180 = sld [smem:[#allocation6]]
        %v4181 = vstv %s4180
        %v4182 = vmul.f32 %v4148, %v4181
        %v4183 = vmul.f32 %v4150, %v4181
        %s4184 = sld [smem:[#allocation6 + $0x1]]
        %v4185 = vstv %s4184
        %v4186 = vmul.f32 %v4160, %v4185
        %v4187 = vmul.f32 %v4161, %v4185
        %v4188 = vadd.f32 %v4182, %v4186
        %v4189 = vadd.f32 %v4183, %v4187
        %s4190 = sld [smem:[#allocation6 + $0x2]]
        %v4191 = vstv %s4190
        %v4192 = vmul.f32 %v4166, %v4191
        %v4193 = vmul.f32 %v4169, %v4191
        %v4194 = vadd.f32 %v4188, %v4192
        %v4195 = vadd.f32 %v4189, %v4193
        %s4196 = sld [smem:[#allocation6 + $0x3]]
        %v4197 = vstv %s4196
        %v4198 = vmul.f32 %v4178, %v4197
        %v4199 = vmul.f32 %v4179, %v4197
        %v4200 = vadd.f32 %v4194, %v4198
        %v4201 = vadd.f32 %v4195, %v4199
        %s4202 = sld [smem:[#allocation8]]
        %v4203 = vstv %s4202
        %v4204 = vadd.f32 %v4200, %v4203
        %v4205 = vadd.f32 %v4201, %v4203
        %v4206 = vxor.u32 %v4204, 2147483648
        %v4207 = vxor.u32 %v4205, 2147483648
        %v4208 = vmul.f32 %v4206, 1.442695
        %v4209 = vpow.pop %v4208
        %v4210 = vmul.f32 %v4207, 1.442695
        %v4211 = vpow.pop %v4210
        %v4212 = vadd.f32 %v4209, 1.0
        %v4213 = vadd.f32 %v4211, 1.0
        %v4214 = vrcp.pop %v4212
        %v4215 = vmul.f32 1.0, %v4214
        %v4216 = vrcp.pop %v4213
        %v4217 = vmul.f32 1.0, %v4216
        %v4218 = vmul.f32 %v4204, %v4215
        %v4219 = vmul.f32 %v4205, %v4217
        %v4220 = vadd.f32 %v4218, %v408
        %v4221 = vadd.f32 %v4219, %v416
        %4222 = vst.msk [vmem:[%s404] sm:$0xff] %vm972, %v4220
        %4223 = vst.msk [vmem:[%s404 + $0x20] sm:$0xff] %vm972, %v4221
        %s4224 = sld [smem:[#allocation6 + $0x80]]
        %v4225 = vstv %s4224
        %v4226 = vmul.f32 %v4148, %v4225
        %v4227 = vmul.f32 %v4150, %v4225
        %s4228 = sld [smem:[#allocation6 + $0x81]]
        %v4229 = vstv %s4228
        %v4230 = vmul.f32 %v4160, %v4229
        %v4231 = vmul.f32 %v4161, %v4229
        %v4232 = vadd.f32 %v4226, %v4230
        %v4233 = vadd.f32 %v4227, %v4231
        %s4234 = sld [smem:[#allocation6 + $0x82]]
        %v4235 = vstv %s4234
        %v4236 = vmul.f32 %v4166, %v4235
        %v4237 = vmul.f32 %v4169, %v4235
        %v4238 = vadd.f32 %v4232, %v4236
        %v4239 = vadd.f32 %v4233, %v4237
        %s4240 = sld [smem:[#allocation6 + $0x83]]
        %v4241 = vstv %s4240
        %v4242 = vmul.f32 %v4178, %v4241
        %v4243 = vmul.f32 %v4179, %v4241
        %v4244 = vadd.f32 %v4238, %v4242
        %v4245 = vadd.f32 %v4239, %v4243
        %s4246 = sld [smem:[#allocation8 + $0x1]]
        %v4247 = vstv %s4246
        %v4248 = vadd.f32 %v4244, %v4247
        %v4249 = vadd.f32 %v4245, %v4247
        %v4250 = vxor.u32 %v4248, 2147483648
        %v4251 = vxor.u32 %v4249, 2147483648
        %v4252 = vmul.f32 %v4250, 1.442695
        %v4253 = vpow.pop %v4252
        %v4254 = vmul.f32 %v4251, 1.442695
        %v4255 = vpow.pop %v4254
        %v4256 = vadd.f32 %v4253, 1.0
        %v4257 = vadd.f32 %v4255, 1.0
        %v4258 = vrcp.pop %v4256
        %v4259 = vmul.f32 1.0, %v4258
        %v4260 = vrcp.pop %v4257
        %v4261 = vmul.f32 1.0, %v4260
        %v4262 = vmul.f32 %v4248, %v4259
        %v4263 = vmul.f32 %v4249, %v4261
        %v4264 = vadd.f32 %v4262, %v410
        %v4265 = vadd.f32 %v4263, %v418
        %s4266 = scalar_lea.vmem %s404, 8 [#allocation9]
        %4267 = vst.msk [vmem:[%s4266] sm:$0xff] %vm972, %v4264
        %4268 = vst.msk [vmem:[%s4266 + $0x20] sm:$0xff] %vm972, %v4265
        %s4269 = sld [smem:[#allocation6 + $0x100]]
        %v4270 = vstv %s4269
        %v4271 = vmul.f32 %v4148, %v4270
        %v4272 = vmul.f32 %v4150, %v4270
        %s4273 = sld [smem:[#allocation6 + $0x101]]
        %v4274 = vstv %s4273
        %v4275 = vmul.f32 %v4160, %v4274
        %v4276 = vmul.f32 %v4161, %v4274
        %v4277 = vadd.f32 %v4271, %v4275
        %v4278 = vadd.f32 %v4272, %v4276
        %s4279 = sld [smem:[#allocation6 + $0x102]]
        %v4280 = vstv %s4279
        %v4281 = vmul.f32 %v4166, %v4280
        %v4282 = vmul.f32 %v4169, %v4280
        %v4283 = vadd.f32 %v4277, %v4281
        %v4284 = vadd.f32 %v4278, %v4282
        %s4285 = sld [smem:[#allocation6 + $0x103]]
        %v4286 = vstv %s4285
        %v4287 = vmul.f32 %v4178, %v4286
        %v4288 = vmul.f32 %v4179, %v4286
        %v4289 = vadd.f32 %v4283, %v4287
        %v4290 = vadd.f32 %v4284, %v4288
        %s4291 = sld [smem:[#allocation8 + $0x2]]
        %v4292 = vstv %s4291
        %v4293 = vadd.f32 %v4289, %v4292
        %v4294 = vadd.f32 %v4290, %v4292
        %v4295 = vxor.u32 %v4293, 2147483648
        %v4296 = vxor.u32 %v4294, 2147483648
        %v4297 = vmul.f32 %v4295, 1.442695
        %v4298 = vpow.pop %v4297
        %v4299 = vmul.f32 %v4296, 1.442695
        %v4300 = vpow.pop %v4299
        %v4301 = vadd.f32 %v4298, 1.0
        %v4302 = vadd.f32 %v4300, 1.0
        %v4303 = vrcp.pop %v4301
        %v4304 = vmul.f32 1.0, %v4303
        %v4305 = vrcp.pop %v4302
        %v4306 = vmul.f32 1.0, %v4305
        %v4307 = vmul.f32 %v4293, %v4304
        %v4308 = vmul.f32 %v4294, %v4306
        %v4309 = vadd.f32 %v4307, %v412
        %v4310 = vadd.f32 %v4308, %v420
        %s4311 = scalar_lea.vmem %s404, 16 [#allocation9]
        %4312 = vst.msk [vmem:[%s4311] sm:$0xff] %vm972, %v4309
        %4313 = vst.msk [vmem:[%s4311 + $0x20] sm:$0xff] %vm972, %v4310
        %s4314 = sld [smem:[#allocation6 + $0x180]]
        %v4315 = vstv %s4314
        %v4316 = vmul.f32 %v4148, %v4315
        %v4317 = vmul.f32 %v4150, %v4315
        %s4318 = sld [smem:[#allocation6 + $0x181]]
        %v4319 = vstv %s4318
        %v4320 = vmul.f32 %v4160, %v4319
        %v4321 = vmul.f32 %v4161, %v4319
        %v4322 = vadd.f32 %v4316, %v4320
        %v4323 = vadd.f32 %v4317, %v4321
        %s4324 = sld [smem:[#allocation6 + $0x182]]
        %v4325 = vstv %s4324
        %v4326 = vmul.f32 %v4166, %v4325
        %v4327 = vmul.f32 %v4169, %v4325
        %v4328 = vadd.f32 %v4322, %v4326
        %v4329 = vadd.f32 %v4323, %v4327
        %s4330 = sld [smem:[#allocation6 + $0x183]]
        %v4331 = vstv %s4330
        %v4332 = vmul.f32 %v4178, %v4331
        %v4333 = vmul.f32 %v4179, %v4331
        %v4334 = vadd.f32 %v4328, %v4332
        %v4335 = vadd.f32 %v4329, %v4333
        %s4336 = sld [smem:[#allocation8 + $0x3]]
        %v4337 = vstv %s4336
        %v4338 = vadd.f32 %v4334, %v4337
        %v4339 = vadd.f32 %v4335, %v4337
        %v4340 = vxor.u32 %v4338, 2147483648
        %v4341 = vxor.u32 %v4339, 2147483648
        %v4342 = vmul.f32 %v4340, 1.442695
        %v4343 = vpow.pop %v4342
        %v4344 = vmul.f32 %v4341, 1.442695
        %v4345 = vpow.pop %v4344
        %v4346 = vadd.f32 %v4343, 1.0
        %v4347 = vadd.f32 %v4345, 1.0
        %v4348 = vrcp.pop %v4346
        %v4349 = vmul.f32 1.0, %v4348
        %v4350 = vrcp.pop %v4347
        %v4351 = vmul.f32 1.0, %v4350
        %v4352 = vmul.f32 %v4338, %v4349
        %v4353 = vmul.f32 %v4339, %v4351
        %v4354 = vadd.f32 %v4352, %v414
        %v4355 = vadd.f32 %v4353, %v422
        %s4356 = scalar_lea.vmem %s404, 24 [#allocation9]
        %4357 = vst.msk [vmem:[%s4356] sm:$0xff] %vm972, %v4354
        %4358 = vst.msk [vmem:[%s4356 + $0x20] sm:$0xff] %vm972, %v4355
        %s4359 = sand.u32 %s267, 1
        %s4360 = scalar_lea.sflag [#allocation4], %s4359
        %s4361 = sand.u32 %s267, 1
        %s4362 = smul.addr %s4361, 64
        %s4363 = scalar_lea.vmem [#allocation9], %s4362
        // Predicated region
        $region77: #{attention_conv_forward.1} parent=63 // pred_check
          %p4364 = pneg %p277
        $region78: #{attention_conv_forward.1} parent=63 // pred_check_branch
          %4366 = sbr.rel (%p4364) target = $region80
        $region79: #{attention_conv_forward.1} parent=63 // pred_region
          %s4368 = ssub.s32 1024, 1024
          %4369 = vsyncadd %s4360, %s4368
          %s4370 = smul.addr %s28, 128
          %s4371 = scalar_lea.hbm %s11, %s4370
          %s4372 = sshll.u32 %s4363, 4
          %s4373 = int_to_ptr.vmem [resolvable:$true] %s4372
          %4378 = dma.vmem_to_hbm [thread:$0]  %s4373, 1024, %s4371, %s4360, 128, 256, 8
        $region80: #{attention_conv_forward.1} parent=63 // pred_fallthru
          _
      $region64: #{attention_conv_forward.1} parent=5 // pred_fallthru
        _
      %p4379 = scmp.le.s32.totalorder 2, %s23
      // Predicated region
      $region81: #{attention_conv_forward.1} parent=5 // pred_check
        %p4380 = pneg %p4379
      $region82: #{attention_conv_forward.1} parent=5 // pred_check_branch
        %4382 = sbr.rel (%p4380) target = $region84
      $region83: #{attention_conv_forward.1} parent=5 // pred_region
        %s4383 = ssub.s32 %s23, 2
        // Predicated region
        $region85: #{attention_conv_forward.1} parent=83 // pred_check
          %p4384 = pneg %p283
        $region86: #{attention_conv_forward.1} parent=83 // pred_check_branch
          %4386 = sbr.rel (%p4384) target = $region88
        $region87: #{attention_conv_forward.1} parent=83 // pred_region
          %s4387 = sand.u32 %s268, 1
          %s4388 = scalar_lea.sflag [#allocation4], %s4387
          %s4389 = sand.u32 %s268, 1
          %s4390 = smul.addr %s4389, 64
          %s4391 = scalar_lea.vmem [#allocation9], %s4390
          %4392 = dma.done %s4388, 1024
        $region88: #{attention_conv_forward.1} parent=83 // pred_fallthru
          _
      $region84: #{attention_conv_forward.1} parent=5 // pred_fallthru
        _
    $region6: #{attention_conv_forward.1} parent=1 // loop_footer
      %s27 = sadd.s32 1, %s23
    $region7: #{attention_conv_forward.1} parent=1 // loop_footer_branch
      %22 = sbr.rel target = $region3
    $region8: #{attention_conv_forward.1} parent=1 // loop_exit
      _
    %4393 = vsyncpa [#allocation4], 1
    %s4394 = scalar_lea.sflag [#allocation4], 1
    %4395 = vsyncpa %s4394, 1
    %4396 = vsyncpa [#allocation5], 1
    %s4397 = scalar_lea.sflag [#allocation5], 1
    %4398 = vsyncpa %s4397, 1
    %4399 = vsyncpa [#allocation7], 1

</llo_original>
